<compile_context>
chip_gen: v5e
topology: v5e:2x2
jax: 0.10.0
libtpu: 0.0.40
codegen_flags: <defaults>
</compile_context>

<pallas_src>
import functools

import jax
import jax.numpy as jnp
from jax.experimental import pallas as pl
from jax.experimental.pallas import tpu as pltpu

LN_EPS = 1e-5
_INV_SQRT2 = 0.7071067811865476


# ----------------------------------------------------------------------------
# in-kernel helpers (all f32)
# ----------------------------------------------------------------------------
def _layernorm(x, gamma, beta):
    mu = jnp.mean(x, axis=-1, keepdims=True)
    var = jnp.mean((x - mu) ** 2, axis=-1, keepdims=True)
    return (x - mu) * jax.lax.rsqrt(var + LN_EPS) * gamma + beta


def _gelu(x):
    # exact (erf) GELU: matches torch.nn.GELU() default
    return 0.5 * x * (1.0 + jax.lax.erf(x * _INV_SQRT2))


# ----------------------------------------------------------------------------
# Pallas kernel: one (batch element, q-tile) of one co-attention branch
# ----------------------------------------------------------------------------
def _co_branch_kernel(num_heads, approx_recip,
                      xq_ref, xkv_ref,
                      lnq_g, lnq_b, lnk_g, lnk_b,
                      wq, bq, wk, bk, wv, bv, woh, bo,
                      lnm_g, lnm_b, w1, b1, w2, b2,
                      out_ref,
                      kh_ref, vh_ref):
    H = num_heads
    mmt = wq.dtype                      # matmul operand dtype (f32 or bf16)

    # ---- K/V path: kv LayerNorm + K/V projections computed ONCE per batch element.
    # The q-tile grid axis is "arbitrary" (sequential), so the scratch cache written
    # at q-tile 0 is reused by every remaining q-tile of this batch element.
    @pl.when(pl.program_id(1) == 0)
    def _():
        xkv = xkv_ref[0].astype(jnp.float32)                    # (Sk, E)
        Sk, E = xkv.shape
        Dh = E // H
        kvn = _layernorm(xkv, lnk_g[...], lnk_b[...]).astype(mmt)
        k = jnp.dot(kvn, wk[...], preferred_element_type=jnp.float32) + bk[...]
        v = jnp.dot(kvn, wv[...], preferred_element_type=jnp.float32) + bv[...]
        # head split amortized over all q-tiles of this batch element
        for h in range(H):
            kh_ref[h] = k[:, h * Dh:(h + 1) * Dh].astype(kh_ref.dtype)
            vh_ref[h] = v[:, h * Dh:(h + 1) * Dh].astype(vh_ref.dtype)

    xq = xq_ref[0].astype(jnp.float32)                          # (TQ, E)
    TQ, E = xq.shape
    Dh = E // H

    # query-side pre-LayerNorm + Q projection (1/sqrt(Dh) folded into wq/bq)
    a = _layernorm(xq, lnq_g[...], lnq_b[...])
    q = jnp.dot(a.astype(mmt), wq[...], preferred_element_type=jnp.float32) + bq[...]
    # TODO(synk): a (TQ,E)->(H,TQ,Dh) reshape+transpose would avoid these H slice
    # copies, but Mosaic only lowers minor-two-dim transposes; keep the slice split.
    qh = jnp.stack([q[:, h * Dh:(h + 1) * Dh] for h in range(H)],
                   axis=0).astype(mmt)                          # (H, TQ, Dh)

    kh = kh_ref[...]                                            # (H, Sk, Dh), mmt
    vh = vh_ref[...]                                            # (H, Sk, Dh), mmt

    s = jnp.einsum("hqd,hkd->hqk", qh, kh,
                   preferred_element_type=jnp.float32)          # (H, TQ, Sk)
    s = s - jnp.max(s, axis=-1, keepdims=True)
    p = jnp.exp(s)
    l = jnp.sum(p, axis=-1, keepdims=True)                      # (H, TQ, 1)
    ctx = jnp.einsum("hqk,hkd->hqd", p.astype(mmt), vh,
                     preferred_element_type=jnp.float32)        # (H, TQ, Dh)
    # normalize AFTER the PV matmul: H*TQ*Dh multiplies instead of H*TQ*Sk
    inv_l = pl.reciprocal(l, approx=True) if approx_recip else 1.0 / l
    ctx = ctx * inv_l

    # head merge folded into the output projection: batched per-head matmul against
    # the head-major Wo, then sum over heads (no lane-masked concat of (TQ,Dh) slices).
    t = jnp.einsum("hqd,hde->hqe", ctx.astype(mmt), woh[...],
                   preferred_element_type=jnp.float32)          # (H, TQ, E)
    attn = jnp.sum(t, axis=0) + bo[...]
    c = attn + xq                                               # first residual

    # MLP: LayerNorm -> Linear -> GELU -> Linear -> GELU (-> Dropout = id)
    y = _layernorm(c, lnm_g[...], lnm_b[...])
    h1 = _gelu(jnp.dot(y.astype(mmt), w1[...],
                       preferred_element_type=jnp.float32) + b1[...])
    h2 = _gelu(jnp.dot(h1.astype(mmt), w2[...],
                       preferred_element_type=jnp.float32) + b2[...])

    out_ref[0] = (h2 + c).astype(out_ref.dtype)                 # second residual


# ----------------------------------------------------------------------------
# wrapper for one branch: grid = (batch, q-tiles) = (parallel, arbitrary)
# ----------------------------------------------------------------------------
def _pick_q_tile(sq):
    if sq <= 256:
        return sq
    # prefer MXU-row-sized tiles (256 on v6e/v7x, 128 fills v5e) over small divisors
    for t in (256, 128, 64, 32, 16, 8):
        if sq % t == 0:
            return t
    return sq


def _device_vmem_bytes():
    try:
        cap = getattr(pltpu.get_tpu_info(), "vmem_capacity_bytes", None)
        if cap:
            return int(cap)
    except Exception:
        pass
    return 64 * 1024 * 1024   # conservative fallback (v7x per-TensorCore VMEM)


def co_branch(x_q, x_kv, ln_q, ln_k, mha, mlp, num_heads, *,
              matmul_dtype=jnp.bfloat16, q_tile=None):
    """x_q: (B, Sq, E), x_kv: (B, Sk, E)  ->  (B, Sq, E)."""
    B, Sq, E = x_q.shape
    Sk = x_kv.shape[1]
    M = mlp["w1"].shape[1]
    assert E % num_heads == 0, "embed_dim must be divisible by num_heads"
    Dh = E // num_heads

    TQ = q_tile or _pick_q_tile(Sq)
    assert Sq % TQ == 0
    n_q = Sq // TQ

    # exact division for the f32 parity path, EUP approx reciprocal for the fast path
    approx_recip = jnp.dtype(matmul_dtype) != jnp.dtype(jnp.float32)

    # fold the softmax scale into the Q projection (exact); bf16 weights by default
    scale = 1.0 / float(Dh) ** 0.5
    wq = (mha["wq"] * scale).astype(matmul_dtype)
    bq = mha["bq"] * scale
    wk = mha["wk"].astype(matmul_dtype)
    wv = mha["wv"].astype(matmul_dtype)
    # output projection reshaped head-major so the head merge happens inside the matmul
    woh = mha["wo"].reshape(num_heads, Dh, E).astype(matmul_dtype)
    w1 = mlp["w1"].astype(matmul_dtype)
    w2 = mlp["w2"].astype(matmul_dtype)

    def const_spec(shape):
        # grid-invariant operand: fetched once, single-buffered (saves VMEM)
        n = len(shape)
        return pl.BlockSpec(shape, lambda b, qi, n=n: (0,) * n,
                            pipeline_mode=pl.Buffered(1))

    in_specs = [
        pl.BlockSpec((1, TQ, E), lambda b, qi: (b, qi, 0)),   # query-side tile
        pl.BlockSpec((1, Sk, E), lambda b, qi: (b, 0, 0)),    # kv side (refetched per b only)
        const_spec((1, E)), const_spec((1, E)),               # LN query-side
        const_spec((1, E)), const_spec((1, E)),               # LN kv-side
        const_spec((E, E)), const_spec((1, E)),               # Wq (scaled), bq (scaled)
        const_spec((E, E)), const_spec((1, E)),               # Wk, bk
        const_spec((E, E)), const_spec((1, E)),               # Wv, bv
        const_spec((num_heads, Dh, E)), const_spec((1, E)),   # Wo head-major, bo
        const_spec((1, E)), const_spec((1, E)),               # MLP LayerNorm
        const_spec((E, M)), const_spec((1, M)),               # W1, b1
        const_spec((M, E)), const_spec((1, E)),               # W2, b2
    ]
    out_spec = pl.BlockSpec((1, TQ, E), lambda b, qi: (b, qi, 0))

    # ---- advisory cost estimate + device-aware VMEM budget ----
    w_isz = jnp.dtype(matmul_dtype).itemsize
    x_isz = jnp.dtype(x_q.dtype).itemsize
    lane = 128
    dh_pad = max(Dh, lane)
    param_bytes = (4 * E * E + 2 * E * M) * w_isz + (10 * E + M) * 4
    kv_cache_bytes = 2 * num_heads * Sk * dh_pad * w_isz
    io_bytes = 2 * (2 * TQ * E + Sk * E) * x_isz
    act_bytes = (2 * num_heads * TQ * max(Sk, lane) + num_heads * TQ * dh_pad
                 + num_heads * TQ * E + 2 * TQ * M + 6 * TQ * E) * 4
    vmem_est = param_bytes + kv_cache_bytes + io_bytes + act_bytes
    vmem_limit = int(min(int(0.9 * _device_vmem_bytes()),
                         max(32 * 1024 * 1024, int(1.25 * vmem_est))))

    flops = 2 * B * (2 * Sq * E * E       # Q + output projections
                     + 2 * Sk * E * E     # K/V projections (once per batch element)
                     + 2 * Sq * Sk * E    # scores + PV
                     + 2 * Sq * E * M)    # MLP
    transcendentals = B * (num_heads * Sq * Sk + Sq * (M + E))
    bytes_accessed = param_bytes + B * (2 * Sq * E + Sk * E) * x_isz
    cost = pl.CostEstimate(flops=int(flops), transcendentals=int(transcendentals),
                           bytes_accessed=int(bytes_accessed))

    kernel = functools.partial(_co_branch_kernel, num_heads, approx_recip)
    return pl.pallas_call(
        kernel,
        out_shape=jax.ShapeDtypeStruct((B, Sq, E), x_q.dtype),
        grid=(B, n_q),
        in_specs=in_specs,
        out_specs=out_spec,
        scratch_shapes=[pltpu.VMEM((num_heads, Sk, Dh), matmul_dtype),
                        pltpu.VMEM((num_heads, Sk, Dh), matmul_dtype)],
        compiler_params=pltpu.CompilerParams(
            # q-tile axis must be sequential ("arbitrary") so the K/V scratch cache
            # written at q-tile 0 is visible to the remaining q-tiles of the batch elt.
            dimension_semantics=("parallel", "arbitrary"),
            vmem_limit_bytes=vmem_limit),
        cost_estimate=cost,
    )(x_q, x_kv,
      ln_q["g"], ln_q["b"], ln_k["g"], ln_k["b"],
      wq, bq, wk, mha["bk"], wv, mha["bv"], woh, mha["bo"],
      mlp["ln_g"], mlp["ln_b"], w1, mlp["b1"], w2, mlp["b2"])


# ----------------------------------------------------------------------------
# full layer forward (last=False); torch (S, B, E) convention at the boundary
# ----------------------------------------------------------------------------
def co_attention_layer(v, w, params, num_heads, *, matmul_dtype=jnp.bfloat16):
    vb = jnp.transpose(v, (1, 0, 2))   # (B, Sv, E)
    wb = jnp.transpose(w, (1, 0, 2))   # (B, Sw, E)
    v_out = co_branch(vb, wb, params["ln_v"], params["ln_w"],
                      params["mha_v"], params["mlp_v"], num_heads,
                      matmul_dtype=matmul_dtype)
    w_out = co_branch(wb, vb, params["ln_w"], params["ln_v"],
                      params["mha_w"], params["mlp_w"], num_heads,
                      matmul_dtype=matmul_dtype)
    return jnp.transpose(v_out, (1, 0, 2)), jnp.transpose(w_out, (1, 0, 2))


# ----------------------------------------------------------------------------
# deterministic parameter construction (weights stored pre-transposed: y = x @ W + b)
# ----------------------------------------------------------------------------
def init_params(key, embed_dim, mlp_dim):
    def nrm(k, shape, scale=0.05):
        return scale * jax.random.normal(k, shape, jnp.float32)

    def make_ln(k):
        k1, k2 = jax.random.split(k)
        return {"g": 1.0 + nrm(k1, (1, embed_dim)), "b": nrm(k2, (1, embed_dim))}

    def make_mha(k):
        ks = jax.random.split(k, 8)
        return {
            "wq": nrm(ks[0], (embed_dim, embed_dim)),
            "wk": nrm(ks[1], (embed_dim, embed_dim)),
            "wv": nrm(ks[2], (embed_dim, embed_dim)),
            "bq": nrm(ks[3], (1, embed_dim)),
            "bk": nrm(ks[4], (1, embed_dim)),
            "bv": nrm(ks[5], (1, embed_dim)),
            "wo": nrm(ks[6], (embed_dim, embed_dim)),
            "bo": nrm(ks[7], (1, embed_dim)),
        }

    def make_mlp(k):
        ks = jax.random.split(k, 6)
        return {
            "ln_g": 1.0 + nrm(ks[0], (1, embed_dim)),
            "ln_b": nrm(ks[1], (1, embed_dim)),
            "w1": nrm(ks[2], (embed_dim, mlp_dim)),
            "b1": nrm(ks[3], (1, mlp_dim)),
            "w2": nrm(ks[4], (mlp_dim, embed_dim)),
            "b2": nrm(ks[5], (1, embed_dim)),
        }

    ks = jax.random.split(key, 6)
    return {
        "ln_v": make_ln(ks[0]), "ln_w": make_ln(ks[1]),
        "mha_v": make_mha(ks[2]), "mha_w": make_mha(ks[3]),
        "mlp_v": make_mlp(ks[4]), "mlp_w": make_mlp(ks[5]),
    }


# ----------------------------------------------------------------------------
# pure-JAX reference (mirrors torch f32 semantics) for the correctness check
# ----------------------------------------------------------------------------
def _branch_ref(xq, xkv, ln_q, ln_k, mha, mlp, num_heads):
    B, Sq, E = xq.shape
    Sk = xkv.shape[1]
    Dh = E // num_heads
    a = _layernorm(xq, ln_q["g"], ln_q["b"])
    b = _layernorm(xkv, ln_k["g"], ln_k["b"])
    q = (a @ mha["wq"] + mha["bq"]).reshape(B, Sq, num_heads, Dh).transpose(0, 2, 1, 3)
    k = (b @ mha["wk"] + mha["bk"]).reshape(B, Sk, num_heads, Dh).transpose(0, 2, 1, 3)
    v = (b @ mha["wv"] + mha["bv"]).reshape(B, Sk, num_heads, Dh).transpose(0, 2, 1, 3)
    s = (q / jnp.sqrt(jnp.float32(Dh))) @ jnp.swapaxes(k, -1, -2)
    p = jax.nn.softmax(s, axis=-1)
    ctx = (p @ v).transpose(0, 2, 1, 3).reshape(B, Sq, E)
    c = ctx @ mha["wo"] + mha["bo"] + xq
    y = _layernorm(c, mlp["ln_g"], mlp["ln_b"])
    h1 = _gelu(y @ mlp["w1"] + mlp["b1"])
    h2 = _gelu(h1 @ mlp["w2"] + mlp["b2"])
    return h2 + c


def co_attention_layer_ref(v, w, params, num_heads):
    vb = jnp.transpose(v, (1, 0, 2))
    wb = jnp.transpose(w, (1, 0, 2))
    v_out = _branch_ref(vb, wb, params["ln_v"], params["ln_w"],
                        params["mha_v"], params["mlp_v"], num_heads)
    w_out = _branch_ref(wb, vb, params["ln_w"], params["ln_v"],
                        params["mha_w"], params["mlp_w"], num_heads)
    return jnp.transpose(v_out, (1, 0, 2)), jnp.transpose(w_out, (1, 0, 2))


# ----------------------------------------------------------------------------
if __name__ == "__main__":
    B, Sv, Sw = 2, 8, 16
    EMBED, HEADS, MLP_DIM = 32, 4, 64

    key = jax.random.PRNGKey(0)
    k_v, k_w, k_p = jax.random.split(key, 3)
    v_in = jax.random.normal(k_v, (Sv, B, EMBED), jnp.float32)   # (S, B, E)
    w_in = jax.random.normal(k_w, (Sw, B, EMBED), jnp.float32)   # (S, B, E)
    params = init_params(k_p, EMBED, MLP_DIM)

    # f32 path (matches torch semantics; exact softmax division)
    fwd_f32 = jax.jit(functools.partial(co_attention_layer, num_heads=HEADS,
                                        matmul_dtype=jnp.float32))
    v_out, w_out = fwd_f32(v_in, w_in, params)
    jax.block_until_ready((v_out, w_out))

    v_ref, w_ref = co_attention_layer_ref(v_in, w_in, params, HEADS)
    assert v_out.shape == (Sv, B, EMBED) and w_out.shape == (Sw, B, EMBED)
    assert jnp.allclose(v_out, v_ref, atol=2e-3, rtol=2e-3)
    assert jnp.allclose(w_out, w_ref, atol=2e-3, rtol=2e-3)

    # default bf16-matmul path (recommended on v5e/v6e/v7x): half the weight DMA/VMEM,
    # native MXU rate; accumulation and all LayerNorm/softmax/GELU math stays f32.
    fwd_bf16 = jax.jit(functools.partial(co_attention_layer, num_heads=HEADS))
    v_bf, w_bf = fwd_bf16(v_in, w_in, params)
    jax.block_until_ready((v_bf, w_bf))
    assert jnp.allclose(v_bf, v_ref, atol=1e-1, rtol=1e-1)
    assert jnp.allclose(w_bf, w_ref, atol=1e-1, rtol=1e-1)

    print("KERNEL_OK")
</pallas_src>

<mosaic_0001>
module attributes {stable_mosaic.version = 11 : i64} {
  func.func @_co_branch_kernel(%arg0: i32, %arg1: i32, %arg2: memref<1x16x32xf32, #tpu.memory_space<vmem>>, %arg3: memref<1x8x32xf32, #tpu.memory_space<vmem>>, %arg4: memref<1x32xf32, #tpu.memory_space<vmem>>, %arg5: memref<1x32xf32, #tpu.memory_space<vmem>>, %arg6: memref<1x32xf32, #tpu.memory_space<vmem>>, %arg7: memref<1x32xf32, #tpu.memory_space<vmem>>, %arg8: memref<32x32xf32, #tpu.memory_space<vmem>>, %arg9: memref<1x32xf32, #tpu.memory_space<vmem>>, %arg10: memref<32x32xf32, #tpu.memory_space<vmem>>, %arg11: memref<1x32xf32, #tpu.memory_space<vmem>>, %arg12: memref<32x32xf32, #tpu.memory_space<vmem>>, %arg13: memref<1x32xf32, #tpu.memory_space<vmem>>, %arg14: memref<4x8x32xf32, #tpu.memory_space<vmem>>, %arg15: memref<1x32xf32, #tpu.memory_space<vmem>>, %arg16: memref<1x32xf32, #tpu.memory_space<vmem>>, %arg17: memref<1x32xf32, #tpu.memory_space<vmem>>, %arg18: memref<32x64xf32, #tpu.memory_space<vmem>>, %arg19: memref<1x64xf32, #tpu.memory_space<vmem>>, %arg20: memref<64x32xf32, #tpu.memory_space<vmem>>, %arg21: memref<1x32xf32, #tpu.memory_space<vmem>>, %arg22: memref<1x16x32xf32, #tpu.memory_space<vmem>>, %arg23: memref<4x8x8xf32, #tpu.memory_space<vmem>>, %arg24: memref<4x8x8xf32, #tpu.memory_space<vmem>>) attributes {dimension_semantics = [#tpu.dimension_semantics<parallel>, #tpu.dimension_semantics<arbitrary>], iteration_bounds = array<i64: 2, 1>, scalar_prefetch = 0 : i64, scratch_operands = 2 : i64, tpu.core_type = #tpu.core_type<tc>, window_params = [{transform_indices = @transform_0, window_bounds = array<i64: 1, 16, 32>}, {transform_indices = @transform_1, window_bounds = array<i64: 1, 8, 32>}, {pipeline_mode = #tpu.pipeline_mode<synchronous>, transform_indices = @transform_2, window_bounds = array<i64: 1, 32>}, {pipeline_mode = #tpu.pipeline_mode<synchronous>, transform_indices = @transform_3, window_bounds = array<i64: 1, 32>}, {pipeline_mode = #tpu.pipeline_mode<synchronous>, transform_indices = @transform_4, window_bounds = array<i64: 1, 32>}, {pipeline_mode = #tpu.pipeline_mode<synchronous>, transform_indices = @transform_5, window_bounds = array<i64: 1, 32>}, {pipeline_mode = #tpu.pipeline_mode<synchronous>, transform_indices = @transform_6, window_bounds = array<i64: 32, 32>}, {pipeline_mode = #tpu.pipeline_mode<synchronous>, transform_indices = @transform_7, window_bounds = array<i64: 1, 32>}, {pipeline_mode = #tpu.pipeline_mode<synchronous>, transform_indices = @transform_8, window_bounds = array<i64: 32, 32>}, {pipeline_mode = #tpu.pipeline_mode<synchronous>, transform_indices = @transform_9, window_bounds = array<i64: 1, 32>}, {pipeline_mode = #tpu.pipeline_mode<synchronous>, transform_indices = @transform_10, window_bounds = array<i64: 32, 32>}, {pipeline_mode = #tpu.pipeline_mode<synchronous>, transform_indices = @transform_11, window_bounds = array<i64: 1, 32>}, {pipeline_mode = #tpu.pipeline_mode<synchronous>, transform_indices = @transform_12, window_bounds = array<i64: 4, 8, 32>}, {pipeline_mode = #tpu.pipeline_mode<synchronous>, transform_indices = @transform_13, window_bounds = array<i64: 1, 32>}, {pipeline_mode = #tpu.pipeline_mode<synchronous>, transform_indices = @transform_14, window_bounds = array<i64: 1, 32>}, {pipeline_mode = #tpu.pipeline_mode<synchronous>, transform_indices = @transform_15, window_bounds = array<i64: 1, 32>}, {pipeline_mode = #tpu.pipeline_mode<synchronous>, transform_indices = @transform_16, window_bounds = array<i64: 32, 64>}, {pipeline_mode = #tpu.pipeline_mode<synchronous>, transform_indices = @transform_17, window_bounds = array<i64: 1, 64>}, {pipeline_mode = #tpu.pipeline_mode<synchronous>, transform_indices = @transform_18, window_bounds = array<i64: 64, 32>}, {pipeline_mode = #tpu.pipeline_mode<synchronous>, transform_indices = @transform_19, window_bounds = array<i64: 1, 32>}, {transform_indices = @transform_20, window_bounds = array<i64: 1, 16, 32>}]} {
    %c0_i32 = arith.constant 0 : i32
    %0 = arith.cmpi eq, %arg1, %c0_i32 : i32
    %1 = arith.extui %0 : i1 to i32
    %c0_i32_0 = arith.constant 0 : i32
    %2 = arith.cmpi ne, %1, %c0_i32_0 : i32
    scf.if %2 {
      %c0_62 = arith.constant 0 : index
      %c0_63 = arith.constant 0 : index
      %c0_64 = arith.constant 0 : index
      %119 = vector.load %arg3[%c0_62, %c0_63, %c0_64] : memref<1x8x32xf32, #tpu.memory_space<vmem>>, vector<1x8x32xf32>
      %120 = vector.shape_cast %119 : vector<1x8x32xf32> to vector<8x32xf32>
      %c0_65 = arith.constant 0 : index
      %c0_66 = arith.constant 0 : index
      %121 = vector.load %arg6[%c0_65, %c0_66] : memref<1x32xf32, #tpu.memory_space<vmem>>, vector<1x32xf32>
      %c0_67 = arith.constant 0 : index
      %c0_68 = arith.constant 0 : index
      %122 = vector.load %arg7[%c0_67, %c0_68] : memref<1x32xf32, #tpu.memory_space<vmem>>, vector<1x32xf32>
      %cst_69 = arith.constant dense<0.000000e+00> : vector<8xf32>
      %123 = vector.multi_reduction <add>, %120, %cst_69 [1] : vector<8x32xf32> to vector<8xf32>
      %124 = vector.shape_cast %123 : vector<8xf32> to vector<8x1xf32>
      %cst_70 = arith.constant 3.200000e+01 : f32
      %125 = vector.broadcast %cst_70 : f32 to vector<8x1xf32>
      %126 = arith.divf %124, %125 : vector<8x1xf32>
      %127 = vector.broadcast %126 : vector<8x1xf32> to vector<8x32xf32>
      %128 = arith.subf %120, %127 : vector<8x32xf32>
      %129 = arith.mulf %128, %128 : vector<8x32xf32>
      %cst_71 = arith.constant dense<0.000000e+00> : vector<8xf32>
      %130 = vector.multi_reduction <add>, %129, %cst_71 [1] : vector<8x32xf32> to vector<8xf32>
      %131 = vector.shape_cast %130 : vector<8xf32> to vector<8x1xf32>
      %cst_72 = arith.constant 3.200000e+01 : f32
      %132 = vector.broadcast %cst_72 : f32 to vector<8x1xf32>
      %133 = arith.divf %131, %132 : vector<8x1xf32>
      %134 = vector.broadcast %126 : vector<8x1xf32> to vector<8x32xf32>
      %135 = arith.subf %120, %134 : vector<8x32xf32>
      %cst_73 = arith.constant 9.99999974E-6 : f32
      %136 = vector.broadcast %cst_73 : f32 to vector<8x1xf32>
      %137 = arith.addf %133, %136 : vector<8x1xf32>
      %138 = math.rsqrt %137 : vector<8x1xf32>
      %139 = vector.broadcast %138 : vector<8x1xf32> to vector<8x32xf32>
      %140 = arith.mulf %135, %139 : vector<8x32xf32>
      %141 = vector.broadcast %121 : vector<1x32xf32> to vector<8x32xf32>
      %142 = arith.mulf %140, %141 : vector<8x32xf32>
      %143 = vector.broadcast %122 : vector<1x32xf32> to vector<8x32xf32>
      %144 = arith.addf %142, %143 : vector<8x32xf32>
      %c0_74 = arith.constant 0 : index
      %c0_75 = arith.constant 0 : index
      %145 = vector.load %arg10[%c0_74, %c0_75] : memref<32x32xf32, #tpu.memory_space<vmem>>, vector<32x32xf32>
      %cst_76 = arith.constant dense<0.000000e+00> : vector<8x32xf32>
      %146 = tpu.matmul %144, %145, %cst_76 {dimension_numbers = #tpu.dot_dimension_numbers<[1], [0], [0], [1], [0, 0, 1, 1], [], []>} : vector<8x32xf32>, vector<32x32xf32>, vector<8x32xf32> -> vector<8x32xf32>
      %c0_77 = arith.constant 0 : index
      %c0_78 = arith.constant 0 : index
      %147 = vector.load %arg11[%c0_77, %c0_78] : memref<1x32xf32, #tpu.memory_space<vmem>>, vector<1x32xf32>
      %148 = vector.broadcast %147 : vector<1x32xf32> to vector<8x32xf32>
      %149 = arith.addf %146, %148 : vector<8x32xf32>
      %c0_79 = arith.constant 0 : index
      %c0_80 = arith.constant 0 : index
      %150 = vector.load %arg12[%c0_79, %c0_80] : memref<32x32xf32, #tpu.memory_space<vmem>>, vector<32x32xf32>
      %cst_81 = arith.constant dense<0.000000e+00> : vector<8x32xf32>
      %151 = tpu.matmul %144, %150, %cst_81 {dimension_numbers = #tpu.dot_dimension_numbers<[1], [0], [0], [1], [0, 0, 1, 1], [], []>} : vector<8x32xf32>, vector<32x32xf32>, vector<8x32xf32> -> vector<8x32xf32>
      %c0_82 = arith.constant 0 : index
      %c0_83 = arith.constant 0 : index
      %152 = vector.load %arg13[%c0_82, %c0_83] : memref<1x32xf32, #tpu.memory_space<vmem>>, vector<1x32xf32>
      %153 = vector.broadcast %152 : vector<1x32xf32> to vector<8x32xf32>
      %154 = arith.addf %151, %153 : vector<8x32xf32>
      %155 = vector.extract_strided_slice %149 {offsets = [0, 0], sizes = [8, 8], strides = [1, 1]} : vector<8x32xf32> to vector<8x8xf32>
      %c0_84 = arith.constant 0 : index
      %c0_85 = arith.constant 0 : index
      %c0_86 = arith.constant 0 : index
      %156 = vector.load %arg23[%c0_84, %c0_85, %c0_86] : memref<4x8x8xf32, #tpu.memory_space<vmem>>, vector<1x8x8xf32>
      %157 = vector.shape_cast %156 : vector<1x8x8xf32> to vector<8x8xf32>
      %158 = vector.shape_cast %155 : vector<8x8xf32> to vector<1x8x8xf32>
      tpu.vector_store %arg23[%c0_84, %c0_85, %c0_86], %158 {strides = array<i32>} : memref<4x8x8xf32, #tpu.memory_space<vmem>>, vector<1x8x8xf32>,
      %159 = vector.extract_strided_slice %154 {offsets = [0, 0], sizes = [8, 8], strides = [1, 1]} : vector<8x32xf32> to vector<8x8xf32>
      %c0_87 = arith.constant 0 : index
      %c0_88 = arith.constant 0 : index
      %c0_89 = arith.constant 0 : index
      %160 = vector.load %arg24[%c0_87, %c0_88, %c0_89] : memref<4x8x8xf32, #tpu.memory_space<vmem>>, vector<1x8x8xf32>
      %161 = vector.shape_cast %160 : vector<1x8x8xf32> to vector<8x8xf32>
      %162 = vector.shape_cast %159 : vector<8x8xf32> to vector<1x8x8xf32>
      tpu.vector_store %arg24[%c0_87, %c0_88, %c0_89], %162 {strides = array<i32>} : memref<4x8x8xf32, #tpu.memory_space<vmem>>, vector<1x8x8xf32>,
      %163 = vector.extract_strided_slice %149 {offsets = [0, 8], sizes = [8, 8], strides = [1, 1]} : vector<8x32xf32> to vector<8x8xf32>
      %c1 = arith.constant 1 : index
      %c0_90 = arith.constant 0 : index
      %c0_91 = arith.constant 0 : index
      %164 = vector.load %arg23[%c1, %c0_90, %c0_91] : memref<4x8x8xf32, #tpu.memory_space<vmem>>, vector<1x8x8xf32>
      %165 = vector.shape_cast %164 : vector<1x8x8xf32> to vector<8x8xf32>
      %166 = vector.shape_cast %163 : vector<8x8xf32> to vector<1x8x8xf32>
      tpu.vector_store %arg23[%c1, %c0_90, %c0_91], %166 {strides = array<i32>} : memref<4x8x8xf32, #tpu.memory_space<vmem>>, vector<1x8x8xf32>,
      %167 = vector.extract_strided_slice %154 {offsets = [0, 8], sizes = [8, 8], strides = [1, 1]} : vector<8x32xf32> to vector<8x8xf32>
      %c1_92 = arith.constant 1 : index
      %c0_93 = arith.constant 0 : index
      %c0_94 = arith.constant 0 : index
      %168 = vector.load %arg24[%c1_92, %c0_93, %c0_94] : memref<4x8x8xf32, #tpu.memory_space<vmem>>, vector<1x8x8xf32>
      %169 = vector.shape_cast %168 : vector<1x8x8xf32> to vector<8x8xf32>
      %170 = vector.shape_cast %167 : vector<8x8xf32> to vector<1x8x8xf32>
      tpu.vector_store %arg24[%c1_92, %c0_93, %c0_94], %170 {strides = array<i32>} : memref<4x8x8xf32, #tpu.memory_space<vmem>>, vector<1x8x8xf32>,
      %171 = vector.extract_strided_slice %149 {offsets = [0, 16], sizes = [8, 8], strides = [1, 1]} : vector<8x32xf32> to vector<8x8xf32>
      %c2 = arith.constant 2 : index
      %c0_95 = arith.constant 0 : index
      %c0_96 = arith.constant 0 : index
      %172 = vector.load %arg23[%c2, %c0_95, %c0_96] : memref<4x8x8xf32, #tpu.memory_space<vmem>>, vector<1x8x8xf32>
      %173 = vector.shape_cast %172 : vector<1x8x8xf32> to vector<8x8xf32>
      %174 = vector.shape_cast %171 : vector<8x8xf32> to vector<1x8x8xf32>
      tpu.vector_store %arg23[%c2, %c0_95, %c0_96], %174 {strides = array<i32>} : memref<4x8x8xf32, #tpu.memory_space<vmem>>, vector<1x8x8xf32>,
      %175 = vector.extract_strided_slice %154 {offsets = [0, 16], sizes = [8, 8], strides = [1, 1]} : vector<8x32xf32> to vector<8x8xf32>
      %c2_97 = arith.constant 2 : index
      %c0_98 = arith.constant 0 : index
      %c0_99 = arith.constant 0 : index
      %176 = vector.load %arg24[%c2_97, %c0_98, %c0_99] : memref<4x8x8xf32, #tpu.memory_space<vmem>>, vector<1x8x8xf32>
      %177 = vector.shape_cast %176 : vector<1x8x8xf32> to vector<8x8xf32>
      %178 = vector.shape_cast %175 : vector<8x8xf32> to vector<1x8x8xf32>
      tpu.vector_store %arg24[%c2_97, %c0_98, %c0_99], %178 {strides = array<i32>} : memref<4x8x8xf32, #tpu.memory_space<vmem>>, vector<1x8x8xf32>,
      %179 = vector.extract_strided_slice %149 {offsets = [0, 24], sizes = [8, 8], strides = [1, 1]} : vector<8x32xf32> to vector<8x8xf32>
      %c3 = arith.constant 3 : index
      %c0_100 = arith.constant 0 : index
      %c0_101 = arith.constant 0 : index
      %180 = vector.load %arg23[%c3, %c0_100, %c0_101] : memref<4x8x8xf32, #tpu.memory_space<vmem>>, vector<1x8x8xf32>
      %181 = vector.shape_cast %180 : vector<1x8x8xf32> to vector<8x8xf32>
      %182 = vector.shape_cast %179 : vector<8x8xf32> to vector<1x8x8xf32>
      tpu.vector_store %arg23[%c3, %c0_100, %c0_101], %182 {strides = array<i32>} : memref<4x8x8xf32, #tpu.memory_space<vmem>>, vector<1x8x8xf32>,
      %183 = vector.extract_strided_slice %154 {offsets = [0, 24], sizes = [8, 8], strides = [1, 1]} : vector<8x32xf32> to vector<8x8xf32>
      %c3_102 = arith.constant 3 : index
      %c0_103 = arith.constant 0 : index
      %c0_104 = arith.constant 0 : index
      %184 = vector.load %arg24[%c3_102, %c0_103, %c0_104] : memref<4x8x8xf32, #tpu.memory_space<vmem>>, vector<1x8x8xf32>
      %185 = vector.shape_cast %184 : vector<1x8x8xf32> to vector<8x8xf32>
      %186 = vector.shape_cast %183 : vector<8x8xf32> to vector<1x8x8xf32>
      tpu.vector_store %arg24[%c3_102, %c0_103, %c0_104], %186 {strides = array<i32>} : memref<4x8x8xf32, #tpu.memory_space<vmem>>, vector<1x8x8xf32>,
    } else {
    }
    %c0 = arith.constant 0 : index
    %c0_1 = arith.constant 0 : index
    %c0_2 = arith.constant 0 : index
    %3 = vector.load %arg2[%c0, %c0_1, %c0_2] : memref<1x16x32xf32, #tpu.memory_space<vmem>>, vector<1x16x32xf32>
    %4 = vector.shape_cast %3 : vector<1x16x32xf32> to vector<16x32xf32>
    %c0_3 = arith.constant 0 : index
    %c0_4 = arith.constant 0 : index
    %5 = vector.load %arg4[%c0_3, %c0_4] : memref<1x32xf32, #tpu.memory_space<vmem>>, vector<1x32xf32>
    %c0_5 = arith.constant 0 : index
    %c0_6 = arith.constant 0 : index
    %6 = vector.load %arg5[%c0_5, %c0_6] : memref<1x32xf32, #tpu.memory_space<vmem>>, vector<1x32xf32>
    %cst = arith.constant dense<0.000000e+00> : vector<16xf32>
    %7 = vector.multi_reduction <add>, %4, %cst [1] : vector<16x32xf32> to vector<16xf32>
    %8 = vector.shape_cast %7 : vector<16xf32> to vector<16x1xf32>
    %cst_7 = arith.constant 3.200000e+01 : f32
    %9 = vector.broadcast %cst_7 : f32 to vector<16x1xf32>
    %10 = arith.divf %8, %9 : vector<16x1xf32>
    %11 = vector.broadcast %10 : vector<16x1xf32> to vector<16x32xf32>
    %12 = arith.subf %4, %11 : vector<16x32xf32>
    %13 = arith.mulf %12, %12 : vector<16x32xf32>
    %cst_8 = arith.constant dense<0.000000e+00> : vector<16xf32>
    %14 = vector.multi_reduction <add>, %13, %cst_8 [1] : vector<16x32xf32> to vector<16xf32>
    %15 = vector.shape_cast %14 : vector<16xf32> to vector<16x1xf32>
    %cst_9 = arith.constant 3.200000e+01 : f32
    %16 = vector.broadcast %cst_9 : f32 to vector<16x1xf32>
    %17 = arith.divf %15, %16 : vector<16x1xf32>
    %18 = vector.broadcast %10 : vector<16x1xf32> to vector<16x32xf32>
    %19 = arith.subf %4, %18 : vector<16x32xf32>
    %cst_10 = arith.constant 9.99999974E-6 : f32
    %20 = vector.broadcast %cst_10 : f32 to vector<16x1xf32>
    %21 = arith.addf %17, %20 : vector<16x1xf32>
    %22 = math.rsqrt %21 : vector<16x1xf32>
    %23 = vector.broadcast %22 : vector<16x1xf32> to vector<16x32xf32>
    %24 = arith.mulf %19, %23 : vector<16x32xf32>
    %25 = vector.broadcast %5 : vector<1x32xf32> to vector<16x32xf32>
    %26 = arith.mulf %24, %25 : vector<16x32xf32>
    %27 = vector.broadcast %6 : vector<1x32xf32> to vector<16x32xf32>
    %28 = arith.addf %26, %27 : vector<16x32xf32>
    %c0_11 = arith.constant 0 : index
    %c0_12 = arith.constant 0 : index
    %29 = vector.load %arg8[%c0_11, %c0_12] : memref<32x32xf32, #tpu.memory_space<vmem>>, vector<32x32xf32>
    %cst_13 = arith.constant dense<0.000000e+00> : vector<16x32xf32>
    %30 = tpu.matmul %28, %29, %cst_13 {dimension_numbers = #tpu.dot_dimension_numbers<[1], [0], [0], [1], [0, 0, 1, 1], [], []>} : vector<16x32xf32>, vector<32x32xf32>, vector<16x32xf32> -> vector<16x32xf32>
    %c0_14 = arith.constant 0 : index
    %c0_15 = arith.constant 0 : index
    %31 = vector.load %arg9[%c0_14, %c0_15] : memref<1x32xf32, #tpu.memory_space<vmem>>, vector<1x32xf32>
    %32 = vector.broadcast %31 : vector<1x32xf32> to vector<16x32xf32>
    %33 = arith.addf %30, %32 : vector<16x32xf32>
    %34 = vector.extract_strided_slice %33 {offsets = [0, 0], sizes = [16, 8], strides = [1, 1]} : vector<16x32xf32> to vector<16x8xf32>
    %35 = vector.extract_strided_slice %33 {offsets = [0, 8], sizes = [16, 8], strides = [1, 1]} : vector<16x32xf32> to vector<16x8xf32>
    %36 = vector.extract_strided_slice %33 {offsets = [0, 16], sizes = [16, 8], strides = [1, 1]} : vector<16x32xf32> to vector<16x8xf32>
    %37 = vector.extract_strided_slice %33 {offsets = [0, 24], sizes = [16, 8], strides = [1, 1]} : vector<16x32xf32> to vector<16x8xf32>
    %38 = vector.shape_cast %34 : vector<16x8xf32> to vector<1x16x8xf32>
    %39 = vector.shape_cast %35 : vector<16x8xf32> to vector<1x16x8xf32>
    %40 = vector.shape_cast %36 : vector<16x8xf32> to vector<1x16x8xf32>
    %41 = vector.shape_cast %37 : vector<16x8xf32> to vector<1x16x8xf32>
    %42 = tpu.concatenate %38, %39, %40, %41 in 0 : vector<1x16x8xf32>, vector<1x16x8xf32>, vector<1x16x8xf32>, vector<1x16x8xf32> -> vector<4x16x8xf32>
    %c0_16 = arith.constant 0 : index
    %c0_17 = arith.constant 0 : index
    %c0_18 = arith.constant 0 : index
    %43 = vector.load %arg23[%c0_16, %c0_17, %c0_18] : memref<4x8x8xf32, #tpu.memory_space<vmem>>, vector<4x8x8xf32>
    %c0_19 = arith.constant 0 : index
    %c0_20 = arith.constant 0 : index
    %c0_21 = arith.constant 0 : index
    %44 = vector.load %arg24[%c0_19, %c0_20, %c0_21] : memref<4x8x8xf32, #tpu.memory_space<vmem>>, vector<4x8x8xf32>
    "tpu.trace_start"() <{level = 10 : i32, message = "hqd,hkd->hqk"}> : () -> ()
    %cst_22 = arith.constant dense<0.000000e+00> : vector<4x16x8xf32>
    %45 = tpu.matmul %42, %43, %cst_22 {dimension_numbers = #tpu.dot_dimension_numbers<[2], [2], [1], [1], [0, 0, 0, 1, 1, 1], [0], [0]>} : vector<4x16x8xf32>, vector<4x8x8xf32>, vector<4x16x8xf32> -> vector<4x16x8xf32>
    "tpu.trace_stop"() : () -> ()
    %cst_23 = arith.constant dense<0xFF800000> : vector<4x16xf32>
    %46 = vector.multi_reduction <maximumf>, %45, %cst_23 [2] : vector<4x16x8xf32> to vector<4x16xf32>
    %47 = vector.shape_cast %46 : vector<4x16xf32> to vector<4x16x1xf32>
    %48 = vector.broadcast %47 : vector<4x16x1xf32> to vector<4x16x8xf32>
    %49 = arith.subf %45, %48 : vector<4x16x8xf32>
    %50 = math.exp %49 : vector<4x16x8xf32>
    %cst_24 = arith.constant dense<0.000000e+00> : vector<4x16xf32>
    %51 = vector.multi_reduction <add>, %50, %cst_24 [2] : vector<4x16x8xf32> to vector<4x16xf32>
    %52 = vector.shape_cast %51 : vector<4x16xf32> to vector<4x16x1xf32>
    "tpu.trace_start"() <{level = 10 : i32, message = "hqk,hkd->hqd"}> : () -> ()
    %cst_25 = arith.constant dense<0.000000e+00> : vector<4x16x8xf32>
    %53 = tpu.matmul %50, %44, %cst_25 {dimension_numbers = #tpu.dot_dimension_numbers<[2], [1], [1], [2], [0, 0, 0, 1, 1, 2], [0], [0]>} : vector<4x16x8xf32>, vector<4x8x8xf32>, vector<4x16x8xf32> -> vector<4x16x8xf32>
    "tpu.trace_stop"() : () -> ()
    %cst_26 = arith.constant 1.000000e+00 : f32
    %54 = vector.broadcast %cst_26 : f32 to vector<4x16x1xf32>
    %55 = arith.divf %54, %52 : vector<4x16x1xf32>
    %56 = vector.broadcast %55 : vector<4x16x1xf32> to vector<4x16x8xf32>
    %57 = arith.mulf %53, %56 : vector<4x16x8xf32>
    %c0_27 = arith.constant 0 : index
    %c0_28 = arith.constant 0 : index
    %c0_29 = arith.constant 0 : index
    %58 = vector.load %arg14[%c0_27, %c0_28, %c0_29] : memref<4x8x32xf32, #tpu.memory_space<vmem>>, vector<4x8x32xf32>
    "tpu.trace_start"() <{level = 10 : i32, message = "hqd,hde->hqe"}> : () -> ()
    %cst_30 = arith.constant dense<0.000000e+00> : vector<4x16x32xf32>
    %59 = tpu.matmul %57, %58, %cst_30 {dimension_numbers = #tpu.dot_dimension_numbers<[2], [1], [1], [2], [0, 0, 0, 1, 1, 2], [0], [0]>} : vector<4x16x8xf32>, vector<4x8x32xf32>, vector<4x16x32xf32> -> vector<4x16x32xf32>
    "tpu.trace_stop"() : () -> ()
    %cst_31 = arith.constant dense<0.000000e+00> : vector<16x32xf32>
    %60 = vector.multi_reduction <add>, %59, %cst_31 [0] : vector<4x16x32xf32> to vector<16x32xf32>
    %c0_32 = arith.constant 0 : index
    %c0_33 = arith.constant 0 : index
    %61 = vector.load %arg15[%c0_32, %c0_33] : memref<1x32xf32, #tpu.memory_space<vmem>>, vector<1x32xf32>
    %62 = vector.broadcast %61 : vector<1x32xf32> to vector<16x32xf32>
    %63 = arith.addf %60, %62 : vector<16x32xf32>
    %64 = arith.addf %63, %4 : vector<16x32xf32>
    %c0_34 = arith.constant 0 : index
    %c0_35 = arith.constant 0 : index
    %65 = vector.load %arg16[%c0_34, %c0_35] : memref<1x32xf32, #tpu.memory_space<vmem>>, vector<1x32xf32>
    %c0_36 = arith.constant 0 : index
    %c0_37 = arith.constant 0 : index
    %66 = vector.load %arg17[%c0_36, %c0_37] : memref<1x32xf32, #tpu.memory_space<vmem>>, vector<1x32xf32>
    %cst_38 = arith.constant dense<0.000000e+00> : vector<16xf32>
    %67 = vector.multi_reduction <add>, %64, %cst_38 [1] : vector<16x32xf32> to vector<16xf32>
    %68 = vector.shape_cast %67 : vector<16xf32> to vector<16x1xf32>
    %cst_39 = arith.constant 3.200000e+01 : f32
    %69 = vector.broadcast %cst_39 : f32 to vector<16x1xf32>
    %70 = arith.divf %68, %69 : vector<16x1xf32>
    %71 = vector.broadcast %70 : vector<16x1xf32> to vector<16x32xf32>
    %72 = arith.subf %64, %71 : vector<16x32xf32>
    %73 = arith.mulf %72, %72 : vector<16x32xf32>
    %cst_40 = arith.constant dense<0.000000e+00> : vector<16xf32>
    %74 = vector.multi_reduction <add>, %73, %cst_40 [1] : vector<16x32xf32> to vector<16xf32>
    %75 = vector.shape_cast %74 : vector<16xf32> to vector<16x1xf32>
    %cst_41 = arith.constant 3.200000e+01 : f32
    %76 = vector.broadcast %cst_41 : f32 to vector<16x1xf32>
    %77 = arith.divf %75, %76 : vector<16x1xf32>
    %78 = vector.broadcast %70 : vector<16x1xf32> to vector<16x32xf32>
    %79 = arith.subf %64, %78 : vector<16x32xf32>
    %cst_42 = arith.constant 9.99999974E-6 : f32
    %80 = vector.broadcast %cst_42 : f32 to vector<16x1xf32>
    %81 = arith.addf %77, %80 : vector<16x1xf32>
    %82 = math.rsqrt %81 : vector<16x1xf32>
    %83 = vector.broadcast %82 : vector<16x1xf32> to vector<16x32xf32>
    %84 = arith.mulf %79, %83 : vector<16x32xf32>
    %85 = vector.broadcast %65 : vector<1x32xf32> to vector<16x32xf32>
    %86 = arith.mulf %84, %85 : vector<16x32xf32>
    %87 = vector.broadcast %66 : vector<1x32xf32> to vector<16x32xf32>
    %88 = arith.addf %86, %87 : vector<16x32xf32>
    %c0_43 = arith.constant 0 : index
    %c0_44 = arith.constant 0 : index
    %89 = vector.load %arg18[%c0_43, %c0_44] : memref<32x64xf32, #tpu.memory_space<vmem>>, vector<32x64xf32>
    %cst_45 = arith.constant dense<0.000000e+00> : vector<16x64xf32>
    %90 = tpu.matmul %88, %89, %cst_45 {dimension_numbers = #tpu.dot_dimension_numbers<[1], [0], [0], [1], [0, 0, 1, 1], [], []>} : vector<16x32xf32>, vector<32x64xf32>, vector<16x64xf32> -> vector<16x64xf32>
    %c0_46 = arith.constant 0 : index
    %c0_47 = arith.constant 0 : index
    %91 = vector.load %arg19[%c0_46, %c0_47] : memref<1x64xf32, #tpu.memory_space<vmem>>, vector<1x64xf32>
    %92 = vector.broadcast %91 : vector<1x64xf32> to vector<16x64xf32>
    %93 = arith.addf %90, %92 : vector<16x64xf32>
    %cst_48 = arith.constant 5.000000e-01 : f32
    %94 = vector.broadcast %cst_48 : f32 to vector<16x64xf32>
    %95 = arith.mulf %94, %93 : vector<16x64xf32>
    %cst_49 = arith.constant 0.707106769 : f32
    %96 = vector.broadcast %cst_49 : f32 to vector<16x64xf32>
    %97 = arith.mulf %93, %96 : vector<16x64xf32>
    %98 = math.erf %97 : vector<16x64xf32>
    %cst_50 = arith.constant 1.000000e+00 : f32
    %99 = vector.broadcast %cst_50 : f32 to vector<16x64xf32>
    %100 = arith.addf %99, %98 : vector<16x64xf32>
    %101 = arith.mulf %95, %100 : vector<16x64xf32>
    %c0_51 = arith.constant 0 : index
    %c0_52 = arith.constant 0 : index
    %102 = vector.load %arg20[%c0_51, %c0_52] : memref<64x32xf32, #tpu.memory_space<vmem>>, vector<64x32xf32>
    %cst_53 = arith.constant dense<0.000000e+00> : vector<16x32xf32>
    %103 = tpu.matmul %101, %102, %cst_53 {dimension_numbers = #tpu.dot_dimension_numbers<[1], [0], [0], [1], [0, 0, 1, 1], [], []>} : vector<16x64xf32>, vector<64x32xf32>, vector<16x32xf32> -> vector<16x32xf32>
    %c0_54 = arith.constant 0 : index
    %c0_55 = arith.constant 0 : index
    %104 = vector.load %arg21[%c0_54, %c0_55] : memref<1x32xf32, #tpu.memory_space<vmem>>, vector<1x32xf32>
    %105 = vector.broadcast %104 : vector<1x32xf32> to vector<16x32xf32>
    %106 = arith.addf %103, %105 : vector<16x32xf32>
    %cst_56 = arith.constant 5.000000e-01 : f32
    %107 = vector.broadcast %cst_56 : f32 to vector<16x32xf32>
    %108 = arith.mulf %107, %106 : vector<16x32xf32>
    %cst_57 = arith.constant 0.707106769 : f32
    %109 = vector.broadcast %cst_57 : f32 to vector<16x32xf32>
    %110 = arith.mulf %106, %109 : vector<16x32xf32>
    %111 = math.erf %110 : vector<16x32xf32>
    %cst_58 = arith.constant 1.000000e+00 : f32
    %112 = vector.broadcast %cst_58 : f32 to vector<16x32xf32>
    %113 = arith.addf %112, %111 : vector<16x32xf32>
    %114 = arith.mulf %108, %113 : vector<16x32xf32>
    %115 = arith.addf %114, %64 : vector<16x32xf32>
    %c0_59 = arith.constant 0 : index
    %c0_60 = arith.constant 0 : index
    %c0_61 = arith.constant 0 : index
    %116 = vector.load %arg22[%c0_59, %c0_60, %c0_61] : memref<1x16x32xf32, #tpu.memory_space<vmem>>, vector<1x16x32xf32>
    %117 = vector.shape_cast %116 : vector<1x16x32xf32> to vector<16x32xf32>
    %118 = vector.shape_cast %115 : vector<16x32xf32> to vector<1x16x32xf32>
    tpu.vector_store %arg22[%c0_59, %c0_60, %c0_61], %118 {strides = array<i32>} : memref<1x16x32xf32, #tpu.memory_space<vmem>>, vector<1x16x32xf32>,
    return
  }
  func.func @transform_0(%arg0: i32, %arg1: i32) -> (i32, i32, i32) {
    %c0_i32 = arith.constant 0 : i32
    %c0_i32_0 = arith.constant 0 : i32
    return %arg0, %arg1, %c0_i32 : i32, i32, i32
  }
  func.func @transform_1(%arg0: i32, %arg1: i32) -> (i32, i32, i32) {
    %c0_i32 = arith.constant 0 : i32
    %c0_i32_0 = arith.constant 0 : i32
    %c0_i32_1 = arith.constant 0 : i32
    return %arg0, %c0_i32, %c0_i32_0 : i32, i32, i32
  }
  func.func @transform_2(%arg0: i32, %arg1: i32) -> (i32, i32) {
    %c0_i32 = arith.constant 0 : i32
    %c0_i32_0 = arith.constant 0 : i32
    %c0_i32_1 = arith.constant 0 : i32
    return %c0_i32, %c0_i32_0 : i32, i32
  }
  func.func @transform_3(%arg0: i32, %arg1: i32) -> (i32, i32) {
    %c0_i32 = arith.constant 0 : i32
    %c0_i32_0 = arith.constant 0 : i32
    %c0_i32_1 = arith.constant 0 : i32
    return %c0_i32, %c0_i32_0 : i32, i32
  }
  func.func @transform_4(%arg0: i32, %arg1: i32) -> (i32, i32) {
    %c0_i32 = arith.constant 0 : i32
    %c0_i32_0 = arith.constant 0 : i32
    %c0_i32_1 = arith.constant 0 : i32
    return %c0_i32, %c0_i32_0 : i32, i32
  }
  func.func @transform_5(%arg0: i32, %arg1: i32) -> (i32, i32) {
    %c0_i32 = arith.constant 0 : i32
    %c0_i32_0 = arith.constant 0 : i32
    %c0_i32_1 = arith.constant 0 : i32
    return %c0_i32, %c0_i32_0 : i32, i32
  }
  func.func @transform_6(%arg0: i32, %arg1: i32) -> (i32, i32) {
    %c0_i32 = arith.constant 0 : i32
    %c0_i32_0 = arith.constant 0 : i32
    %c0_i32_1 = arith.constant 0 : i32
    return %c0_i32, %c0_i32_0 : i32, i32
  }
  func.func @transform_7(%arg0: i32, %arg1: i32) -> (i32, i32) {
    %c0_i32 = arith.constant 0 : i32
    %c0_i32_0 = arith.constant 0 : i32
    %c0_i32_1 = arith.constant 0 : i32
    return %c0_i32, %c0_i32_0 : i32, i32
  }
  func.func @transform_8(%arg0: i32, %arg1: i32) -> (i32, i32) {
    %c0_i32 = arith.constant 0 : i32
    %c0_i32_0 = arith.constant 0 : i32
    %c0_i32_1 = arith.constant 0 : i32
    return %c0_i32, %c0_i32_0 : i32, i32
  }
  func.func @transform_9(%arg0: i32, %arg1: i32) -> (i32, i32) {
    %c0_i32 = arith.constant 0 : i32
    %c0_i32_0 = arith.constant 0 : i32
    %c0_i32_1 = arith.constant 0 : i32
    return %c0_i32, %c0_i32_0 : i32, i32
  }
  func.func @transform_10(%arg0: i32, %arg1: i32) -> (i32, i32) {
    %c0_i32 = arith.constant 0 : i32
    %c0_i32_0 = arith.constant 0 : i32
    %c0_i32_1 = arith.constant 0 : i32
    return %c0_i32, %c0_i32_0 : i32, i32
  }
  func.func @transform_11(%arg0: i32, %arg1: i32) -> (i32, i32) {
    %c0_i32 = arith.constant 0 : i32
    %c0_i32_0 = arith.constant 0 : i32
    %c0_i32_1 = arith.constant 0 : i32
    return %c0_i32, %c0_i32_0 : i32, i32
  }
  func.func @transform_12(%arg0: i32, %arg1: i32) -> (i32, i32, i32) {
    %c0_i32 = arith.constant 0 : i32
    %c0_i32_0 = arith.constant 0 : i32
    %c0_i32_1 = arith.constant 0 : i32
    %c0_i32_2 = arith.constant 0 : i32
    return %c0_i32, %c0_i32_0, %c0_i32_1 : i32, i32, i32
  }
  func.func @transform_13(%arg0: i32, %arg1: i32) -> (i32, i32) {
    %c0_i32 = arith.constant 0 : i32
    %c0_i32_0 = arith.constant 0 : i32
    %c0_i32_1 = arith.constant 0 : i32
    return %c0_i32, %c0_i32_0 : i32, i32
  }
  func.func @transform_14(%arg0: i32, %arg1: i32) -> (i32, i32) {
    %c0_i32 = arith.constant 0 : i32
    %c0_i32_0 = arith.constant 0 : i32
    %c0_i32_1 = arith.constant 0 : i32
    return %c0_i32, %c0_i32_0 : i32, i32
  }
  func.func @transform_15(%arg0: i32, %arg1: i32) -> (i32, i32) {
    %c0_i32 = arith.constant 0 : i32
    %c0_i32_0 = arith.constant 0 : i32
    %c0_i32_1 = arith.constant 0 : i32
    return %c0_i32, %c0_i32_0 : i32, i32
  }
  func.func @transform_16(%arg0: i32, %arg1: i32) -> (i32, i32) {
    %c0_i32 = arith.constant 0 : i32
    %c0_i32_0 = arith.constant 0 : i32
    %c0_i32_1 = arith.constant 0 : i32
    return %c0_i32, %c0_i32_0 : i32, i32
  }
  func.func @transform_17(%arg0: i32, %arg1: i32) -> (i32, i32) {
    %c0_i32 = arith.constant 0 : i32
    %c0_i32_0 = arith.constant 0 : i32
    %c0_i32_1 = arith.constant 0 : i32
    return %c0_i32, %c0_i32_0 : i32, i32
  }
  func.func @transform_18(%arg0: i32, %arg1: i32) -> (i32, i32) {
    %c0_i32 = arith.constant 0 : i32
    %c0_i32_0 = arith.constant 0 : i32
    %c0_i32_1 = arith.constant 0 : i32
    return %c0_i32, %c0_i32_0 : i32, i32
  }
  func.func @transform_19(%arg0: i32, %arg1: i32) -> (i32, i32) {
    %c0_i32 = arith.constant 0 : i32
    %c0_i32_0 = arith.constant 0 : i32
    %c0_i32_1 = arith.constant 0 : i32
    return %c0_i32, %c0_i32_0 : i32, i32
  }
  func.func @transform_20(%arg0: i32, %arg1: i32) -> (i32, i32, i32) {
    %c0_i32 = arith.constant 0 : i32
    %c0_i32_0 = arith.constant 0 : i32
    return %arg0, %arg1, %c0_i32 : i32, i32, i32
  }
}

module attributes {stable_mosaic.version = 11 : i64} {
  func.func @_co_branch_kernel(%arg0: i32, %arg1: i32, %arg2: memref<1x8x32xf32, #tpu.memory_space<vmem>>, %arg3: memref<1x16x32xf32, #tpu.memory_space<vmem>>, %arg4: memref<1x32xf32, #tpu.memory_space<vmem>>, %arg5: memref<1x32xf32, #tpu.memory_space<vmem>>, %arg6: memref<1x32xf32, #tpu.memory_space<vmem>>, %arg7: memref<1x32xf32, #tpu.memory_space<vmem>>, %arg8: memref<32x32xf32, #tpu.memory_space<vmem>>, %arg9: memref<1x32xf32, #tpu.memory_space<vmem>>, %arg10: memref<32x32xf32, #tpu.memory_space<vmem>>, %arg11: memref<1x32xf32, #tpu.memory_space<vmem>>, %arg12: memref<32x32xf32, #tpu.memory_space<vmem>>, %arg13: memref<1x32xf32, #tpu.memory_space<vmem>>, %arg14: memref<4x8x32xf32, #tpu.memory_space<vmem>>, %arg15: memref<1x32xf32, #tpu.memory_space<vmem>>, %arg16: memref<1x32xf32, #tpu.memory_space<vmem>>, %arg17: memref<1x32xf32, #tpu.memory_space<vmem>>, %arg18: memref<32x64xf32, #tpu.memory_space<vmem>>, %arg19: memref<1x64xf32, #tpu.memory_space<vmem>>, %arg20: memref<64x32xf32, #tpu.memory_space<vmem>>, %arg21: memref<1x32xf32, #tpu.memory_space<vmem>>, %arg22: memref<1x8x32xf32, #tpu.memory_space<vmem>>, %arg23: memref<4x16x8xf32, #tpu.memory_space<vmem>>, %arg24: memref<4x16x8xf32, #tpu.memory_space<vmem>>) attributes {dimension_semantics = [#tpu.dimension_semantics<parallel>, #tpu.dimension_semantics<arbitrary>], iteration_bounds = array<i64: 2, 1>, scalar_prefetch = 0 : i64, scratch_operands = 2 : i64, tpu.core_type = #tpu.core_type<tc>, window_params = [{transform_indices = @transform_0, window_bounds = array<i64: 1, 8, 32>}, {transform_indices = @transform_1, window_bounds = array<i64: 1, 16, 32>}, {pipeline_mode = #tpu.pipeline_mode<synchronous>, transform_indices = @transform_2, window_bounds = array<i64: 1, 32>}, {pipeline_mode = #tpu.pipeline_mode<synchronous>, transform_indices = @transform_3, window_bounds = array<i64: 1, 32>}, {pipeline_mode = #tpu.pipeline_mode<synchronous>, transform_indices = @transform_4, window_bounds = array<i64: 1, 32>}, {pipeline_mode = #tpu.pipeline_mode<synchronous>, transform_indices = @transform_5, window_bounds = array<i64: 1, 32>}, {pipeline_mode = #tpu.pipeline_mode<synchronous>, transform_indices = @transform_6, window_bounds = array<i64: 32, 32>}, {pipeline_mode = #tpu.pipeline_mode<synchronous>, transform_indices = @transform_7, window_bounds = array<i64: 1, 32>}, {pipeline_mode = #tpu.pipeline_mode<synchronous>, transform_indices = @transform_8, window_bounds = array<i64: 32, 32>}, {pipeline_mode = #tpu.pipeline_mode<synchronous>, transform_indices = @transform_9, window_bounds = array<i64: 1, 32>}, {pipeline_mode = #tpu.pipeline_mode<synchronous>, transform_indices = @transform_10, window_bounds = array<i64: 32, 32>}, {pipeline_mode = #tpu.pipeline_mode<synchronous>, transform_indices = @transform_11, window_bounds = array<i64: 1, 32>}, {pipeline_mode = #tpu.pipeline_mode<synchronous>, transform_indices = @transform_12, window_bounds = array<i64: 4, 8, 32>}, {pipeline_mode = #tpu.pipeline_mode<synchronous>, transform_indices = @transform_13, window_bounds = array<i64: 1, 32>}, {pipeline_mode = #tpu.pipeline_mode<synchronous>, transform_indices = @transform_14, window_bounds = array<i64: 1, 32>}, {pipeline_mode = #tpu.pipeline_mode<synchronous>, transform_indices = @transform_15, window_bounds = array<i64: 1, 32>}, {pipeline_mode = #tpu.pipeline_mode<synchronous>, transform_indices = @transform_16, window_bounds = array<i64: 32, 64>}, {pipeline_mode = #tpu.pipeline_mode<synchronous>, transform_indices = @transform_17, window_bounds = array<i64: 1, 64>}, {pipeline_mode = #tpu.pipeline_mode<synchronous>, transform_indices = @transform_18, window_bounds = array<i64: 64, 32>}, {pipeline_mode = #tpu.pipeline_mode<synchronous>, transform_indices = @transform_19, window_bounds = array<i64: 1, 32>}, {transform_indices = @transform_20, window_bounds = array<i64: 1, 8, 32>}]} {
    %c0_i32 = arith.constant 0 : i32
    %0 = arith.cmpi eq, %arg1, %c0_i32 : i32
    %1 = arith.extui %0 : i1 to i32
    %c0_i32_0 = arith.constant 0 : i32
    %2 = arith.cmpi ne, %1, %c0_i32_0 : i32
    scf.if %2 {
      %c0_62 = arith.constant 0 : index
      %c0_63 = arith.constant 0 : index
      %c0_64 = arith.constant 0 : index
      %119 = vector.load %arg3[%c0_62, %c0_63, %c0_64] : memref<1x16x32xf32, #tpu.memory_space<vmem>>, vector<1x16x32xf32>
      %120 = vector.shape_cast %119 : vector<1x16x32xf32> to vector<16x32xf32>
      %c0_65 = arith.constant 0 : index
      %c0_66 = arith.constant 0 : index
      %121 = vector.load %arg6[%c0_65, %c0_66] : memref<1x32xf32, #tpu.memory_space<vmem>>, vector<1x32xf32>
      %c0_67 = arith.constant 0 : index
      %c0_68 = arith.constant 0 : index
      %122 = vector.load %arg7[%c0_67, %c0_68] : memref<1x32xf32, #tpu.memory_space<vmem>>, vector<1x32xf32>
      %cst_69 = arith.constant dense<0.000000e+00> : vector<16xf32>
      %123 = vector.multi_reduction <add>, %120, %cst_69 [1] : vector<16x32xf32> to vector<16xf32>
      %124 = vector.shape_cast %123 : vector<16xf32> to vector<16x1xf32>
      %cst_70 = arith.constant 3.200000e+01 : f32
      %125 = vector.broadcast %cst_70 : f32 to vector<16x1xf32>
      %126 = arith.divf %124, %125 : vector<16x1xf32>
      %127 = vector.broadcast %126 : vector<16x1xf32> to vector<16x32xf32>
      %128 = arith.subf %120, %127 : vector<16x32xf32>
      %129 = arith.mulf %128, %128 : vector<16x32xf32>
      %cst_71 = arith.constant dense<0.000000e+00> : vector<16xf32>
      %130 = vector.multi_reduction <add>, %129, %cst_71 [1] : vector<16x32xf32> to vector<16xf32>
      %131 = vector.shape_cast %130 : vector<16xf32> to vector<16x1xf32>
      %cst_72 = arith.constant 3.200000e+01 : f32
      %132 = vector.broadcast %cst_72 : f32 to vector<16x1xf32>
      %133 = arith.divf %131, %132 : vector<16x1xf32>
      %134 = vector.broadcast %126 : vector<16x1xf32> to vector<16x32xf32>
      %135 = arith.subf %120, %134 : vector<16x32xf32>
      %cst_73 = arith.constant 9.99999974E-6 : f32
      %136 = vector.broadcast %cst_73 : f32 to vector<16x1xf32>
      %137 = arith.addf %133, %136 : vector<16x1xf32>
      %138 = math.rsqrt %137 : vector<16x1xf32>
      %139 = vector.broadcast %138 : vector<16x1xf32> to vector<16x32xf32>
      %140 = arith.mulf %135, %139 : vector<16x32xf32>
      %141 = vector.broadcast %121 : vector<1x32xf32> to vector<16x32xf32>
      %142 = arith.mulf %140, %141 : vector<16x32xf32>
      %143 = vector.broadcast %122 : vector<1x32xf32> to vector<16x32xf32>
      %144 = arith.addf %142, %143 : vector<16x32xf32>
      %c0_74 = arith.constant 0 : index
      %c0_75 = arith.constant 0 : index
      %145 = vector.load %arg10[%c0_74, %c0_75] : memref<32x32xf32, #tpu.memory_space<vmem>>, vector<32x32xf32>
      %cst_76 = arith.constant dense<0.000000e+00> : vector<16x32xf32>
      %146 = tpu.matmul %144, %145, %cst_76 {dimension_numbers = #tpu.dot_dimension_numbers<[1], [0], [0], [1], [0, 0, 1, 1], [], []>} : vector<16x32xf32>, vector<32x32xf32>, vector<16x32xf32> -> vector<16x32xf32>
      %c0_77 = arith.constant 0 : index
      %c0_78 = arith.constant 0 : index
      %147 = vector.load %arg11[%c0_77, %c0_78] : memref<1x32xf32, #tpu.memory_space<vmem>>, vector<1x32xf32>
      %148 = vector.broadcast %147 : vector<1x32xf32> to vector<16x32xf32>
      %149 = arith.addf %146, %148 : vector<16x32xf32>
      %c0_79 = arith.constant 0 : index
      %c0_80 = arith.constant 0 : index
      %150 = vector.load %arg12[%c0_79, %c0_80] : memref<32x32xf32, #tpu.memory_space<vmem>>, vector<32x32xf32>
      %cst_81 = arith.constant dense<0.000000e+00> : vector<16x32xf32>
      %151 = tpu.matmul %144, %150, %cst_81 {dimension_numbers = #tpu.dot_dimension_numbers<[1], [0], [0], [1], [0, 0, 1, 1], [], []>} : vector<16x32xf32>, vector<32x32xf32>, vector<16x32xf32> -> vector<16x32xf32>
      %c0_82 = arith.constant 0 : index
      %c0_83 = arith.constant 0 : index
      %152 = vector.load %arg13[%c0_82, %c0_83] : memref<1x32xf32, #tpu.memory_space<vmem>>, vector<1x32xf32>
      %153 = vector.broadcast %152 : vector<1x32xf32> to vector<16x32xf32>
      %154 = arith.addf %151, %153 : vector<16x32xf32>
      %155 = vector.extract_strided_slice %149 {offsets = [0, 0], sizes = [16, 8], strides = [1, 1]} : vector<16x32xf32> to vector<16x8xf32>
      %c0_84 = arith.constant 0 : index
      %c0_85 = arith.constant 0 : index
      %c0_86 = arith.constant 0 : index
      %156 = vector.load %arg23[%c0_84, %c0_85, %c0_86] : memref<4x16x8xf32, #tpu.memory_space<vmem>>, vector<1x16x8xf32>
      %157 = vector.shape_cast %156 : vector<1x16x8xf32> to vector<16x8xf32>
      %158 = vector.shape_cast %155 : vector<16x8xf32> to vector<1x16x8xf32>
      tpu.vector_store %arg23[%c0_84, %c0_85, %c0_86], %158 {strides = array<i32>} : memref<4x16x8xf32, #tpu.memory_space<vmem>>, vector<1x16x8xf32>,
      %159 = vector.extract_strided_slice %154 {offsets = [0, 0], sizes = [16, 8], strides = [1, 1]} : vector<16x32xf32> to vector<16x8xf32>
      %c0_87 = arith.constant 0 : index
      %c0_88 = arith.constant 0 : index
      %c0_89 = arith.constant 0 : index
      %160 = vector.load %arg24[%c0_87, %c0_88, %c0_89] : memref<4x16x8xf32, #tpu.memory_space<vmem>>, vector<1x16x8xf32>
      %161 = vector.shape_cast %160 : vector<1x16x8xf32> to vector<16x8xf32>
      %162 = vector.shape_cast %159 : vector<16x8xf32> to vector<1x16x8xf32>
      tpu.vector_store %arg24[%c0_87, %c0_88, %c0_89], %162 {strides = array<i32>} : memref<4x16x8xf32, #tpu.memory_space<vmem>>, vector<1x16x8xf32>,
      %163 = vector.extract_strided_slice %149 {offsets = [0, 8], sizes = [16, 8], strides = [1, 1]} : vector<16x32xf32> to vector<16x8xf32>
      %c1 = arith.constant 1 : index
      %c0_90 = arith.constant 0 : index
      %c0_91 = arith.constant 0 : index
      %164 = vector.load %arg23[%c1, %c0_90, %c0_91] : memref<4x16x8xf32, #tpu.memory_space<vmem>>, vector<1x16x8xf32>
      %165 = vector.shape_cast %164 : vector<1x16x8xf32> to vector<16x8xf32>
      %166 = vector.shape_cast %163 : vector<16x8xf32> to vector<1x16x8xf32>
      tpu.vector_store %arg23[%c1, %c0_90, %c0_91], %166 {strides = array<i32>} : memref<4x16x8xf32, #tpu.memory_space<vmem>>, vector<1x16x8xf32>,
      %167 = vector.extract_strided_slice %154 {offsets = [0, 8], sizes = [16, 8], strides = [1, 1]} : vector<16x32xf32> to vector<16x8xf32>
      %c1_92 = arith.constant 1 : index
      %c0_93 = arith.constant 0 : index
      %c0_94 = arith.constant 0 : index
      %168 = vector.load %arg24[%c1_92, %c0_93, %c0_94] : memref<4x16x8xf32, #tpu.memory_space<vmem>>, vector<1x16x8xf32>
      %169 = vector.shape_cast %168 : vector<1x16x8xf32> to vector<16x8xf32>
      %170 = vector.shape_cast %167 : vector<16x8xf32> to vector<1x16x8xf32>
      tpu.vector_store %arg24[%c1_92, %c0_93, %c0_94], %170 {strides = array<i32>} : memref<4x16x8xf32, #tpu.memory_space<vmem>>, vector<1x16x8xf32>,
      %171 = vector.extract_strided_slice %149 {offsets = [0, 16], sizes = [16, 8], strides = [1, 1]} : vector<16x32xf32> to vector<16x8xf32>
      %c2 = arith.constant 2 : index
      %c0_95 = arith.constant 0 : index
      %c0_96 = arith.constant 0 : index
      %172 = vector.load %arg23[%c2, %c0_95, %c0_96] : memref<4x16x8xf32, #tpu.memory_space<vmem>>, vector<1x16x8xf32>
      %173 = vector.shape_cast %172 : vector<1x16x8xf32> to vector<16x8xf32>
      %174 = vector.shape_cast %171 : vector<16x8xf32> to vector<1x16x8xf32>
      tpu.vector_store %arg23[%c2, %c0_95, %c0_96], %174 {strides = array<i32>} : memref<4x16x8xf32, #tpu.memory_space<vmem>>, vector<1x16x8xf32>,
      %175 = vector.extract_strided_slice %154 {offsets = [0, 16], sizes = [16, 8], strides = [1, 1]} : vector<16x32xf32> to vector<16x8xf32>
      %c2_97 = arith.constant 2 : index
      %c0_98 = arith.constant 0 : index
      %c0_99 = arith.constant 0 : index
      %176 = vector.load %arg24[%c2_97, %c0_98, %c0_99] : memref<4x16x8xf32, #tpu.memory_space<vmem>>, vector<1x16x8xf32>
      %177 = vector.shape_cast %176 : vector<1x16x8xf32> to vector<16x8xf32>
      %178 = vector.shape_cast %175 : vector<16x8xf32> to vector<1x16x8xf32>
      tpu.vector_store %arg24[%c2_97, %c0_98, %c0_99], %178 {strides = array<i32>} : memref<4x16x8xf32, #tpu.memory_space<vmem>>, vector<1x16x8xf32>,
      %179 = vector.extract_strided_slice %149 {offsets = [0, 24], sizes = [16, 8], strides = [1, 1]} : vector<16x32xf32> to vector<16x8xf32>
      %c3 = arith.constant 3 : index
      %c0_100 = arith.constant 0 : index
      %c0_101 = arith.constant 0 : index
      %180 = vector.load %arg23[%c3, %c0_100, %c0_101] : memref<4x16x8xf32, #tpu.memory_space<vmem>>, vector<1x16x8xf32>
      %181 = vector.shape_cast %180 : vector<1x16x8xf32> to vector<16x8xf32>
      %182 = vector.shape_cast %179 : vector<16x8xf32> to vector<1x16x8xf32>
      tpu.vector_store %arg23[%c3, %c0_100, %c0_101], %182 {strides = array<i32>} : memref<4x16x8xf32, #tpu.memory_space<vmem>>, vector<1x16x8xf32>,
      %183 = vector.extract_strided_slice %154 {offsets = [0, 24], sizes = [16, 8], strides = [1, 1]} : vector<16x32xf32> to vector<16x8xf32>
      %c3_102 = arith.constant 3 : index
      %c0_103 = arith.constant 0 : index
      %c0_104 = arith.constant 0 : index
      %184 = vector.load %arg24[%c3_102, %c0_103, %c0_104] : memref<4x16x8xf32, #tpu.memory_space<vmem>>, vector<1x16x8xf32>
      %185 = vector.shape_cast %184 : vector<1x16x8xf32> to vector<16x8xf32>
      %186 = vector.shape_cast %183 : vector<16x8xf32> to vector<1x16x8xf32>
      tpu.vector_store %arg24[%c3_102, %c0_103, %c0_104], %186 {strides = array<i32>} : memref<4x16x8xf32, #tpu.memory_space<vmem>>, vector<1x16x8xf32>,
    } else {
    }
    %c0 = arith.constant 0 : index
    %c0_1 = arith.constant 0 : index
    %c0_2 = arith.constant 0 : index
    %3 = vector.load %arg2[%c0, %c0_1, %c0_2] : memref<1x8x32xf32, #tpu.memory_space<vmem>>, vector<1x8x32xf32>
    %4 = vector.shape_cast %3 : vector<1x8x32xf32> to vector<8x32xf32>
    %c0_3 = arith.constant 0 : index
    %c0_4 = arith.constant 0 : index
    %5 = vector.load %arg4[%c0_3, %c0_4] : memref<1x32xf32, #tpu.memory_space<vmem>>, vector<1x32xf32>
    %c0_5 = arith.constant 0 : index
    %c0_6 = arith.constant 0 : index
    %6 = vector.load %arg5[%c0_5, %c0_6] : memref<1x32xf32, #tpu.memory_space<vmem>>, vector<1x32xf32>
    %cst = arith.constant dense<0.000000e+00> : vector<8xf32>
    %7 = vector.multi_reduction <add>, %4, %cst [1] : vector<8x32xf32> to vector<8xf32>
    %8 = vector.shape_cast %7 : vector<8xf32> to vector<8x1xf32>
    %cst_7 = arith.constant 3.200000e+01 : f32
    %9 = vector.broadcast %cst_7 : f32 to vector<8x1xf32>
    %10 = arith.divf %8, %9 : vector<8x1xf32>
    %11 = vector.broadcast %10 : vector<8x1xf32> to vector<8x32xf32>
    %12 = arith.subf %4, %11 : vector<8x32xf32>
    %13 = arith.mulf %12, %12 : vector<8x32xf32>
    %cst_8 = arith.constant dense<0.000000e+00> : vector<8xf32>
    %14 = vector.multi_reduction <add>, %13, %cst_8 [1] : vector<8x32xf32> to vector<8xf32>
    %15 = vector.shape_cast %14 : vector<8xf32> to vector<8x1xf32>
    %cst_9 = arith.constant 3.200000e+01 : f32
    %16 = vector.broadcast %cst_9 : f32 to vector<8x1xf32>
    %17 = arith.divf %15, %16 : vector<8x1xf32>
    %18 = vector.broadcast %10 : vector<8x1xf32> to vector<8x32xf32>
    %19 = arith.subf %4, %18 : vector<8x32xf32>
    %cst_10 = arith.constant 9.99999974E-6 : f32
    %20 = vector.broadcast %cst_10 : f32 to vector<8x1xf32>
    %21 = arith.addf %17, %20 : vector<8x1xf32>
    %22 = math.rsqrt %21 : vector<8x1xf32>
    %23 = vector.broadcast %22 : vector<8x1xf32> to vector<8x32xf32>
    %24 = arith.mulf %19, %23 : vector<8x32xf32>
    %25 = vector.broadcast %5 : vector<1x32xf32> to vector<8x32xf32>
    %26 = arith.mulf %24, %25 : vector<8x32xf32>
    %27 = vector.broadcast %6 : vector<1x32xf32> to vector<8x32xf32>
    %28 = arith.addf %26, %27 : vector<8x32xf32>
    %c0_11 = arith.constant 0 : index
    %c0_12 = arith.constant 0 : index
    %29 = vector.load %arg8[%c0_11, %c0_12] : memref<32x32xf32, #tpu.memory_space<vmem>>, vector<32x32xf32>
    %cst_13 = arith.constant dense<0.000000e+00> : vector<8x32xf32>
    %30 = tpu.matmul %28, %29, %cst_13 {dimension_numbers = #tpu.dot_dimension_numbers<[1], [0], [0], [1], [0, 0, 1, 1], [], []>} : vector<8x32xf32>, vector<32x32xf32>, vector<8x32xf32> -> vector<8x32xf32>
    %c0_14 = arith.constant 0 : index
    %c0_15 = arith.constant 0 : index
    %31 = vector.load %arg9[%c0_14, %c0_15] : memref<1x32xf32, #tpu.memory_space<vmem>>, vector<1x32xf32>
    %32 = vector.broadcast %31 : vector<1x32xf32> to vector<8x32xf32>
    %33 = arith.addf %30, %32 : vector<8x32xf32>
    %34 = vector.extract_strided_slice %33 {offsets = [0, 0], sizes = [8, 8], strides = [1, 1]} : vector<8x32xf32> to vector<8x8xf32>
    %35 = vector.extract_strided_slice %33 {offsets = [0, 8], sizes = [8, 8], strides = [1, 1]} : vector<8x32xf32> to vector<8x8xf32>
    %36 = vector.extract_strided_slice %33 {offsets = [0, 16], sizes = [8, 8], strides = [1, 1]} : vector<8x32xf32> to vector<8x8xf32>
    %37 = vector.extract_strided_slice %33 {offsets = [0, 24], sizes = [8, 8], strides = [1, 1]} : vector<8x32xf32> to vector<8x8xf32>
    %38 = vector.shape_cast %34 : vector<8x8xf32> to vector<1x8x8xf32>
    %39 = vector.shape_cast %35 : vector<8x8xf32> to vector<1x8x8xf32>
    %40 = vector.shape_cast %36 : vector<8x8xf32> to vector<1x8x8xf32>
    %41 = vector.shape_cast %37 : vector<8x8xf32> to vector<1x8x8xf32>
    %42 = tpu.concatenate %38, %39, %40, %41 in 0 : vector<1x8x8xf32>, vector<1x8x8xf32>, vector<1x8x8xf32>, vector<1x8x8xf32> -> vector<4x8x8xf32>
    %c0_16 = arith.constant 0 : index
    %c0_17 = arith.constant 0 : index
    %c0_18 = arith.constant 0 : index
    %43 = vector.load %arg23[%c0_16, %c0_17, %c0_18] : memref<4x16x8xf32, #tpu.memory_space<vmem>>, vector<4x16x8xf32>
    %c0_19 = arith.constant 0 : index
    %c0_20 = arith.constant 0 : index
    %c0_21 = arith.constant 0 : index
    %44 = vector.load %arg24[%c0_19, %c0_20, %c0_21] : memref<4x16x8xf32, #tpu.memory_space<vmem>>, vector<4x16x8xf32>
    "tpu.trace_start"() <{level = 10 : i32, message = "hqd,hkd->hqk"}> : () -> ()
    %cst_22 = arith.constant dense<0.000000e+00> : vector<4x8x16xf32>
    %45 = tpu.matmul %42, %43, %cst_22 {dimension_numbers = #tpu.dot_dimension_numbers<[2], [2], [1], [1], [0, 0, 0, 1, 1, 1], [0], [0]>} : vector<4x8x8xf32>, vector<4x16x8xf32>, vector<4x8x16xf32> -> vector<4x8x16xf32>
    "tpu.trace_stop"() : () -> ()
    %cst_23 = arith.constant dense<0xFF800000> : vector<4x8xf32>
    %46 = vector.multi_reduction <maximumf>, %45, %cst_23 [2] : vector<4x8x16xf32> to vector<4x8xf32>
    %47 = vector.shape_cast %46 : vector<4x8xf32> to vector<4x8x1xf32>
    %48 = vector.broadcast %47 : vector<4x8x1xf32> to vector<4x8x16xf32>
    %49 = arith.subf %45, %48 : vector<4x8x16xf32>
    %50 = math.exp %49 : vector<4x8x16xf32>
    %cst_24 = arith.constant dense<0.000000e+00> : vector<4x8xf32>
    %51 = vector.multi_reduction <add>, %50, %cst_24 [2] : vector<4x8x16xf32> to vector<4x8xf32>
    %52 = vector.shape_cast %51 : vector<4x8xf32> to vector<4x8x1xf32>
    "tpu.trace_start"() <{level = 10 : i32, message = "hqk,hkd->hqd"}> : () -> ()
    %cst_25 = arith.constant dense<0.000000e+00> : vector<4x8x8xf32>
    %53 = tpu.matmul %50, %44, %cst_25 {dimension_numbers = #tpu.dot_dimension_numbers<[2], [1], [1], [2], [0, 0, 0, 1, 1, 2], [0], [0]>} : vector<4x8x16xf32>, vector<4x16x8xf32>, vector<4x8x8xf32> -> vector<4x8x8xf32>
    "tpu.trace_stop"() : () -> ()
    %cst_26 = arith.constant 1.000000e+00 : f32
    %54 = vector.broadcast %cst_26 : f32 to vector<4x8x1xf32>
    %55 = arith.divf %54, %52 : vector<4x8x1xf32>
    %56 = vector.broadcast %55 : vector<4x8x1xf32> to vector<4x8x8xf32>
    %57 = arith.mulf %53, %56 : vector<4x8x8xf32>
    %c0_27 = arith.constant 0 : index
    %c0_28 = arith.constant 0 : index
    %c0_29 = arith.constant 0 : index
    %58 = vector.load %arg14[%c0_27, %c0_28, %c0_29] : memref<4x8x32xf32, #tpu.memory_space<vmem>>, vector<4x8x32xf32>
    "tpu.trace_start"() <{level = 10 : i32, message = "hqd,hde->hqe"}> : () -> ()
    %cst_30 = arith.constant dense<0.000000e+00> : vector<4x8x32xf32>
    %59 = tpu.matmul %57, %58, %cst_30 {dimension_numbers = #tpu.dot_dimension_numbers<[2], [1], [1], [2], [0, 0, 0, 1, 1, 2], [0], [0]>} : vector<4x8x8xf32>, vector<4x8x32xf32>, vector<4x8x32xf32> -> vector<4x8x32xf32>
    "tpu.trace_stop"() : () -> ()
    %cst_31 = arith.constant dense<0.000000e+00> : vector<8x32xf32>
    %60 = vector.multi_reduction <add>, %59, %cst_31 [0] : vector<4x8x32xf32> to vector<8x32xf32>
    %c0_32 = arith.constant 0 : index
    %c0_33 = arith.constant 0 : index
    %61 = vector.load %arg15[%c0_32, %c0_33] : memref<1x32xf32, #tpu.memory_space<vmem>>, vector<1x32xf32>
    %62 = vector.broadcast %61 : vector<1x32xf32> to vector<8x32xf32>
    %63 = arith.addf %60, %62 : vector<8x32xf32>
    %64 = arith.addf %63, %4 : vector<8x32xf32>
    %c0_34 = arith.constant 0 : index
    %c0_35 = arith.constant 0 : index
    %65 = vector.load %arg16[%c0_34, %c0_35] : memref<1x32xf32, #tpu.memory_space<vmem>>, vector<1x32xf32>
    %c0_36 = arith.constant 0 : index
    %c0_37 = arith.constant 0 : index
    %66 = vector.load %arg17[%c0_36, %c0_37] : memref<1x32xf32, #tpu.memory_space<vmem>>, vector<1x32xf32>
    %cst_38 = arith.constant dense<0.000000e+00> : vector<8xf32>
    %67 = vector.multi_reduction <add>, %64, %cst_38 [1] : vector<8x32xf32> to vector<8xf32>
    %68 = vector.shape_cast %67 : vector<8xf32> to vector<8x1xf32>
    %cst_39 = arith.constant 3.200000e+01 : f32
    %69 = vector.broadcast %cst_39 : f32 to vector<8x1xf32>
    %70 = arith.divf %68, %69 : vector<8x1xf32>
    %71 = vector.broadcast %70 : vector<8x1xf32> to vector<8x32xf32>
    %72 = arith.subf %64, %71 : vector<8x32xf32>
    %73 = arith.mulf %72, %72 : vector<8x32xf32>
    %cst_40 = arith.constant dense<0.000000e+00> : vector<8xf32>
    %74 = vector.multi_reduction <add>, %73, %cst_40 [1] : vector<8x32xf32> to vector<8xf32>
    %75 = vector.shape_cast %74 : vector<8xf32> to vector<8x1xf32>
    %cst_41 = arith.constant 3.200000e+01 : f32
    %76 = vector.broadcast %cst_41 : f32 to vector<8x1xf32>
    %77 = arith.divf %75, %76 : vector<8x1xf32>
    %78 = vector.broadcast %70 : vector<8x1xf32> to vector<8x32xf32>
    %79 = arith.subf %64, %78 : vector<8x32xf32>
    %cst_42 = arith.constant 9.99999974E-6 : f32
    %80 = vector.broadcast %cst_42 : f32 to vector<8x1xf32>
    %81 = arith.addf %77, %80 : vector<8x1xf32>
    %82 = math.rsqrt %81 : vector<8x1xf32>
    %83 = vector.broadcast %82 : vector<8x1xf32> to vector<8x32xf32>
    %84 = arith.mulf %79, %83 : vector<8x32xf32>
    %85 = vector.broadcast %65 : vector<1x32xf32> to vector<8x32xf32>
    %86 = arith.mulf %84, %85 : vector<8x32xf32>
    %87 = vector.broadcast %66 : vector<1x32xf32> to vector<8x32xf32>
    %88 = arith.addf %86, %87 : vector<8x32xf32>
    %c0_43 = arith.constant 0 : index
    %c0_44 = arith.constant 0 : index
    %89 = vector.load %arg18[%c0_43, %c0_44] : memref<32x64xf32, #tpu.memory_space<vmem>>, vector<32x64xf32>
    %cst_45 = arith.constant dense<0.000000e+00> : vector<8x64xf32>
    %90 = tpu.matmul %88, %89, %cst_45 {dimension_numbers = #tpu.dot_dimension_numbers<[1], [0], [0], [1], [0, 0, 1, 1], [], []>} : vector<8x32xf32>, vector<32x64xf32>, vector<8x64xf32> -> vector<8x64xf32>
    %c0_46 = arith.constant 0 : index
    %c0_47 = arith.constant 0 : index
    %91 = vector.load %arg19[%c0_46, %c0_47] : memref<1x64xf32, #tpu.memory_space<vmem>>, vector<1x64xf32>
    %92 = vector.broadcast %91 : vector<1x64xf32> to vector<8x64xf32>
    %93 = arith.addf %90, %92 : vector<8x64xf32>
    %cst_48 = arith.constant 5.000000e-01 : f32
    %94 = vector.broadcast %cst_48 : f32 to vector<8x64xf32>
    %95 = arith.mulf %94, %93 : vector<8x64xf32>
    %cst_49 = arith.constant 0.707106769 : f32
    %96 = vector.broadcast %cst_49 : f32 to vector<8x64xf32>
    %97 = arith.mulf %93, %96 : vector<8x64xf32>
    %98 = math.erf %97 : vector<8x64xf32>
    %cst_50 = arith.constant 1.000000e+00 : f32
    %99 = vector.broadcast %cst_50 : f32 to vector<8x64xf32>
    %100 = arith.addf %99, %98 : vector<8x64xf32>
    %101 = arith.mulf %95, %100 : vector<8x64xf32>
    %c0_51 = arith.constant 0 : index
    %c0_52 = arith.constant 0 : index
    %102 = vector.load %arg20[%c0_51, %c0_52] : memref<64x32xf32, #tpu.memory_space<vmem>>, vector<64x32xf32>
    %cst_53 = arith.constant dense<0.000000e+00> : vector<8x32xf32>
    %103 = tpu.matmul %101, %102, %cst_53 {dimension_numbers = #tpu.dot_dimension_numbers<[1], [0], [0], [1], [0, 0, 1, 1], [], []>} : vector<8x64xf32>, vector<64x32xf32>, vector<8x32xf32> -> vector<8x32xf32>
    %c0_54 = arith.constant 0 : index
    %c0_55 = arith.constant 0 : index
    %104 = vector.load %arg21[%c0_54, %c0_55] : memref<1x32xf32, #tpu.memory_space<vmem>>, vector<1x32xf32>
    %105 = vector.broadcast %104 : vector<1x32xf32> to vector<8x32xf32>
    %106 = arith.addf %103, %105 : vector<8x32xf32>
    %cst_56 = arith.constant 5.000000e-01 : f32
    %107 = vector.broadcast %cst_56 : f32 to vector<8x32xf32>
    %108 = arith.mulf %107, %106 : vector<8x32xf32>
    %cst_57 = arith.constant 0.707106769 : f32
    %109 = vector.broadcast %cst_57 : f32 to vector<8x32xf32>
    %110 = arith.mulf %106, %109 : vector<8x32xf32>
    %111 = math.erf %110 : vector<8x32xf32>
    %cst_58 = arith.constant 1.000000e+00 : f32
    %112 = vector.broadcast %cst_58 : f32 to vector<8x32xf32>
    %113 = arith.addf %112, %111 : vector<8x32xf32>
    %114 = arith.mulf %108, %113 : vector<8x32xf32>
    %115 = arith.addf %114, %64 : vector<8x32xf32>
    %c0_59 = arith.constant 0 : index
    %c0_60 = arith.constant 0 : index
    %c0_61 = arith.constant 0 : index
    %116 = vector.load %arg22[%c0_59, %c0_60, %c0_61] : memref<1x8x32xf32, #tpu.memory_space<vmem>>, vector<1x8x32xf32>
    %117 = vector.shape_cast %116 : vector<1x8x32xf32> to vector<8x32xf32>
    %118 = vector.shape_cast %115 : vector<8x32xf32> to vector<1x8x32xf32>
    tpu.vector_store %arg22[%c0_59, %c0_60, %c0_61], %118 {strides = array<i32>} : memref<1x8x32xf32, #tpu.memory_space<vmem>>, vector<1x8x32xf32>,
    return
  }
  func.func @transform_0(%arg0: i32, %arg1: i32) -> (i32, i32, i32) {
    %c0_i32 = arith.constant 0 : i32
    %c0_i32_0 = arith.constant 0 : i32
    return %arg0, %arg1, %c0_i32 : i32, i32, i32
  }
  func.func @transform_1(%arg0: i32, %arg1: i32) -> (i32, i32, i32) {
    %c0_i32 = arith.constant 0 : i32
    %c0_i32_0 = arith.constant 0 : i32
    %c0_i32_1 = arith.constant 0 : i32
    return %arg0, %c0_i32, %c0_i32_0 : i32, i32, i32
  }
  func.func @transform_2(%arg0: i32, %arg1: i32) -> (i32, i32) {
    %c0_i32 = arith.constant 0 : i32
    %c0_i32_0 = arith.constant 0 : i32
    %c0_i32_1 = arith.constant 0 : i32
    return %c0_i32, %c0_i32_0 : i32, i32
  }
  func.func @transform_3(%arg0: i32, %arg1: i32) -> (i32, i32) {
    %c0_i32 = arith.constant 0 : i32
    %c0_i32_0 = arith.constant 0 : i32
    %c0_i32_1 = arith.constant 0 : i32
    return %c0_i32, %c0_i32_0 : i32, i32
  }
  func.func @transform_4(%arg0: i32, %arg1: i32) -> (i32, i32) {
    %c0_i32 = arith.constant 0 : i32
    %c0_i32_0 = arith.constant 0 : i32
    %c0_i32_1 = arith.constant 0 : i32
    return %c0_i32, %c0_i32_0 : i32, i32
  }
  func.func @transform_5(%arg0: i32, %arg1: i32) -> (i32, i32) {
    %c0_i32 = arith.constant 0 : i32
    %c0_i32_0 = arith.constant 0 : i32
    %c0_i32_1 = arith.constant 0 : i32
    return %c0_i32, %c0_i32_0 : i32, i32
  }
  func.func @transform_6(%arg0: i32, %arg1: i32) -> (i32, i32) {
    %c0_i32 = arith.constant 0 : i32
    %c0_i32_0 = arith.constant 0 : i32
    %c0_i32_1 = arith.constant 0 : i32
    return %c0_i32, %c0_i32_0 : i32, i32
  }
  func.func @transform_7(%arg0: i32, %arg1: i32) -> (i32, i32) {
    %c0_i32 = arith.constant 0 : i32
    %c0_i32_0 = arith.constant 0 : i32
    %c0_i32_1 = arith.constant 0 : i32
    return %c0_i32, %c0_i32_0 : i32, i32
  }
  func.func @transform_8(%arg0: i32, %arg1: i32) -> (i32, i32) {
    %c0_i32 = arith.constant 0 : i32
    %c0_i32_0 = arith.constant 0 : i32
    %c0_i32_1 = arith.constant 0 : i32
    return %c0_i32, %c0_i32_0 : i32, i32
  }
  func.func @transform_9(%arg0: i32, %arg1: i32) -> (i32, i32) {
    %c0_i32 = arith.constant 0 : i32
    %c0_i32_0 = arith.constant 0 : i32
    %c0_i32_1 = arith.constant 0 : i32
    return %c0_i32, %c0_i32_0 : i32, i32
  }
  func.func @transform_10(%arg0: i32, %arg1: i32) -> (i32, i32) {
    %c0_i32 = arith.constant 0 : i32
    %c0_i32_0 = arith.constant 0 : i32
    %c0_i32_1 = arith.constant 0 : i32
    return %c0_i32, %c0_i32_0 : i32, i32
  }
  func.func @transform_11(%arg0: i32, %arg1: i32) -> (i32, i32) {
    %c0_i32 = arith.constant 0 : i32
    %c0_i32_0 = arith.constant 0 : i32
    %c0_i32_1 = arith.constant 0 : i32
    return %c0_i32, %c0_i32_0 : i32, i32
  }
  func.func @transform_12(%arg0: i32, %arg1: i32) -> (i32, i32, i32) {
    %c0_i32 = arith.constant 0 : i32
    %c0_i32_0 = arith.constant 0 : i32
    %c0_i32_1 = arith.constant 0 : i32
    %c0_i32_2 = arith.constant 0 : i32
    return %c0_i32, %c0_i32_0, %c0_i32_1 : i32, i32, i32
  }
  func.func @transform_13(%arg0: i32, %arg1: i32) -> (i32, i32) {
    %c0_i32 = arith.constant 0 : i32
    %c0_i32_0 = arith.constant 0 : i32
    %c0_i32_1 = arith.constant 0 : i32
    return %c0_i32, %c0_i32_0 : i32, i32
  }
  func.func @transform_14(%arg0: i32, %arg1: i32) -> (i32, i32) {
    %c0_i32 = arith.constant 0 : i32
    %c0_i32_0 = arith.constant 0 : i32
    %c0_i32_1 = arith.constant 0 : i32
    return %c0_i32, %c0_i32_0 : i32, i32
  }
  func.func @transform_15(%arg0: i32, %arg1: i32) -> (i32, i32) {
    %c0_i32 = arith.constant 0 : i32
    %c0_i32_0 = arith.constant 0 : i32
    %c0_i32_1 = arith.constant 0 : i32
    return %c0_i32, %c0_i32_0 : i32, i32
  }
  func.func @transform_16(%arg0: i32, %arg1: i32) -> (i32, i32) {
    %c0_i32 = arith.constant 0 : i32
    %c0_i32_0 = arith.constant 0 : i32
    %c0_i32_1 = arith.constant 0 : i32
    return %c0_i32, %c0_i32_0 : i32, i32
  }
  func.func @transform_17(%arg0: i32, %arg1: i32) -> (i32, i32) {
    %c0_i32 = arith.constant 0 : i32
    %c0_i32_0 = arith.constant 0 : i32
    %c0_i32_1 = arith.constant 0 : i32
    return %c0_i32, %c0_i32_0 : i32, i32
  }
  func.func @transform_18(%arg0: i32, %arg1: i32) -> (i32, i32) {
    %c0_i32 = arith.constant 0 : i32
    %c0_i32_0 = arith.constant 0 : i32
    %c0_i32_1 = arith.constant 0 : i32
    return %c0_i32, %c0_i32_0 : i32, i32
  }
  func.func @transform_19(%arg0: i32, %arg1: i32) -> (i32, i32) {
    %c0_i32 = arith.constant 0 : i32
    %c0_i32_0 = arith.constant 0 : i32
    %c0_i32_1 = arith.constant 0 : i32
    return %c0_i32, %c0_i32_0 : i32, i32
  }
  func.func @transform_20(%arg0: i32, %arg1: i32) -> (i32, i32, i32) {
    %c0_i32 = arith.constant 0 : i32
    %c0_i32_0 = arith.constant 0 : i32
    return %arg0, %arg1, %c0_i32 : i32, i32, i32
  }
}

</mosaic_0001>

<llo_original>
// kernel: co_attention_layer.2
$region0: #{co_attention_layer.2}
  #allocation0 [shape = 'u32[]', space=smem, size = 0x4, offset = 0x4, fixed_abs, tag = 'smem constant byte address 0x4 - core index']
  #allocation1 [shape = 'u32[72,128]{1,0:T(1,128)}', space=vmem, size = 0x9000, scoped, tag = 'internal scratch']
  #allocation2 [shape = 'f32[4,16,8]{2,1,0:T(8,128)}', space=vmem, size = 0x8000, scoped, tag = 'scratch operand']
  #allocation3 [shape = 'f32[4,16,8]{2,1,0:T(8,128)}', space=vmem, size = 0x8000, scoped, tag = 'scratch operand']
  %s0 = inlined_call_operand.vmem [shape: f32[2,8,32], index: 0, kind: input, shape index: {}]
  %s1 = inlined_call_operand.vmem [shape: f32[2,16,32], index: 1, kind: input, shape index: {}]
  %s2 = inlined_call_operand.vmem [shape: f32[1,32], index: 2, kind: input, shape index: {}]
  %s3 = inlined_call_operand.vmem [shape: f32[1,32], index: 3, kind: input, shape index: {}]
  %s4 = inlined_call_operand.vmem [shape: f32[1,32], index: 4, kind: input, shape index: {}]
  %s5 = inlined_call_operand.vmem [shape: f32[1,32], index: 5, kind: input, shape index: {}]
  %s6 = inlined_call_operand.vmem [shape: f32[32,32], index: 6, kind: input, shape index: {}]
  %s7 = inlined_call_operand.vmem [shape: f32[1,32], index: 7, kind: input, shape index: {}]
  %s8 = inlined_call_operand.vmem [shape: f32[32,32], index: 8, kind: input, shape index: {}]
  %s9 = inlined_call_operand.vmem [shape: f32[1,32], index: 9, kind: input, shape index: {}]
  %s10 = inlined_call_operand.vmem [shape: f32[32,32], index: 10, kind: input, shape index: {}]
  %s11 = inlined_call_operand.vmem [shape: f32[1,32], index: 11, kind: input, shape index: {}]
  %s12 = inlined_call_operand.vmem [shape: f32[4,8,32], index: 12, kind: input, shape index: {}]
  %s13 = inlined_call_operand.vmem [shape: f32[1,32], index: 13, kind: input, shape index: {}]
  %s14 = inlined_call_operand.vmem [shape: f32[1,32], index: 14, kind: input, shape index: {}]
  %s15 = inlined_call_operand.vmem [shape: f32[1,32], index: 15, kind: input, shape index: {}]
  %s16 = inlined_call_operand.vmem [shape: f32[32,64], index: 16, kind: input, shape index: {}]
  %s17 = inlined_call_operand.vmem [shape: f32[1,64], index: 17, kind: input, shape index: {}]
  %s18 = inlined_call_operand.vmem [shape: f32[64,32], index: 18, kind: input, shape index: {}]
  %s19 = inlined_call_operand.vmem [shape: f32[1,32], index: 19, kind: input, shape index: {}]
  %s20 = inlined_call_operand.vmem [shape: f32[2,8,32], index: 20, kind: output, shape index: {}]
  %s21 = sld [smem:[#allocation0]]
  $region117: #{co_attention_layer.2} parent=0
    _
  %s23 = ssub.s32 1, %s21
  %s24 = scalar_select 0, %s23, %s21
  loop: start=0, step=1, limit=4
  $region2: #{co_attention_layer.2} parent=0 // loop_pre_header
    _
  $region3: #{co_attention_layer.2} parent=0 // loop_header
    %s26 = sphi 0, %s30
    %p27 = scmp.ge.s32.totalorder %s26, 4
    %s33 = sphi 0, %s45
    %s34 = sphi 0, %s41
    %s35 = sphi 0, %s33
    %s36 = sphi 0, %s34
    %s37 = sphi 0, %s35
    %s38 = sphi 0, %s36
    %s50 = sphi 0, %s52
    %s53 = sphi 0, %s50
    %s54 = sphi 0, %s53
    %s70 = sphi 0, %s54
    %s76 = sphi 0, %s78
    %s79 = sphi 0, %s76
    %s80 = sphi 0, %s79
    %s96 = sphi 0, %s80
    %s100 = sphi 0, %s100
    %s102 = sphi 0, %s100
    %s103 = sphi 0, %s102
    %s117 = sphi 0, %s103
    %s121 = sphi 0, %s121
    %s123 = sphi 0, %s121
    %s124 = sphi 0, %s123
    %s138 = sphi 0, %s124
    %s142 = sphi 0, %s142
    %s144 = sphi 0, %s142
    %s145 = sphi 0, %s144
    %s159 = sphi 0, %s145
    %s163 = sphi 0, %s163
    %s165 = sphi 0, %s163
    %s166 = sphi 0, %s165
    %s180 = sphi 0, %s166
    %s184 = sphi 0, %s184
    %s186 = sphi 0, %s184
    %s187 = sphi 0, %s186
    %s201 = sphi 0, %s187
    %s205 = sphi 0, %s205
    %s207 = sphi 0, %s205
    %s208 = sphi 0, %s207
    %s222 = sphi 0, %s208
    %s226 = sphi 0, %s226
    %s228 = sphi 0, %s226
    %s229 = sphi 0, %s228
    %s243 = sphi 0, %s229
    %s247 = sphi 0, %s247
    %s249 = sphi 0, %s247
    %s250 = sphi 0, %s249
    %s264 = sphi 0, %s250
    %s268 = sphi 0, %s268
    %s270 = sphi 0, %s268
    %s271 = sphi 0, %s270
    %s285 = sphi 0, %s271
    %s289 = sphi 0, %s289
    %s291 = sphi 0, %s289
    %s292 = sphi 0, %s291
    %s306 = sphi 0, %s292
    %s310 = sphi 0, %s310
    %s312 = sphi 0, %s310
    %s313 = sphi 0, %s312
    %s327 = sphi 0, %s313
    %s331 = sphi 0, %s331
    %s333 = sphi 0, %s331
    %s334 = sphi 0, %s333
    %s348 = sphi 0, %s334
    %s352 = sphi 0, %s352
    %s354 = sphi 0, %s352
    %s355 = sphi 0, %s354
    %s369 = sphi 0, %s355
    %s373 = sphi 0, %s373
    %s375 = sphi 0, %s373
    %s376 = sphi 0, %s375
    %s390 = sphi 0, %s376
    %s394 = sphi 0, %s394
    %s396 = sphi 0, %s394
    %s397 = sphi 0, %s396
    %s411 = sphi 0, %s397
    %s415 = sphi 0, %s415
    %s417 = sphi 0, %s415
    %s418 = sphi 0, %s417
    %s432 = sphi 0, %s418
    %s436 = sphi 0, %s436
    %s438 = sphi 0, %s436
    %s439 = sphi 0, %s438
    %s453 = sphi 0, %s439
    %s457 = sphi 0, %s457
    %s459 = sphi 0, %s457
    %s460 = sphi 0, %s459
    %s474 = sphi 0, %s460
    %s482 = sphi 0, %s484
    %s485 = sphi 0, %s482
    %s486 = sphi 0, %s485
    %s502 = sphi 0, %s486
  $region4: #{co_attention_layer.2} parent=0 // loop_header_branch
    %29 = sbr.rel (%p27) target = $region8
  $region5: #{co_attention_layer.2} parent=0 // loop_body
    %s31 = ssub.s32 %s26, 1
    %s32 = ssub.s32 %s26, 2
    %s39 = sadd.s32 1, %s34
    %p40 = scmp.ge.s32.totalorder %s39, 1
    %s41 = scalar_select %p40, 0, %s39
    %s42 = sadd.s32 1, %s33
    %s43 = scalar_select %p40, %s42, %s33
    %p44 = scmp.ge.s32.totalorder %s43, 2
    %s45 = scalar_select %p44, 0, %s43
    %s46 = ssub.s32 %s33, %s45
    %s47 = ssub.s32 %s34, %s41
    %s48 = sor.u32 %s46, %s47
    %p49 = scmp.eq.s32.totalorder %s48, 0
    %s51 = sadd.s32 %s50, 1
    %s52 = scalar_select %p49, %s50, %s51
    %p55 = pneg %p49
    %p56 = scmp.eq.s32.totalorder %s26, 1
    %p57 = por %p55, %p56
    %p58 = scmp.ne.s32.totalorder %s50, %s53
    %p59 = scmp.eq.s32.totalorder %s26, 0
    %p60 = por %p58, %p59
    %p61 = scmp.ne.s32.totalorder %s50, %s53
    %p62 = scmp.eq.s32.totalorder %s31, 1
    %p63 = por %p61, %p62
    %p64 = scmp.ne.s32.totalorder %s53, %s54
    %p65 = scmp.eq.s32.totalorder %s31, 0
    %p66 = por %p64, %p65
    %p67 = scmp.ne.s32.totalorder %s53, %s54
    %p68 = scmp.eq.s32.totalorder %s32, 1
    %p69 = por %p67, %p68
    %p71 = scmp.ne.s32.totalorder %s54, %s70
    %p72 = scmp.eq.s32.totalorder %s32, 0
    %p73 = por %p71, %p72
    %s74 = ssub.s32 %s33, %s45
    %p75 = scmp.eq.s32.totalorder %s74, 0
    %s77 = sadd.s32 %s76, 1
    %s78 = scalar_select %p75, %s76, %s77
    %p81 = pneg %p75
    %p82 = scmp.eq.s32.totalorder %s26, 1
    %p83 = por %p81, %p82
    %p84 = scmp.ne.s32.totalorder %s76, %s79
    %p85 = scmp.eq.s32.totalorder %s26, 0
    %p86 = por %p84, %p85
    %p87 = scmp.ne.s32.totalorder %s76, %s79
    %p88 = scmp.eq.s32.totalorder %s31, 1
    %p89 = por %p87, %p88
    %p90 = scmp.ne.s32.totalorder %s79, %s80
    %p91 = scmp.eq.s32.totalorder %s31, 0
    %p92 = por %p90, %p91
    %p93 = scmp.ne.s32.totalorder %s79, %s80
    %p94 = scmp.eq.s32.totalorder %s32, 1
    %p95 = por %p93, %p94
    %p97 = scmp.ne.s32.totalorder %s80, %s96
    %p98 = scmp.eq.s32.totalorder %s32, 0
    %p99 = por %p97, %p98
    %s101 = sadd.s32 %s100, 1
    %p104 = scmp.eq.s32.totalorder %s26, 1
    %p105 = scmp.ne.s32.totalorder %s100, %s102
    %p106 = scmp.eq.s32.totalorder %s26, 0
    %p107 = por %p105, %p106
    %p108 = scmp.ne.s32.totalorder %s100, %s102
    %p109 = scmp.eq.s32.totalorder %s31, 1
    %p110 = por %p108, %p109
    %p111 = scmp.ne.s32.totalorder %s102, %s103
    %p112 = scmp.eq.s32.totalorder %s31, 0
    %p113 = por %p111, %p112
    %p114 = scmp.ne.s32.totalorder %s102, %s103
    %p115 = scmp.eq.s32.totalorder %s32, 1
    %p116 = por %p114, %p115
    %p118 = scmp.ne.s32.totalorder %s103, %s117
    %p119 = scmp.eq.s32.totalorder %s32, 0
    %p120 = por %p118, %p119
    %s122 = sadd.s32 %s121, 1
    %p125 = scmp.eq.s32.totalorder %s26, 1
    %p126 = scmp.ne.s32.totalorder %s121, %s123
    %p127 = scmp.eq.s32.totalorder %s26, 0
    %p128 = por %p126, %p127
    %p129 = scmp.ne.s32.totalorder %s121, %s123
    %p130 = scmp.eq.s32.totalorder %s31, 1
    %p131 = por %p129, %p130
    %p132 = scmp.ne.s32.totalorder %s123, %s124
    %p133 = scmp.eq.s32.totalorder %s31, 0
    %p134 = por %p132, %p133
    %p135 = scmp.ne.s32.totalorder %s123, %s124
    %p136 = scmp.eq.s32.totalorder %s32, 1
    %p137 = por %p135, %p136
    %p139 = scmp.ne.s32.totalorder %s124, %s138
    %p140 = scmp.eq.s32.totalorder %s32, 0
    %p141 = por %p139, %p140
    %s143 = sadd.s32 %s142, 1
    %p146 = scmp.eq.s32.totalorder %s26, 1
    %p147 = scmp.ne.s32.totalorder %s142, %s144
    %p148 = scmp.eq.s32.totalorder %s26, 0
    %p149 = por %p147, %p148
    %p150 = scmp.ne.s32.totalorder %s142, %s144
    %p151 = scmp.eq.s32.totalorder %s31, 1
    %p152 = por %p150, %p151
    %p153 = scmp.ne.s32.totalorder %s144, %s145
    %p154 = scmp.eq.s32.totalorder %s31, 0
    %p155 = por %p153, %p154
    %p156 = scmp.ne.s32.totalorder %s144, %s145
    %p157 = scmp.eq.s32.totalorder %s32, 1
    %p158 = por %p156, %p157
    %p160 = scmp.ne.s32.totalorder %s145, %s159
    %p161 = scmp.eq.s32.totalorder %s32, 0
    %p162 = por %p160, %p161
    %s164 = sadd.s32 %s163, 1
    %p167 = scmp.eq.s32.totalorder %s26, 1
    %p168 = scmp.ne.s32.totalorder %s163, %s165
    %p169 = scmp.eq.s32.totalorder %s26, 0
    %p170 = por %p168, %p169
    %p171 = scmp.ne.s32.totalorder %s163, %s165
    %p172 = scmp.eq.s32.totalorder %s31, 1
    %p173 = por %p171, %p172
    %p174 = scmp.ne.s32.totalorder %s165, %s166
    %p175 = scmp.eq.s32.totalorder %s31, 0
    %p176 = por %p174, %p175
    %p177 = scmp.ne.s32.totalorder %s165, %s166
    %p178 = scmp.eq.s32.totalorder %s32, 1
    %p179 = por %p177, %p178
    %p181 = scmp.ne.s32.totalorder %s166, %s180
    %p182 = scmp.eq.s32.totalorder %s32, 0
    %p183 = por %p181, %p182
    %s185 = sadd.s32 %s184, 1
    %p188 = scmp.eq.s32.totalorder %s26, 1
    %p189 = scmp.ne.s32.totalorder %s184, %s186
    %p190 = scmp.eq.s32.totalorder %s26, 0
    %p191 = por %p189, %p190
    %p192 = scmp.ne.s32.totalorder %s184, %s186
    %p193 = scmp.eq.s32.totalorder %s31, 1
    %p194 = por %p192, %p193
    %p195 = scmp.ne.s32.totalorder %s186, %s187
    %p196 = scmp.eq.s32.totalorder %s31, 0
    %p197 = por %p195, %p196
    %p198 = scmp.ne.s32.totalorder %s186, %s187
    %p199 = scmp.eq.s32.totalorder %s32, 1
    %p200 = por %p198, %p199
    %p202 = scmp.ne.s32.totalorder %s187, %s201
    %p203 = scmp.eq.s32.totalorder %s32, 0
    %p204 = por %p202, %p203
    %s206 = sadd.s32 %s205, 1
    %p209 = scmp.eq.s32.totalorder %s26, 1
    %p210 = scmp.ne.s32.totalorder %s205, %s207
    %p211 = scmp.eq.s32.totalorder %s26, 0
    %p212 = por %p210, %p211
    %p213 = scmp.ne.s32.totalorder %s205, %s207
    %p214 = scmp.eq.s32.totalorder %s31, 1
    %p215 = por %p213, %p214
    %p216 = scmp.ne.s32.totalorder %s207, %s208
    %p217 = scmp.eq.s32.totalorder %s31, 0
    %p218 = por %p216, %p217
    %p219 = scmp.ne.s32.totalorder %s207, %s208
    %p220 = scmp.eq.s32.totalorder %s32, 1
    %p221 = por %p219, %p220
    %p223 = scmp.ne.s32.totalorder %s208, %s222
    %p224 = scmp.eq.s32.totalorder %s32, 0
    %p225 = por %p223, %p224
    %s227 = sadd.s32 %s226, 1
    %p230 = scmp.eq.s32.totalorder %s26, 1
    %p231 = scmp.ne.s32.totalorder %s226, %s228
    %p232 = scmp.eq.s32.totalorder %s26, 0
    %p233 = por %p231, %p232
    %p234 = scmp.ne.s32.totalorder %s226, %s228
    %p235 = scmp.eq.s32.totalorder %s31, 1
    %p236 = por %p234, %p235
    %p237 = scmp.ne.s32.totalorder %s228, %s229
    %p238 = scmp.eq.s32.totalorder %s31, 0
    %p239 = por %p237, %p238
    %p240 = scmp.ne.s32.totalorder %s228, %s229
    %p241 = scmp.eq.s32.totalorder %s32, 1
    %p242 = por %p240, %p241
    %p244 = scmp.ne.s32.totalorder %s229, %s243
    %p245 = scmp.eq.s32.totalorder %s32, 0
    %p246 = por %p244, %p245
    %s248 = sadd.s32 %s247, 1
    %p251 = scmp.eq.s32.totalorder %s26, 1
    %p252 = scmp.ne.s32.totalorder %s247, %s249
    %p253 = scmp.eq.s32.totalorder %s26, 0
    %p254 = por %p252, %p253
    %p255 = scmp.ne.s32.totalorder %s247, %s249
    %p256 = scmp.eq.s32.totalorder %s31, 1
    %p257 = por %p255, %p256
    %p258 = scmp.ne.s32.totalorder %s249, %s250
    %p259 = scmp.eq.s32.totalorder %s31, 0
    %p260 = por %p258, %p259
    %p261 = scmp.ne.s32.totalorder %s249, %s250
    %p262 = scmp.eq.s32.totalorder %s32, 1
    %p263 = por %p261, %p262
    %p265 = scmp.ne.s32.totalorder %s250, %s264
    %p266 = scmp.eq.s32.totalorder %s32, 0
    %p267 = por %p265, %p266
    %s269 = sadd.s32 %s268, 1
    %p272 = scmp.eq.s32.totalorder %s26, 1
    %p273 = scmp.ne.s32.totalorder %s268, %s270
    %p274 = scmp.eq.s32.totalorder %s26, 0
    %p275 = por %p273, %p274
    %p276 = scmp.ne.s32.totalorder %s268, %s270
    %p277 = scmp.eq.s32.totalorder %s31, 1
    %p278 = por %p276, %p277
    %p279 = scmp.ne.s32.totalorder %s270, %s271
    %p280 = scmp.eq.s32.totalorder %s31, 0
    %p281 = por %p279, %p280
    %p282 = scmp.ne.s32.totalorder %s270, %s271
    %p283 = scmp.eq.s32.totalorder %s32, 1
    %p284 = por %p282, %p283
    %p286 = scmp.ne.s32.totalorder %s271, %s285
    %p287 = scmp.eq.s32.totalorder %s32, 0
    %p288 = por %p286, %p287
    %s290 = sadd.s32 %s289, 1
    %p293 = scmp.eq.s32.totalorder %s26, 1
    %p294 = scmp.ne.s32.totalorder %s289, %s291
    %p295 = scmp.eq.s32.totalorder %s26, 0
    %p296 = por %p294, %p295
    %p297 = scmp.ne.s32.totalorder %s289, %s291
    %p298 = scmp.eq.s32.totalorder %s31, 1
    %p299 = por %p297, %p298
    %p300 = scmp.ne.s32.totalorder %s291, %s292
    %p301 = scmp.eq.s32.totalorder %s31, 0
    %p302 = por %p300, %p301
    %p303 = scmp.ne.s32.totalorder %s291, %s292
    %p304 = scmp.eq.s32.totalorder %s32, 1
    %p305 = por %p303, %p304
    %p307 = scmp.ne.s32.totalorder %s292, %s306
    %p308 = scmp.eq.s32.totalorder %s32, 0
    %p309 = por %p307, %p308
    %s311 = sadd.s32 %s310, 1
    %p314 = scmp.eq.s32.totalorder %s26, 1
    %p315 = scmp.ne.s32.totalorder %s310, %s312
    %p316 = scmp.eq.s32.totalorder %s26, 0
    %p317 = por %p315, %p316
    %p318 = scmp.ne.s32.totalorder %s310, %s312
    %p319 = scmp.eq.s32.totalorder %s31, 1
    %p320 = por %p318, %p319
    %p321 = scmp.ne.s32.totalorder %s312, %s313
    %p322 = scmp.eq.s32.totalorder %s31, 0
    %p323 = por %p321, %p322
    %p324 = scmp.ne.s32.totalorder %s312, %s313
    %p325 = scmp.eq.s32.totalorder %s32, 1
    %p326 = por %p324, %p325
    %p328 = scmp.ne.s32.totalorder %s313, %s327
    %p329 = scmp.eq.s32.totalorder %s32, 0
    %p330 = por %p328, %p329
    %s332 = sadd.s32 %s331, 1
    %p335 = scmp.eq.s32.totalorder %s26, 1
    %p336 = scmp.ne.s32.totalorder %s331, %s333
    %p337 = scmp.eq.s32.totalorder %s26, 0
    %p338 = por %p336, %p337
    %p339 = scmp.ne.s32.totalorder %s331, %s333
    %p340 = scmp.eq.s32.totalorder %s31, 1
    %p341 = por %p339, %p340
    %p342 = scmp.ne.s32.totalorder %s333, %s334
    %p343 = scmp.eq.s32.totalorder %s31, 0
    %p344 = por %p342, %p343
    %p345 = scmp.ne.s32.totalorder %s333, %s334
    %p346 = scmp.eq.s32.totalorder %s32, 1
    %p347 = por %p345, %p346
    %p349 = scmp.ne.s32.totalorder %s334, %s348
    %p350 = scmp.eq.s32.totalorder %s32, 0
    %p351 = por %p349, %p350
    %s353 = sadd.s32 %s352, 1
    %p356 = scmp.eq.s32.totalorder %s26, 1
    %p357 = scmp.ne.s32.totalorder %s352, %s354
    %p358 = scmp.eq.s32.totalorder %s26, 0
    %p359 = por %p357, %p358
    %p360 = scmp.ne.s32.totalorder %s352, %s354
    %p361 = scmp.eq.s32.totalorder %s31, 1
    %p362 = por %p360, %p361
    %p363 = scmp.ne.s32.totalorder %s354, %s355
    %p364 = scmp.eq.s32.totalorder %s31, 0
    %p365 = por %p363, %p364
    %p366 = scmp.ne.s32.totalorder %s354, %s355
    %p367 = scmp.eq.s32.totalorder %s32, 1
    %p368 = por %p366, %p367
    %p370 = scmp.ne.s32.totalorder %s355, %s369
    %p371 = scmp.eq.s32.totalorder %s32, 0
    %p372 = por %p370, %p371
    %s374 = sadd.s32 %s373, 1
    %p377 = scmp.eq.s32.totalorder %s26, 1
    %p378 = scmp.ne.s32.totalorder %s373, %s375
    %p379 = scmp.eq.s32.totalorder %s26, 0
    %p380 = por %p378, %p379
    %p381 = scmp.ne.s32.totalorder %s373, %s375
    %p382 = scmp.eq.s32.totalorder %s31, 1
    %p383 = por %p381, %p382
    %p384 = scmp.ne.s32.totalorder %s375, %s376
    %p385 = scmp.eq.s32.totalorder %s31, 0
    %p386 = por %p384, %p385
    %p387 = scmp.ne.s32.totalorder %s375, %s376
    %p388 = scmp.eq.s32.totalorder %s32, 1
    %p389 = por %p387, %p388
    %p391 = scmp.ne.s32.totalorder %s376, %s390
    %p392 = scmp.eq.s32.totalorder %s32, 0
    %p393 = por %p391, %p392
    %s395 = sadd.s32 %s394, 1
    %p398 = scmp.eq.s32.totalorder %s26, 1
    %p399 = scmp.ne.s32.totalorder %s394, %s396
    %p400 = scmp.eq.s32.totalorder %s26, 0
    %p401 = por %p399, %p400
    %p402 = scmp.ne.s32.totalorder %s394, %s396
    %p403 = scmp.eq.s32.totalorder %s31, 1
    %p404 = por %p402, %p403
    %p405 = scmp.ne.s32.totalorder %s396, %s397
    %p406 = scmp.eq.s32.totalorder %s31, 0
    %p407 = por %p405, %p406
    %p408 = scmp.ne.s32.totalorder %s396, %s397
    %p409 = scmp.eq.s32.totalorder %s32, 1
    %p410 = por %p408, %p409
    %p412 = scmp.ne.s32.totalorder %s397, %s411
    %p413 = scmp.eq.s32.totalorder %s32, 0
    %p414 = por %p412, %p413
    %s416 = sadd.s32 %s415, 1
    %p419 = scmp.eq.s32.totalorder %s26, 1
    %p420 = scmp.ne.s32.totalorder %s415, %s417
    %p421 = scmp.eq.s32.totalorder %s26, 0
    %p422 = por %p420, %p421
    %p423 = scmp.ne.s32.totalorder %s415, %s417
    %p424 = scmp.eq.s32.totalorder %s31, 1
    %p425 = por %p423, %p424
    %p426 = scmp.ne.s32.totalorder %s417, %s418
    %p427 = scmp.eq.s32.totalorder %s31, 0
    %p428 = por %p426, %p427
    %p429 = scmp.ne.s32.totalorder %s417, %s418
    %p430 = scmp.eq.s32.totalorder %s32, 1
    %p431 = por %p429, %p430
    %p433 = scmp.ne.s32.totalorder %s418, %s432
    %p434 = scmp.eq.s32.totalorder %s32, 0
    %p435 = por %p433, %p434
    %s437 = sadd.s32 %s436, 1
    %p440 = scmp.eq.s32.totalorder %s26, 1
    %p441 = scmp.ne.s32.totalorder %s436, %s438
    %p442 = scmp.eq.s32.totalorder %s26, 0
    %p443 = por %p441, %p442
    %p444 = scmp.ne.s32.totalorder %s436, %s438
    %p445 = scmp.eq.s32.totalorder %s31, 1
    %p446 = por %p444, %p445
    %p447 = scmp.ne.s32.totalorder %s438, %s439
    %p448 = scmp.eq.s32.totalorder %s31, 0
    %p449 = por %p447, %p448
    %p450 = scmp.ne.s32.totalorder %s438, %s439
    %p451 = scmp.eq.s32.totalorder %s32, 1
    %p452 = por %p450, %p451
    %p454 = scmp.ne.s32.totalorder %s439, %s453
    %p455 = scmp.eq.s32.totalorder %s32, 0
    %p456 = por %p454, %p455
    %s458 = sadd.s32 %s457, 1
    %p461 = scmp.eq.s32.totalorder %s26, 1
    %p462 = scmp.ne.s32.totalorder %s457, %s459
    %p463 = scmp.eq.s32.totalorder %s26, 0
    %p464 = por %p462, %p463
    %p465 = scmp.ne.s32.totalorder %s457, %s459
    %p466 = scmp.eq.s32.totalorder %s31, 1
    %p467 = por %p465, %p466
    %p468 = scmp.ne.s32.totalorder %s459, %s460
    %p469 = scmp.eq.s32.totalorder %s31, 0
    %p470 = por %p468, %p469
    %p471 = scmp.ne.s32.totalorder %s459, %s460
    %p472 = scmp.eq.s32.totalorder %s32, 1
    %p473 = por %p471, %p472
    %p475 = scmp.ne.s32.totalorder %s460, %s474
    %p476 = scmp.eq.s32.totalorder %s32, 0
    %p477 = por %p475, %p476
    %s478 = ssub.s32 %s33, %s45
    %s479 = ssub.s32 %s34, %s41
    %s480 = sor.u32 %s478, %s479
    %p481 = scmp.eq.s32.totalorder %s480, 0
    %s483 = sadd.s32 %s482, 1
    %s484 = scalar_select %p481, %s482, %s483
    %p487 = pneg %p481
    %p488 = scmp.eq.s32.totalorder %s26, 1
    %p489 = por %p487, %p488
    %p490 = scmp.ne.s32.totalorder %s482, %s485
    %p491 = scmp.eq.s32.totalorder %s26, 0
    %p492 = por %p490, %p491
    %p493 = scmp.ne.s32.totalorder %s482, %s485
    %p494 = scmp.eq.s32.totalorder %s31, 1
    %p495 = por %p493, %p494
    %p496 = scmp.ne.s32.totalorder %s485, %s486
    %p497 = scmp.eq.s32.totalorder %s31, 0
    %p498 = por %p496, %p497
    %p499 = scmp.ne.s32.totalorder %s485, %s486
    %p500 = scmp.eq.s32.totalorder %s32, 1
    %p501 = por %p499, %p500
    %p503 = scmp.ne.s32.totalorder %s486, %s502
    %p504 = scmp.eq.s32.totalorder %s32, 0
    %p505 = por %p503, %p504
    %p506 = scmp.le.s32.totalorder 1, %s26
    %p507 = scmp.lt.s32.totalorder %s26, 3
    %p508 = pnand %p506, %p507
    %p509 = pneg %p508
    // Predicated region
    $region9: #{co_attention_layer.2} parent=5 // pred_check
      _
    $region10: #{co_attention_layer.2} parent=5 // pred_check_branch
      %511 = sbr.rel (%p508) target = $region12
    $region11: #{co_attention_layer.2} parent=5 // pred_region
      %s512 = ssub.s32 %s26, 1
      // Predicated region
      $region13: #{co_attention_layer.2} parent=11 // pred_check
        %p513 = pneg %p113
      $region14: #{co_attention_layer.2} parent=11 // pred_check_branch
        %515 = sbr.rel (%p513) target = $region16
      $region15: #{co_attention_layer.2} parent=11 // pred_region
        _
      $region16: #{co_attention_layer.2} parent=11 // pred_fallthru
        _
      // Predicated region
      $region17: #{co_attention_layer.2} parent=11 // pred_check
        %p516 = pneg %p134
      $region18: #{co_attention_layer.2} parent=11 // pred_check_branch
        %518 = sbr.rel (%p516) target = $region20
      $region19: #{co_attention_layer.2} parent=11 // pred_region
        _
      $region20: #{co_attention_layer.2} parent=11 // pred_fallthru
        _
      // Predicated region
      $region21: #{co_attention_layer.2} parent=11 // pred_check
        %p519 = pneg %p155
      $region22: #{co_attention_layer.2} parent=11 // pred_check_branch
        %521 = sbr.rel (%p519) target = $region24
      $region23: #{co_attention_layer.2} parent=11 // pred_region
        _
      $region24: #{co_attention_layer.2} parent=11 // pred_fallthru
        _
      // Predicated region
      $region25: #{co_attention_layer.2} parent=11 // pred_check
        %p522 = pneg %p176
      $region26: #{co_attention_layer.2} parent=11 // pred_check_branch
        %524 = sbr.rel (%p522) target = $region28
      $region27: #{co_attention_layer.2} parent=11 // pred_region
        _
      $region28: #{co_attention_layer.2} parent=11 // pred_fallthru
        _
      // Predicated region
      $region29: #{co_attention_layer.2} parent=11 // pred_check
        %p525 = pneg %p197
      $region30: #{co_attention_layer.2} parent=11 // pred_check_branch
        %527 = sbr.rel (%p525) target = $region32
      $region31: #{co_attention_layer.2} parent=11 // pred_region
        _
      $region32: #{co_attention_layer.2} parent=11 // pred_fallthru
        _
      // Predicated region
      $region33: #{co_attention_layer.2} parent=11 // pred_check
        %p528 = pneg %p218
      $region34: #{co_attention_layer.2} parent=11 // pred_check_branch
        %530 = sbr.rel (%p528) target = $region36
      $region35: #{co_attention_layer.2} parent=11 // pred_region
        _
      $region36: #{co_attention_layer.2} parent=11 // pred_fallthru
        _
      // Predicated region
      $region37: #{co_attention_layer.2} parent=11 // pred_check
        %p531 = pneg %p239
      $region38: #{co_attention_layer.2} parent=11 // pred_check_branch
        %533 = sbr.rel (%p531) target = $region40
      $region39: #{co_attention_layer.2} parent=11 // pred_region
        _
      $region40: #{co_attention_layer.2} parent=11 // pred_fallthru
        _
      // Predicated region
      $region41: #{co_attention_layer.2} parent=11 // pred_check
        %p534 = pneg %p260
      $region42: #{co_attention_layer.2} parent=11 // pred_check_branch
        %536 = sbr.rel (%p534) target = $region44
      $region43: #{co_attention_layer.2} parent=11 // pred_region
        _
      $region44: #{co_attention_layer.2} parent=11 // pred_fallthru
        _
      // Predicated region
      $region45: #{co_attention_layer.2} parent=11 // pred_check
        %p537 = pneg %p281
      $region46: #{co_attention_layer.2} parent=11 // pred_check_branch
        %539 = sbr.rel (%p537) target = $region48
      $region47: #{co_attention_layer.2} parent=11 // pred_region
        _
      $region48: #{co_attention_layer.2} parent=11 // pred_fallthru
        _
      // Predicated region
      $region49: #{co_attention_layer.2} parent=11 // pred_check
        %p540 = pneg %p302
      $region50: #{co_attention_layer.2} parent=11 // pred_check_branch
        %542 = sbr.rel (%p540) target = $region52
      $region51: #{co_attention_layer.2} parent=11 // pred_region
        _
      $region52: #{co_attention_layer.2} parent=11 // pred_fallthru
        _
      // Predicated region
      $region53: #{co_attention_layer.2} parent=11 // pred_check
        %p543 = pneg %p323
      $region54: #{co_attention_layer.2} parent=11 // pred_check_branch
        %545 = sbr.rel (%p543) target = $region56
      $region55: #{co_attention_layer.2} parent=11 // pred_region
        _
      $region56: #{co_attention_layer.2} parent=11 // pred_fallthru
        _
      // Predicated region
      $region57: #{co_attention_layer.2} parent=11 // pred_check
        %p546 = pneg %p344
      $region58: #{co_attention_layer.2} parent=11 // pred_check_branch
        %548 = sbr.rel (%p546) target = $region60
      $region59: #{co_attention_layer.2} parent=11 // pred_region
        _
      $region60: #{co_attention_layer.2} parent=11 // pred_fallthru
        _
      // Predicated region
      $region61: #{co_attention_layer.2} parent=11 // pred_check
        %p549 = pneg %p365
      $region62: #{co_attention_layer.2} parent=11 // pred_check_branch
        %551 = sbr.rel (%p549) target = $region64
      $region63: #{co_attention_layer.2} parent=11 // pred_region
        _
      $region64: #{co_attention_layer.2} parent=11 // pred_fallthru
        _
      // Predicated region
      $region65: #{co_attention_layer.2} parent=11 // pred_check
        %p552 = pneg %p386
      $region66: #{co_attention_layer.2} parent=11 // pred_check_branch
        %554 = sbr.rel (%p552) target = $region68
      $region67: #{co_attention_layer.2} parent=11 // pred_region
        _
      $region68: #{co_attention_layer.2} parent=11 // pred_fallthru
        _
      // Predicated region
      $region69: #{co_attention_layer.2} parent=11 // pred_check
        %p555 = pneg %p407
      $region70: #{co_attention_layer.2} parent=11 // pred_check_branch
        %557 = sbr.rel (%p555) target = $region72
      $region71: #{co_attention_layer.2} parent=11 // pred_region
        _
      $region72: #{co_attention_layer.2} parent=11 // pred_fallthru
        _
      // Predicated region
      $region73: #{co_attention_layer.2} parent=11 // pred_check
        %p558 = pneg %p428
      $region74: #{co_attention_layer.2} parent=11 // pred_check_branch
        %560 = sbr.rel (%p558) target = $region76
      $region75: #{co_attention_layer.2} parent=11 // pred_region
        _
      $region76: #{co_attention_layer.2} parent=11 // pred_fallthru
        _
      // Predicated region
      $region77: #{co_attention_layer.2} parent=11 // pred_check
        %p561 = pneg %p449
      $region78: #{co_attention_layer.2} parent=11 // pred_check_branch
        %563 = sbr.rel (%p561) target = $region80
      $region79: #{co_attention_layer.2} parent=11 // pred_region
        _
      $region80: #{co_attention_layer.2} parent=11 // pred_fallthru
        _
      // Predicated region
      $region81: #{co_attention_layer.2} parent=11 // pred_check
        %p564 = pneg %p470
      $region82: #{co_attention_layer.2} parent=11 // pred_check_branch
        %566 = sbr.rel (%p564) target = $region84
      $region83: #{co_attention_layer.2} parent=11 // pred_region
        _
      $region84: #{co_attention_layer.2} parent=11 // pred_fallthru
        _
    $region12: #{co_attention_layer.2} parent=5 // pred_fallthru
      _
    %p567 = scmp.lt.s32.totalorder %s26, 2
    // Predicated region
    $region85: #{co_attention_layer.2} parent=5 // pred_check
      %p568 = pneg %p567
    $region86: #{co_attention_layer.2} parent=5 // pred_check_branch
      %570 = sbr.rel (%p568) target = $region88
    $region87: #{co_attention_layer.2} parent=5 // pred_region
      // Predicated region
      $region89: #{co_attention_layer.2} parent=87 // pred_check
        %p571 = pneg %p60
      $region90: #{co_attention_layer.2} parent=87 // pred_check_branch
        %573 = sbr.rel (%p571) target = $region92
      $region91: #{co_attention_layer.2} parent=87 // pred_region
        %p574 = scmp.lt.s32.totalorder %s33, 1
        %s575 = scalar_select %p574, %s33, 1
        %p576 = scmp.lt.s32.totalorder %s34, 0
        %s577 = scalar_select %p576, %s34, 0
        %s578 = sadd.s32 %s577, %s575
        %s579 = smul.addr %s578, 8
        %s580 = scalar_lea.vmem %s0, %s579
      $region92: #{co_attention_layer.2} parent=87 // pred_fallthru
        _
      // Predicated region
      $region93: #{co_attention_layer.2} parent=87 // pred_check
        %p581 = pneg %p86
      $region94: #{co_attention_layer.2} parent=87 // pred_check_branch
        %583 = sbr.rel (%p581) target = $region96
      $region95: #{co_attention_layer.2} parent=87 // pred_region
        %p584 = scmp.lt.s32.totalorder %s33, 1
        %s585 = scalar_select %p584, %s33, 1
        %s586 = smul.addr %s585, 2
        %s587 = smul.addr %s586, 8
        %s588 = scalar_lea.vmem %s1, %s587
      $region96: #{co_attention_layer.2} parent=87 // pred_fallthru
        _
    $region88: #{co_attention_layer.2} parent=5 // pred_fallthru
      _
    %p589 = scmp.le.s32.totalorder 1, %s26
    %p590 = scmp.lt.s32.totalorder %s26, 3
    %p591 = pnand %p589, %p590
    %p592 = pneg %p591
    // Predicated region
    $region97: #{co_attention_layer.2} parent=5 // pred_check
      _
    $region98: #{co_attention_layer.2} parent=5 // pred_check_branch
      %594 = sbr.rel (%p591) target = $region100
    $region99: #{co_attention_layer.2} parent=5 // pred_region
      %s595 = ssub.s32 %s26, 1
      %p596 = scmp.lt.s32.totalorder %s35, 1
      %s597 = scalar_select %p596, %s35, 1
      %p598 = scmp.lt.s32.totalorder %s36, 0
      %s599 = scalar_select %p598, %s36, 0
      %s600 = sadd.s32 %s599, %s597
      %s601 = smul.addr %s600, 8
      %s602 = scalar_lea.vmem %s0, %s601
      %p603 = pneg %p66
      %p604 = pneg %p63
      %p605 = scmp.lt.s32.totalorder %s35, 1
      %s606 = scalar_select %p605, %s35, 1
      %s607 = smul.addr %s606, 2
      %s608 = smul.addr %s607, 8
      %s609 = scalar_lea.vmem %s1, %s608
      %p610 = pneg %p92
      %p611 = pneg %p89
      %p612 = pneg %p113
      %p613 = pneg %p110
      %p614 = pneg %p134
      %p615 = pneg %p131
      %p616 = pneg %p155
      %p617 = pneg %p152
      %p618 = pneg %p176
      %p619 = pneg %p173
      %p620 = pneg %p197
      %p621 = pneg %p194
      %p622 = pneg %p218
      %p623 = pneg %p215
      %p624 = pneg %p239
      %p625 = pneg %p236
      %p626 = pneg %p260
      %p627 = pneg %p257
      %p628 = pneg %p281
      %p629 = pneg %p278
      %p630 = pneg %p302
      %p631 = pneg %p299
      %p632 = pneg %p323
      %p633 = pneg %p320
      %p634 = pneg %p344
      %p635 = pneg %p341
      %p636 = pneg %p365
      %p637 = pneg %p362
      %p638 = pneg %p386
      %p639 = pneg %p383
      %p640 = pneg %p407
      %p641 = pneg %p404
      %p642 = pneg %p428
      %p643 = pneg %p425
      %p644 = pneg %p449
      %p645 = pneg %p446
      %p646 = pneg %p470
      %p647 = pneg %p467
      %p648 = pneg %p498
      %p649 = pneg %p495
      %p650 = scmp.lt.s32.totalorder %s35, 1
      %s651 = scalar_select %p650, %s35, 1
      %p652 = scmp.lt.s32.totalorder %s36, 0
      %s653 = scalar_select %p652, %s36, 0
      %s654 = sadd.s32 %s653, %s651
      %s655 = smul.addr %s654, 8
      %s656 = scalar_lea.vmem %s20, %s655
      %p657 = scmp.lt.s32.totalorder %s35, 1
      %s658 = scalar_select %p657, %s35, 1
      %p659 = scmp.lt.s32.totalorder %s36, 0
      %s660 = scalar_select %p659, %s36, 0
      %s661 = sadd.s32 %s660, %s658
      %s662 = smul.addr %s661, 8
      %s663 = scalar_lea.vmem %s0, %s662
      %p664 = scmp.lt.s32.totalorder %s35, 1
      %s665 = scalar_select %p664, %s35, 1
      %s666 = smul.addr %s665, 2
      %s667 = smul.addr %s666, 8
      %s668 = scalar_lea.vmem %s1, %s667
      %p669 = scmp.lt.s32.totalorder %s35, 1
      %s670 = scalar_select %p669, %s35, 1
      %p671 = scmp.lt.s32.totalorder %s36, 0
      %s672 = scalar_select %p671, %s36, 0
      %s673 = sadd.s32 %s672, %s670
      %s674 = smul.addr %s673, 8
      %s675 = scalar_lea.vmem %s20, %s674
      %p676 = scmp.eq.s32.totalorder %s36, 0
      // Predicated region
      $region101: #{co_attention_layer.2} parent=99 // pred_check
        %p677 = pneg %p676
      $region102: #{co_attention_layer.2} parent=99 // pred_check_branch
        %679 = sbr.rel (%p677) target = $region104
      $region103: #{co_attention_layer.2} parent=99 // pred_region
        %v680 = vld [vmem:[%s668] sm:$0xff]
        %v681 = vld [vmem:[%s668 + $0x8] sm:$0xff]
        %v682 = vld [vmem:[%s4] sm:$0x1]
        %v683 = vld [vmem:[%s5] sm:$0x1]
        %vm684 = vcmask 261120
        %v685 = vsel %vm684, %v680, 0.0
        %686 = vadd.xlane.f32.xlu0 %v685
        %v687 = vpop.xlane.xlu0 %686
        %v688 = vsel %vm684, %v681, 0.0
        %689 = vadd.xlane.f32.xlu0 %v688
        %v690 = vpop.xlane.xlu0 %689
        %v691 = vrcp.pop 32.0
        %v692 = vmul.f32 32.0, %v691
        %v693 = vsub.f32 1.0, %v692
        %v694 = vmul.f32 %v691, %v693
        %v695 = vadd.f32 %v691, %v694
        %vm696 = vweird.f32 %v691
        %v697 = vsel %vm696, %v691, %v695
        %v698 = vmul.f32 %v687, %v697
        %v699 = vmul.f32 %v690, %v697
        %v700 = vsub.f32 %v680, %v698
        %v701 = vsub.f32 %v681, %v699
        %v702 = vmul.f32 %v700, %v700
        %v703 = vmul.f32 %v701, %v701
        %v704 = vsel %vm684, %v702, 0.0
        %705 = vadd.xlane.f32.xlu0 %v704
        %v706 = vpop.xlane.xlu0 %705
        %v707 = vsel %vm684, %v703, 0.0
        %708 = vadd.xlane.f32.xlu0 %v707
        %v709 = vpop.xlane.xlu0 %708
        %v710 = vmul.f32 %v706, %v697
        %v711 = vmul.f32 %v709, %v697
        %v712 = vadd.f32 %v710, 1e-05
        %v713 = vadd.f32 %v711, 1e-05
        %v714 = vrsqrt.pop %v712
        %v715 = vmul.f32 %v714, %v712
        %v716 = vmul.f32 %v715, %v714
        %v717 = vmul.f32 0.5, %v716
        %v718 = vsub.f32 1.5, %v717
        %v719 = vmul.f32 %v714, %v718
        %vm720 = vweird.f32 %v712
        %vm721 = vweird.f32 %v714
        %vm722 = vmor %vm720, %vm721
        %v723 = vsel %vm722, %v714, %v719
        %v724 = vrsqrt.pop %v713
        %v725 = vmul.f32 %v724, %v713
        %v726 = vmul.f32 %v725, %v724
        %v727 = vmul.f32 0.5, %v726
        %v728 = vsub.f32 1.5, %v727
        %v729 = vmul.f32 %v724, %v728
        %vm730 = vweird.f32 %v713
        %vm731 = vweird.f32 %v724
        %vm732 = vmor %vm730, %vm731
        %v733 = vsel %vm732, %v724, %v729
        %v734 = vmul.f32 %v700, %v723
        %v735 = vmul.f32 %v701, %v733
        %v737 = vperm.slane %v682, 0
        %v739 = vmul.f32 %v734, %v737
        %v740 = vmul.f32 %v735, %v737
        %v742 = vperm.slane %v683, 0
        %v744 = vadd.f32 %v739, %v742
        %v745 = vadd.f32 %v740, %v742
        %v746 = vld [vmem:[%s8] sm:$0xff]
        %v747 = vld [vmem:[%s8 + $0x8] sm:$0xff]
        %v748 = vld [vmem:[%s8 + $0x10] sm:$0xff]
        %v749 = vld [vmem:[%s8 + $0x18] sm:$0xff]
        %v750 = vld [vmem:[%s9] sm:$0x1]
        %v752 = vperm.slane %v750, 0
        %v755 = vsel %vm684, %v744, 0
        %v758 = vsel %vm684, %v745, 0
        %760 = vmatpush.msra.mxu0 0.0
        %761 = vmatpush.msra.mxu0 0.0
        %762 = vmatpush.msra.mxu0 0.0
        %763 = vmatpush.msra.mxu0 0.0
        %764 = vmatpush.msra.mxu0 0.0
        %765 = vmatpush.msra.mxu0 0.0
        %766 = vmatpush.msra.mxu0 0.0
        %767 = vmatpush.msra.mxu0 0.0
        %768 = vmatpush.msra.mxu0 0.0
        %769 = vmatpush.msra.mxu0 0.0
        %770 = vmatpush.msra.mxu0 0.0
        %771 = vmatpush.msra.mxu0 0.0
        %772 = vmatpush.msra.mxu0 %v749
        %773 = vmatpush.msra.mxu0 %v748
        %774 = vmatpush.msra.mxu0 %v747
        %775 = vmatpush.msra.mxu0 %v746
        %776 = vmatmul.f32.gmra.mxu0 %v755
        %v777 = vpop.f32.mrf.mxu0
        %v778 = vadd.f32 %v752, %v777
        %779 = vmatmul.f32.gmra.mxu0 %v758
        %v780 = vpop.f32.mrf.mxu0
        %v781 = vadd.f32 %v752, %v780
        %782 = vdwg.mxu0
        %v783 = vld [vmem:[%s10] sm:$0xff]
        %v784 = vld [vmem:[%s10 + $0x8] sm:$0xff]
        %v785 = vld [vmem:[%s10 + $0x10] sm:$0xff]
        %v786 = vld [vmem:[%s10 + $0x18] sm:$0xff]
        %v787 = vld [vmem:[%s11] sm:$0x1]
        %v789 = vperm.slane %v787, 0
        %791 = vmatpush.msra.mxu0 0.0
        %792 = vmatpush.msra.mxu0 0.0
        %793 = vmatpush.msra.mxu0 0.0
        %794 = vmatpush.msra.mxu0 0.0
        %795 = vmatpush.msra.mxu0 0.0
        %796 = vmatpush.msra.mxu0 0.0
        %797 = vmatpush.msra.mxu0 0.0
        %798 = vmatpush.msra.mxu0 0.0
        %799 = vmatpush.msra.mxu0 0.0
        %800 = vmatpush.msra.mxu0 0.0
        %801 = vmatpush.msra.mxu0 0.0
        %802 = vmatpush.msra.mxu0 0.0
        %803 = vmatpush.msra.mxu0 %v786
        %804 = vmatpush.msra.mxu0 %v785
        %805 = vmatpush.msra.mxu0 %v784
        %806 = vmatpush.msra.mxu0 %v783
        %807 = vmatmul.f32.gmra.mxu0 %v755
        %v808 = vpop.f32.mrf.mxu0
        %v809 = vadd.f32 %v789, %v808
        %810 = vmatmul.f32.gmra.mxu0 %v758
        %v811 = vpop.f32.mrf.mxu0
        %v812 = vadd.f32 %v789, %v811
        %813 = vdwg.mxu0
        %vm814 = vcmask 64512
        %815 = vst.msk [vmem:[#allocation2] sm:$0xff] %vm814, %v778
        %816 = vst.msk [vmem:[#allocation2 + $0x8] sm:$0xff] %vm814, %v781
        %817 = vst.msk [vmem:[#allocation3] sm:$0xff] %vm814, %v809
        %818 = vst.msk [vmem:[#allocation3 + $0x8] sm:$0xff] %vm814, %v812
        %821 = vrot.lane.b32.xlu0 %v778, 120
        %v822 = vpop.permute.xlu0 %821
        %823 = vrot.lane.b32.xlu0 %v781, 120
        %v824 = vpop.permute.xlu0 %823
        %s827 = scalar_lea.vmem [#allocation2], 16
        %828 = vst.msk [vmem:[%s827] sm:$0xff] %vm814, %v822
        %829 = vst.msk [vmem:[%s827 + $0x8] sm:$0xff] %vm814, %v824
        %832 = vrot.lane.b32.xlu0 %v809, 120
        %v833 = vpop.permute.xlu0 %832
        %834 = vrot.lane.b32.xlu0 %v812, 120
        %v835 = vpop.permute.xlu0 %834
        %s838 = scalar_lea.vmem [#allocation3], 16
        %839 = vst.msk [vmem:[%s838] sm:$0xff] %vm814, %v833
        %840 = vst.msk [vmem:[%s838 + $0x8] sm:$0xff] %vm814, %v835
        %841 = vrot.lane.b32.xlu0 %v778, 112
        %v842 = vpop.permute.xlu0 %841
        %843 = vrot.lane.b32.xlu0 %v781, 112
        %v844 = vpop.permute.xlu0 %843
        %s847 = scalar_lea.vmem [#allocation2], 32
        %848 = vst.msk [vmem:[%s847] sm:$0xff] %vm814, %v842
        %849 = vst.msk [vmem:[%s847 + $0x8] sm:$0xff] %vm814, %v844
        %850 = vrot.lane.b32.xlu0 %v809, 112
        %v851 = vpop.permute.xlu0 %850
        %852 = vrot.lane.b32.xlu0 %v812, 112
        %v853 = vpop.permute.xlu0 %852
        %s856 = scalar_lea.vmem [#allocation3], 32
        %857 = vst.msk [vmem:[%s856] sm:$0xff] %vm814, %v851
        %858 = vst.msk [vmem:[%s856 + $0x8] sm:$0xff] %vm814, %v853
        %859 = vrot.lane.b32.xlu0 %v778, 104
        %v860 = vpop.permute.xlu0 %859
        %861 = vrot.lane.b32.xlu0 %v781, 104
        %v862 = vpop.permute.xlu0 %861
        %s865 = scalar_lea.vmem [#allocation2], 48
        %866 = vst.msk [vmem:[%s865] sm:$0xff] %vm814, %v860
        %867 = vst.msk [vmem:[%s865 + $0x8] sm:$0xff] %vm814, %v862
        %868 = vrot.lane.b32.xlu0 %v809, 104
        %v869 = vpop.permute.xlu0 %868
        %870 = vrot.lane.b32.xlu0 %v812, 104
        %v871 = vpop.permute.xlu0 %870
        %s874 = scalar_lea.vmem [#allocation3], 48
        %875 = vst.msk [vmem:[%s874] sm:$0xff] %vm814, %v869
        %876 = vst.msk [vmem:[%s874 + $0x8] sm:$0xff] %vm814, %v871
      $region104: #{co_attention_layer.2} parent=99 // pred_fallthru
        _
      %v877 = vld [vmem:[%s663] sm:$0xff]
      %v878 = vld [vmem:[%s2] sm:$0x1]
      %v879 = vld [vmem:[%s3] sm:$0x1]
      %vm880 = vcmask 261120
      %v881 = vsel %vm880, %v877, 0.0
      %882 = vadd.xlane.f32.xlu0 %v881
      %v883 = vpop.xlane.xlu0 %882
      %v884 = vrcp.pop 32.0
      %v885 = vmul.f32 32.0, %v884
      %v886 = vsub.f32 1.0, %v885
      %v887 = vmul.f32 %v884, %v886
      %v888 = vadd.f32 %v884, %v887
      %vm889 = vweird.f32 %v884
      %v890 = vsel %vm889, %v884, %v888
      %v891 = vmul.f32 %v883, %v890
      %v892 = vsub.f32 %v877, %v891
      %v893 = vmul.f32 %v892, %v892
      %v894 = vsel %vm880, %v893, 0.0
      %895 = vadd.xlane.f32.xlu0 %v894
      %v896 = vpop.xlane.xlu0 %895
      %v897 = vmul.f32 %v896, %v890
      %v898 = vadd.f32 %v897, 1e-05
      %v899 = vrsqrt.pop %v898
      %v900 = vmul.f32 %v899, %v898
      %v901 = vmul.f32 %v900, %v899
      %v902 = vmul.f32 0.5, %v901
      %v903 = vsub.f32 1.5, %v902
      %v904 = vmul.f32 %v899, %v903
      %vm905 = vweird.f32 %v898
      %vm906 = vweird.f32 %v899
      %vm907 = vmor %vm905, %vm906
      %v908 = vsel %vm907, %v899, %v904
      %v909 = vmul.f32 %v892, %v908
      %v911 = vperm.slane %v878, 0
      %v913 = vmul.f32 %v909, %v911
      %v915 = vperm.slane %v879, 0
      %v917 = vadd.f32 %v913, %v915
      %v918 = vld [vmem:[%s6] sm:$0xff]
      %v919 = vld [vmem:[%s6 + $0x8] sm:$0xff]
      %v920 = vld [vmem:[%s6 + $0x10] sm:$0xff]
      %v921 = vld [vmem:[%s6 + $0x18] sm:$0xff]
      %v922 = vld [vmem:[%s7] sm:$0x1]
      %v924 = vperm.slane %v922, 0
      %v927 = vsel %vm880, %v917, 0
      %929 = vmatpush.msra.mxu0 0.0
      %930 = vmatpush.msra.mxu0 0.0
      %931 = vmatpush.msra.mxu0 0.0
      %932 = vmatpush.msra.mxu0 0.0
      %933 = vmatpush.msra.mxu0 0.0
      %934 = vmatpush.msra.mxu0 0.0
      %935 = vmatpush.msra.mxu0 0.0
      %936 = vmatpush.msra.mxu0 0.0
      %937 = vmatpush.msra.mxu0 0.0
      %938 = vmatpush.msra.mxu0 0.0
      %939 = vmatpush.msra.mxu0 0.0
      %940 = vmatpush.msra.mxu0 0.0
      %941 = vmatpush.msra.mxu0 %v921
      %942 = vmatpush.msra.mxu0 %v920
      %943 = vmatpush.msra.mxu0 %v919
      %944 = vmatpush.msra.mxu0 %v918
      %945 = vmatmul.f32.gmra.mxu0 %v927
      %v946 = vpop.f32.mrf.mxu0
      %v947 = vadd.f32 %v924, %v946
      %948 = vdwg.mxu0
      %950 = vrot.lane.b32.xlu0 %v947, 120
      %v951 = vpop.permute.xlu0 %950
      %952 = vrot.lane.b32.xlu0 %v947, 112
      %v953 = vpop.permute.xlu0 %952
      %954 = vrot.lane.b32.xlu0 %v947, 104
      %v955 = vpop.permute.xlu0 %954
      %v956 = vld [vmem:[#allocation2] sm:$0xff]
      %v957 = vld [vmem:[#allocation2 + $0x8] sm:$0xff]
      %v958 = vld [vmem:[#allocation2 + $0x10] sm:$0xff]
      %v959 = vld [vmem:[#allocation2 + $0x18] sm:$0xff]
      %v960 = vld [vmem:[#allocation2 + $0x20] sm:$0xff]
      %v961 = vld [vmem:[#allocation2 + $0x28] sm:$0xff]
      %v962 = vld [vmem:[#allocation2 + $0x30] sm:$0xff]
      %v963 = vld [vmem:[#allocation2 + $0x38] sm:$0xff]
      %v964 = vld [vmem:[#allocation3] sm:$0xff]
      %v965 = vld [vmem:[#allocation3 + $0x8] sm:$0xff]
      %v966 = vld [vmem:[#allocation3 + $0x10] sm:$0xff]
      %v967 = vld [vmem:[#allocation3 + $0x18] sm:$0xff]
      %v968 = vld [vmem:[#allocation3 + $0x20] sm:$0xff]
      %v969 = vld [vmem:[#allocation3 + $0x28] sm:$0xff]
      %v970 = vld [vmem:[#allocation3 + $0x30] sm:$0xff]
      %v971 = vld [vmem:[#allocation3 + $0x38] sm:$0xff]
      %vm972 = vcmask 64512
      %v973 = vsel %vm972, %v947, 0
      %v976 = vsel %vm972, %v956, 0
      %v979 = vsel %vm972, %v957, 0
      %981 = vmatpush.xpose.msra.mxu0 0.0
      %982 = vmatpush.xpose.msra.mxu0 0.0
      %983 = vmatpush.xpose.msra.mxu0 0.0
      %984 = vmatpush.xpose.msra.mxu0 0.0
      %985 = vmatpush.xpose.msra.mxu0 0.0
      %986 = vmatpush.xpose.msra.mxu0 0.0
      %987 = vmatpush.xpose.msra.mxu0 0.0
      %988 = vmatpush.xpose.msra.mxu0 0.0
      %989 = vmatpush.xpose.msra.mxu0 0.0
      %990 = vmatpush.xpose.msra.mxu0 0.0
      %991 = vmatpush.xpose.msra.mxu0 0.0
      %992 = vmatpush.xpose.msra.mxu0 0.0
      %993 = vmatpush.xpose.msra.mxu0 0.0
      %994 = vmatpush.xpose.msra.mxu0 0.0
      %995 = vmatpush.xpose.msra.mxu0 %v979
      %996 = vmatpush.xpose.msra.mxu0 %v976
      %997 = vmatmul.f32.gmra.mxu0 %v973
      %v998 = vpop.f32.mrf.mxu0
      %v999 = vadd.f32 0.0, %v998
      %1000 = vdwg.mxu0
      %v1001 = vsel %vm972, %v951, 0
      %v1004 = vsel %vm972, %v958, 0
      %v1007 = vsel %vm972, %v959, 0
      %1009 = vmatpush.xpose.msra.mxu0 0.0
      %1010 = vmatpush.xpose.msra.mxu0 0.0
      %1011 = vmatpush.xpose.msra.mxu0 0.0
      %1012 = vmatpush.xpose.msra.mxu0 0.0
      %1013 = vmatpush.xpose.msra.mxu0 0.0
      %1014 = vmatpush.xpose.msra.mxu0 0.0
      %1015 = vmatpush.xpose.msra.mxu0 0.0
      %1016 = vmatpush.xpose.msra.mxu0 0.0
      %1017 = vmatpush.xpose.msra.mxu0 0.0
      %1018 = vmatpush.xpose.msra.mxu0 0.0
      %1019 = vmatpush.xpose.msra.mxu0 0.0
      %1020 = vmatpush.xpose.msra.mxu0 0.0
      %1021 = vmatpush.xpose.msra.mxu0 0.0
      %1022 = vmatpush.xpose.msra.mxu0 0.0
      %1023 = vmatpush.xpose.msra.mxu0 %v1007
      %1024 = vmatpush.xpose.msra.mxu0 %v1004
      %1025 = vmatmul.f32.gmra.mxu0 %v1001
      %v1026 = vpop.f32.mrf.mxu0
      %v1027 = vadd.f32 0.0, %v1026
      %1028 = vdwg.mxu0
      %v1029 = vsel %vm972, %v953, 0
      %v1032 = vsel %vm972, %v960, 0
      %v1035 = vsel %vm972, %v961, 0
      %1037 = vmatpush.xpose.msra.mxu0 0.0
      %1038 = vmatpush.xpose.msra.mxu0 0.0
      %1039 = vmatpush.xpose.msra.mxu0 0.0
      %1040 = vmatpush.xpose.msra.mxu0 0.0
      %1041 = vmatpush.xpose.msra.mxu0 0.0
      %1042 = vmatpush.xpose.msra.mxu0 0.0
      %1043 = vmatpush.xpose.msra.mxu0 0.0
      %1044 = vmatpush.xpose.msra.mxu0 0.0
      %1045 = vmatpush.xpose.msra.mxu0 0.0
      %1046 = vmatpush.xpose.msra.mxu0 0.0
      %1047 = vmatpush.xpose.msra.mxu0 0.0
      %1048 = vmatpush.xpose.msra.mxu0 0.0
      %1049 = vmatpush.xpose.msra.mxu0 0.0
      %1050 = vmatpush.xpose.msra.mxu0 0.0
      %1051 = vmatpush.xpose.msra.mxu0 %v1035
      %1052 = vmatpush.xpose.msra.mxu0 %v1032
      %1053 = vmatmul.f32.gmra.mxu0 %v1029
      %v1054 = vpop.f32.mrf.mxu0
      %v1055 = vadd.f32 0.0, %v1054
      %1056 = vdwg.mxu0
      %v1057 = vsel %vm972, %v955, 0
      %v1060 = vsel %vm972, %v962, 0
      %v1063 = vsel %vm972, %v963, 0
      %1065 = vmatpush.xpose.msra.mxu0 0.0
      %1066 = vmatpush.xpose.msra.mxu0 0.0
      %1067 = vmatpush.xpose.msra.mxu0 0.0
      %1068 = vmatpush.xpose.msra.mxu0 0.0
      %1069 = vmatpush.xpose.msra.mxu0 0.0
      %1070 = vmatpush.xpose.msra.mxu0 0.0
      %1071 = vmatpush.xpose.msra.mxu0 0.0
      %1072 = vmatpush.xpose.msra.mxu0 0.0
      %1073 = vmatpush.xpose.msra.mxu0 0.0
      %1074 = vmatpush.xpose.msra.mxu0 0.0
      %1075 = vmatpush.xpose.msra.mxu0 0.0
      %1076 = vmatpush.xpose.msra.mxu0 0.0
      %1077 = vmatpush.xpose.msra.mxu0 0.0
      %1078 = vmatpush.xpose.msra.mxu0 0.0
      %1079 = vmatpush.xpose.msra.mxu0 %v1063
      %1080 = vmatpush.xpose.msra.mxu0 %v1060
      %1081 = vmatmul.f32.gmra.mxu0 %v1057
      %v1082 = vpop.f32.mrf.mxu0
      %v1083 = vadd.f32 0.0, %v1082
      %1084 = vdwg.mxu0
      %vm1085 = vcmask 130048
      %v1086 = vsel %vm1085, %v999, -inf
      %1087 = vmax.xlane.f32.xlu0 %v1086
      %v1088 = vpop.xlane.xlu0 %1087
      %v1089 = vsel %vm1085, %v1027, -inf
      %1090 = vmax.xlane.f32.xlu0 %v1089
      %v1091 = vpop.xlane.xlu0 %1090
      %v1092 = vsel %vm1085, %v1055, -inf
      %1093 = vmax.xlane.f32.xlu0 %v1092
      %v1094 = vpop.xlane.xlu0 %1093
      %v1095 = vsel %vm1085, %v1083, -inf
      %1096 = vmax.xlane.f32.xlu0 %v1095
      %v1097 = vpop.xlane.xlu0 %1096
      %v1098 = vsub.f32 %v999, %v1088
      %v1099 = vsub.f32 %v1027, %v1091
      %v1100 = vsub.f32 %v1055, %v1094
      %v1101 = vsub.f32 %v1083, %v1097
      %v1102 = vmul.f32 %v1098, 1.442695
      %v1103 = vpow.pop %v1102
      %v1104 = vmul.f32 %v1099, 1.442695
      %v1105 = vpow.pop %v1104
      %v1106 = vmul.f32 %v1100, 1.442695
      %v1107 = vpow.pop %v1106
      %v1108 = vmul.f32 %v1101, 1.442695
      %v1109 = vpow.pop %v1108
      %v1110 = vsel %vm1085, %v1103, 0.0
      %1111 = vadd.xlane.f32.xlu0 %v1110
      %v1112 = vpop.xlane.xlu0 %1111
      %v1113 = vsel %vm1085, %v1105, 0.0
      %1114 = vadd.xlane.f32.xlu0 %v1113
      %v1115 = vpop.xlane.xlu0 %1114
      %v1116 = vsel %vm1085, %v1107, 0.0
      %1117 = vadd.xlane.f32.xlu0 %v1116
      %v1118 = vpop.xlane.xlu0 %1117
      %v1119 = vsel %vm1085, %v1109, 0.0
      %1120 = vadd.xlane.f32.xlu0 %v1119
      %v1121 = vpop.xlane.xlu0 %1120
      %v1123 = vsel %vm1085, %v1103, 0
      %1125 = vmatpush.msra.mxu0 0.0
      %1126 = vmatpush.msra.mxu0 0.0
      %1127 = vmatpush.msra.mxu0 0.0
      %1128 = vmatpush.msra.mxu0 0.0
      %1129 = vmatpush.msra.mxu0 0.0
      %1130 = vmatpush.msra.mxu0 0.0
      %1131 = vmatpush.msra.mxu0 0.0
      %1132 = vmatpush.msra.mxu0 0.0
      %1133 = vmatpush.msra.mxu0 0.0
      %1134 = vmatpush.msra.mxu0 0.0
      %1135 = vmatpush.msra.mxu0 0.0
      %1136 = vmatpush.msra.mxu0 0.0
      %1137 = vmatpush.msra.mxu0 0.0
      %1138 = vmatpush.msra.mxu0 0.0
      %1139 = vmatpush.msra.mxu0 %v965
      %1140 = vmatpush.msra.mxu0 %v964
      %1141 = vmatmul.f32.gmra.mxu0 %v1123
      %v1142 = vpop.f32.mrf.mxu0
      %v1143 = vadd.f32 0.0, %v1142
      %1144 = vdwg.mxu0
      %v1146 = vsel %vm1085, %v1105, 0
      %1148 = vmatpush.msra.mxu0 0.0
      %1149 = vmatpush.msra.mxu0 0.0
      %1150 = vmatpush.msra.mxu0 0.0
      %1151 = vmatpush.msra.mxu0 0.0
      %1152 = vmatpush.msra.mxu0 0.0
      %1153 = vmatpush.msra.mxu0 0.0
      %1154 = vmatpush.msra.mxu0 0.0
      %1155 = vmatpush.msra.mxu0 0.0
      %1156 = vmatpush.msra.mxu0 0.0
      %1157 = vmatpush.msra.mxu0 0.0
      %1158 = vmatpush.msra.mxu0 0.0
      %1159 = vmatpush.msra.mxu0 0.0
      %1160 = vmatpush.msra.mxu0 0.0
      %1161 = vmatpush.msra.mxu0 0.0
      %1162 = vmatpush.msra.mxu0 %v967
      %1163 = vmatpush.msra.mxu0 %v966
      %1164 = vmatmul.f32.gmra.mxu0 %v1146
      %v1165 = vpop.f32.mrf.mxu0
      %v1166 = vadd.f32 0.0, %v1165
      %1167 = vdwg.mxu0
      %v1169 = vsel %vm1085, %v1107, 0
      %1171 = vmatpush.msra.mxu0 0.0
      %1172 = vmatpush.msra.mxu0 0.0
      %1173 = vmatpush.msra.mxu0 0.0
      %1174 = vmatpush.msra.mxu0 0.0
      %1175 = vmatpush.msra.mxu0 0.0
      %1176 = vmatpush.msra.mxu0 0.0
      %1177 = vmatpush.msra.mxu0 0.0
      %1178 = vmatpush.msra.mxu0 0.0
      %1179 = vmatpush.msra.mxu0 0.0
      %1180 = vmatpush.msra.mxu0 0.0
      %1181 = vmatpush.msra.mxu0 0.0
      %1182 = vmatpush.msra.mxu0 0.0
      %1183 = vmatpush.msra.mxu0 0.0
      %1184 = vmatpush.msra.mxu0 0.0
      %1185 = vmatpush.msra.mxu0 %v969
      %1186 = vmatpush.msra.mxu0 %v968
      %1187 = vmatmul.f32.gmra.mxu0 %v1169
      %v1188 = vpop.f32.mrf.mxu0
      %v1189 = vadd.f32 0.0, %v1188
      %1190 = vdwg.mxu0
      %v1192 = vsel %vm1085, %v1109, 0
      %1194 = vmatpush.msra.mxu0 0.0
      %1195 = vmatpush.msra.mxu0 0.0
      %1196 = vmatpush.msra.mxu0 0.0
      %1197 = vmatpush.msra.mxu0 0.0
      %1198 = vmatpush.msra.mxu0 0.0
      %1199 = vmatpush.msra.mxu0 0.0
      %1200 = vmatpush.msra.mxu0 0.0
      %1201 = vmatpush.msra.mxu0 0.0
      %1202 = vmatpush.msra.mxu0 0.0
      %1203 = vmatpush.msra.mxu0 0.0
      %1204 = vmatpush.msra.mxu0 0.0
      %1205 = vmatpush.msra.mxu0 0.0
      %1206 = vmatpush.msra.mxu0 0.0
      %1207 = vmatpush.msra.mxu0 0.0
      %1208 = vmatpush.msra.mxu0 %v971
      %1209 = vmatpush.msra.mxu0 %v970
      %1210 = vmatmul.f32.gmra.mxu0 %v1192
      %v1211 = vpop.f32.mrf.mxu0
      %v1212 = vadd.f32 0.0, %v1211
      %1213 = vdwg.mxu0
      %v1214 = vrcp.pop %v1112
      %v1215 = vmul.f32 %v1112, %v1214
      %v1216 = vsub.f32 1.0, %v1215
      %v1217 = vmul.f32 %v1214, %v1216
      %v1218 = vadd.f32 %v1214, %v1217
      %vm1219 = vweird.f32 %v1112
      %vm1220 = vweird.f32 %v1214
      %vm1221 = vmor %vm1219, %vm1220
      %v1222 = vsel %vm1221, %v1214, %v1218
      %v1223 = vand.u32 2147483647, %v1112
      %vm1224 = vcmp.eq.f32.partialorder %v1223, 8.507059e+37
      %v1225 = vand.u32 %v1112, 2147483648
      %v1226 = vor.u32 1.1754944e-38, %v1225
      %v1227 = vsel %vm1224, %v1226, %v1222
      %v1228 = vmul.f32 1.0, %v1227
      %v1229 = vrcp.pop %v1115
      %v1230 = vmul.f32 %v1115, %v1229
      %v1231 = vsub.f32 1.0, %v1230
      %v1232 = vmul.f32 %v1229, %v1231
      %v1233 = vadd.f32 %v1229, %v1232
      %vm1234 = vweird.f32 %v1115
      %vm1235 = vweird.f32 %v1229
      %vm1236 = vmor %vm1234, %vm1235
      %v1237 = vsel %vm1236, %v1229, %v1233
      %v1238 = vand.u32 2147483647, %v1115
      %vm1239 = vcmp.eq.f32.partialorder %v1238, 8.507059e+37
      %v1240 = vand.u32 %v1115, 2147483648
      %v1241 = vor.u32 1.1754944e-38, %v1240
      %v1242 = vsel %vm1239, %v1241, %v1237
      %v1243 = vmul.f32 1.0, %v1242
      %v1244 = vrcp.pop %v1118
      %v1245 = vmul.f32 %v1118, %v1244
      %v1246 = vsub.f32 1.0, %v1245
      %v1247 = vmul.f32 %v1244, %v1246
      %v1248 = vadd.f32 %v1244, %v1247
      %vm1249 = vweird.f32 %v1118
      %vm1250 = vweird.f32 %v1244
      %vm1251 = vmor %vm1249, %vm1250
      %v1252 = vsel %vm1251, %v1244, %v1248
      %v1253 = vand.u32 2147483647, %v1118
      %vm1254 = vcmp.eq.f32.partialorder %v1253, 8.507059e+37
      %v1255 = vand.u32 %v1118, 2147483648
      %v1256 = vor.u32 1.1754944e-38, %v1255
      %v1257 = vsel %vm1254, %v1256, %v1252
      %v1258 = vmul.f32 1.0, %v1257
      %v1259 = vrcp.pop %v1121
      %v1260 = vmul.f32 %v1121, %v1259
      %v1261 = vsub.f32 1.0, %v1260
      %v1262 = vmul.f32 %v1259, %v1261
      %v1263 = vadd.f32 %v1259, %v1262
      %vm1264 = vweird.f32 %v1121
      %vm1265 = vweird.f32 %v1259
      %vm1266 = vmor %vm1264, %vm1265
      %v1267 = vsel %vm1266, %v1259, %v1263
      %v1268 = vand.u32 2147483647, %v1121
      %vm1269 = vcmp.eq.f32.partialorder %v1268, 8.507059e+37
      %v1270 = vand.u32 %v1121, 2147483648
      %v1271 = vor.u32 1.1754944e-38, %v1270
      %v1272 = vsel %vm1269, %v1271, %v1267
      %v1273 = vmul.f32 1.0, %v1272
      %v1274 = vmul.f32 %v1143, %v1228
      %v1275 = vmul.f32 %v1166, %v1243
      %v1276 = vmul.f32 %v1189, %v1258
      %v1277 = vmul.f32 %v1212, %v1273
      %v1278 = vld [vmem:[%s12] sm:$0xff]
      %v1279 = vld [vmem:[%s12 + $0x8] sm:$0xff]
      %v1280 = vld [vmem:[%s12 + $0x10] sm:$0xff]
      %v1281 = vld [vmem:[%s12 + $0x18] sm:$0xff]
      %v1283 = vsel %vm972, %v1274, 0
      %1285 = vmatpush.msra.mxu0 0.0
      %1286 = vmatpush.msra.mxu0 0.0
      %1287 = vmatpush.msra.mxu0 0.0
      %1288 = vmatpush.msra.mxu0 0.0
      %1289 = vmatpush.msra.mxu0 0.0
      %1290 = vmatpush.msra.mxu0 0.0
      %1291 = vmatpush.msra.mxu0 0.0
      %1292 = vmatpush.msra.mxu0 0.0
      %1293 = vmatpush.msra.mxu0 0.0
      %1294 = vmatpush.msra.mxu0 0.0
      %1295 = vmatpush.msra.mxu0 0.0
      %1296 = vmatpush.msra.mxu0 0.0
      %1297 = vmatpush.msra.mxu0 0.0
      %1298 = vmatpush.msra.mxu0 0.0
      %1299 = vmatpush.msra.mxu0 0.0
      %1300 = vmatpush.msra.mxu0 %v1278
      %1301 = vmatmul.f32.gmra.mxu0 %v1283
      %v1302 = vpop.f32.mrf.mxu0
      %v1303 = vadd.f32 0.0, %v1302
      %1304 = vdwg.mxu0
      %v1306 = vsel %vm972, %v1275, 0
      %1308 = vmatpush.msra.mxu0 0.0
      %1309 = vmatpush.msra.mxu0 0.0
      %1310 = vmatpush.msra.mxu0 0.0
      %1311 = vmatpush.msra.mxu0 0.0
      %1312 = vmatpush.msra.mxu0 0.0
      %1313 = vmatpush.msra.mxu0 0.0
      %1314 = vmatpush.msra.mxu0 0.0
      %1315 = vmatpush.msra.mxu0 0.0
      %1316 = vmatpush.msra.mxu0 0.0
      %1317 = vmatpush.msra.mxu0 0.0
      %1318 = vmatpush.msra.mxu0 0.0
      %1319 = vmatpush.msra.mxu0 0.0
      %1320 = vmatpush.msra.mxu0 0.0
      %1321 = vmatpush.msra.mxu0 0.0
      %1322 = vmatpush.msra.mxu0 0.0
      %1323 = vmatpush.msra.mxu0 %v1279
      %1324 = vmatmul.f32.gmra.mxu0 %v1306
      %v1325 = vpop.f32.mrf.mxu0
      %v1326 = vadd.f32 0.0, %v1325
      %1327 = vdwg.mxu0
      %v1329 = vsel %vm972, %v1276, 0
      %1331 = vmatpush.msra.mxu0 0.0
      %1332 = vmatpush.msra.mxu0 0.0
      %1333 = vmatpush.msra.mxu0 0.0
      %1334 = vmatpush.msra.mxu0 0.0
      %1335 = vmatpush.msra.mxu0 0.0
      %1336 = vmatpush.msra.mxu0 0.0
      %1337 = vmatpush.msra.mxu0 0.0
      %1338 = vmatpush.msra.mxu0 0.0
      %1339 = vmatpush.msra.mxu0 0.0
      %1340 = vmatpush.msra.mxu0 0.0
      %1341 = vmatpush.msra.mxu0 0.0
      %1342 = vmatpush.msra.mxu0 0.0
      %1343 = vmatpush.msra.mxu0 0.0
      %1344 = vmatpush.msra.mxu0 0.0
      %1345 = vmatpush.msra.mxu0 0.0
      %1346 = vmatpush.msra.mxu0 %v1280
      %1347 = vmatmul.f32.gmra.mxu0 %v1329
      %v1348 = vpop.f32.mrf.mxu0
      %v1349 = vadd.f32 0.0, %v1348
      %1350 = vdwg.mxu0
      %v1352 = vsel %vm972, %v1277, 0
      %1354 = vmatpush.msra.mxu0 0.0
      %1355 = vmatpush.msra.mxu0 0.0
      %1356 = vmatpush.msra.mxu0 0.0
      %1357 = vmatpush.msra.mxu0 0.0
      %1358 = vmatpush.msra.mxu0 0.0
      %1359 = vmatpush.msra.mxu0 0.0
      %1360 = vmatpush.msra.mxu0 0.0
      %1361 = vmatpush.msra.mxu0 0.0
      %1362 = vmatpush.msra.mxu0 0.0
      %1363 = vmatpush.msra.mxu0 0.0
      %1364 = vmatpush.msra.mxu0 0.0
      %1365 = vmatpush.msra.mxu0 0.0
      %1366 = vmatpush.msra.mxu0 0.0
      %1367 = vmatpush.msra.mxu0 0.0
      %1368 = vmatpush.msra.mxu0 0.0
      %1369 = vmatpush.msra.mxu0 %v1281
      %1370 = vmatmul.f32.gmra.mxu0 %v1352
      %v1371 = vpop.f32.mrf.mxu0
      %v1372 = vadd.f32 0.0, %v1371
      %1373 = vdwg.mxu0
      %v1374 = vsel %vm880, %v1303, 0.0
      %v1375 = vsel %vm880, %v1326, 0.0
      %v1376 = vadd.f32 %v1374, %v1375
      %v1377 = vsel %vm880, %v1349, 0.0
      %v1378 = vadd.f32 %v1376, %v1377
      %v1379 = vsel %vm880, %v1372, 0.0
      %v1380 = vadd.f32 %v1378, %v1379
      %v1381 = vld [vmem:[%s13] sm:$0x1]
      %v1383 = vperm.slane %v1381, 0
      %v1385 = vadd.f32 %v1380, %v1383
      %v1386 = vadd.f32 %v1385, %v877
      %v1387 = vld [vmem:[%s14] sm:$0x1]
      %v1388 = vld [vmem:[%s15] sm:$0x1]
      %v1389 = vsel %vm880, %v1386, 0.0
      %1390 = vadd.xlane.f32.xlu0 %v1389
      %v1391 = vpop.xlane.xlu0 %1390
      %v1392 = vmul.f32 %v1391, %v890
      %v1393 = vsub.f32 %v1386, %v1392
      %v1394 = vmul.f32 %v1393, %v1393
      %v1395 = vsel %vm880, %v1394, 0.0
      %1396 = vadd.xlane.f32.xlu0 %v1395
      %v1397 = vpop.xlane.xlu0 %1396
      %v1398 = vmul.f32 %v1397, %v890
      %v1399 = vadd.f32 %v1398, 1e-05
      %v1400 = vrsqrt.pop %v1399
      %v1401 = vmul.f32 %v1400, %v1399
      %v1402 = vmul.f32 %v1401, %v1400
      %v1403 = vmul.f32 0.5, %v1402
      %v1404 = vsub.f32 1.5, %v1403
      %v1405 = vmul.f32 %v1400, %v1404
      %vm1406 = vweird.f32 %v1399
      %vm1407 = vweird.f32 %v1400
      %vm1408 = vmor %vm1406, %vm1407
      %v1409 = vsel %vm1408, %v1400, %v1405
      %v1410 = vmul.f32 %v1393, %v1409
      %v1412 = vperm.slane %v1387, 0
      %v1414 = vmul.f32 %v1410, %v1412
      %v1416 = vperm.slane %v1388, 0
      %v1418 = vadd.f32 %v1414, %v1416
      %v1419 = vld [vmem:[%s16] sm:$0xff]
      %v1420 = vld [vmem:[%s16 + $0x8] sm:$0xff]
      %v1421 = vld [vmem:[%s16 + $0x10] sm:$0xff]
      %v1422 = vld [vmem:[%s16 + $0x18] sm:$0xff]
      %v1423 = vld [vmem:[%s17] sm:$0x1]
      %v1425 = vperm.slane %v1423, 0
      %v1428 = vsel %vm880, %v1418, 0
      %1430 = vmatpush.msra.mxu0 0.0
      %1431 = vmatpush.msra.mxu0 0.0
      %1432 = vmatpush.msra.mxu0 0.0
      %1433 = vmatpush.msra.mxu0 0.0
      %1434 = vmatpush.msra.mxu0 0.0
      %1435 = vmatpush.msra.mxu0 0.0
      %1436 = vmatpush.msra.mxu0 0.0
      %1437 = vmatpush.msra.mxu0 0.0
      %1438 = vmatpush.msra.mxu0 0.0
      %1439 = vmatpush.msra.mxu0 0.0
      %1440 = vmatpush.msra.mxu0 0.0
      %1441 = vmatpush.msra.mxu0 0.0
      %1442 = vmatpush.msra.mxu0 %v1422
      %1443 = vmatpush.msra.mxu0 %v1421
      %1444 = vmatpush.msra.mxu0 %v1420
      %1445 = vmatpush.msra.mxu0 %v1419
      %1446 = vmatmul.f32.gmra.mxu0 %v1428
      %v1447 = vpop.f32.mrf.mxu0
      %v1448 = vadd.f32 %v1425, %v1447
      %1449 = vdwg.mxu0
      %v1450 = vmul.f32 %v1448, 0.5
      %v1451 = vmul.f32 %v1448, 0.70710677
      %v1452 = vmul.f32 %v1451, %v1451
      %v1453 = vmin.f32 16.0, %v1452
      %v1454 = vmul.f32 %v1453, 2.1237322e-06
      %v1455 = vadd.f32 %v1454, 0.00028619796
      %v1456 = vmul.f32 %v1453, %v1455
      %v1457 = vadd.f32 %v1456, 0.0036580483
      %v1458 = vmul.f32 %v1453, %v1457
      %v1459 = vadd.f32 %v1458, 0.05243302
      %v1460 = vmul.f32 %v1453, %v1459
      %v1461 = vadd.f32 %v1460, 0.18741608
      %v1462 = vmul.f32 %v1453, %v1461
      %v1463 = vadd.f32 %v1462, 1.1283791
      %v1464 = vmul.f32 %v1451, %v1463
      %v1465 = vmul.f32 %v1453, 3.8918573e-05
      %v1466 = vadd.f32 %v1465, 0.001143296
      %v1467 = vmul.f32 %v1453, %v1466
      %v1468 = vadd.f32 %v1467, 0.014752088
      %v1469 = vmul.f32 %v1453, %v1468
      %v1470 = vadd.f32 %v1469, 0.112945676
      %v1471 = vmul.f32 %v1453, %v1470
      %v1472 = vadd.f32 %v1471, 0.4994258
      %v1473 = vmul.f32 %v1453, %v1472
      %v1474 = vadd.f32 %v1473, 1.0
      %v1475 = vrcp.pop %v1474
      %v1476 = vmul.f32 %v1474, %v1475
      %v1477 = vsub.f32 1.0, %v1476
      %v1478 = vmul.f32 %v1475, %v1477
      %v1479 = vadd.f32 %v1475, %v1478
      %vm1480 = vweird.f32 %v1474
      %vm1481 = vweird.f32 %v1475
      %vm1482 = vmor %vm1480, %vm1481
      %v1483 = vsel %vm1482, %v1475, %v1479
      %v1484 = vand.u32 2147483647, %v1474
      %vm1485 = vcmp.eq.f32.partialorder %v1484, 8.507059e+37
      %v1486 = vand.u32 %v1474, 2147483648
      %v1487 = vor.u32 1.1754944e-38, %v1486
      %v1488 = vsel %vm1485, %v1487, %v1483
      %v1489 = vmul.f32 %v1464, %v1488
      %v1490 = vmin.f32 %v1489, 1.0
      %v1491 = vmax.f32 %v1490, -1.0
      %v1492 = vadd.f32 %v1491, 1.0
      %v1493 = vmul.f32 %v1450, %v1492
      %v1494 = vld [vmem:[%s18] sm:$0xff]
      %v1495 = vld [vmem:[%s18 + $0x8] sm:$0xff]
      %v1496 = vld [vmem:[%s18 + $0x10] sm:$0xff]
      %v1497 = vld [vmem:[%s18 + $0x18] sm:$0xff]
      %v1498 = vld [vmem:[%s18 + $0x20] sm:$0xff]
      %v1499 = vld [vmem:[%s18 + $0x28] sm:$0xff]
      %v1500 = vld [vmem:[%s18 + $0x30] sm:$0xff]
      %v1501 = vld [vmem:[%s18 + $0x38] sm:$0xff]
      %v1502 = vld [vmem:[%s19] sm:$0x1]
      %v1504 = vperm.slane %v1502, 0
      %vm1506 = vcmask 523264
      %v1508 = vsel %vm1506, %v1493, 0
      %1510 = vmatpush.msra.mxu0 0.0
      %1511 = vmatpush.msra.mxu0 0.0
      %1512 = vmatpush.msra.mxu0 0.0
      %1513 = vmatpush.msra.mxu0 0.0
      %1514 = vmatpush.msra.mxu0 0.0
      %1515 = vmatpush.msra.mxu0 0.0
      %1516 = vmatpush.msra.mxu0 0.0
      %1517 = vmatpush.msra.mxu0 0.0
      %1518 = vmatpush.msra.mxu0 %v1501
      %1519 = vmatpush.msra.mxu0 %v1500
      %1520 = vmatpush.msra.mxu0 %v1499
      %1521 = vmatpush.msra.mxu0 %v1498
      %1522 = vmatpush.msra.mxu0 %v1497
      %1523 = vmatpush.msra.mxu0 %v1496
      %1524 = vmatpush.msra.mxu0 %v1495
      %1525 = vmatpush.msra.mxu0 %v1494
      %1526 = vmatmul.f32.gmra.mxu0 %v1508
      %v1527 = vpop.f32.mrf.mxu0
      %v1528 = vadd.f32 %v1504, %v1527
      %1529 = vdwg.mxu0
      %v1530 = vmul.f32 %v1528, 0.5
      %v1531 = vmul.f32 %v1528, 0.70710677
      %v1532 = vmul.f32 %v1531, %v1531
      %v1533 = vmin.f32 16.0, %v1532
      %v1534 = vmul.f32 %v1533, 2.1237322e-06
      %v1535 = vadd.f32 %v1534, 0.00028619796
      %v1536 = vmul.f32 %v1533, %v1535
      %v1537 = vadd.f32 %v1536, 0.0036580483
      %v1538 = vmul.f32 %v1533, %v1537
      %v1539 = vadd.f32 %v1538, 0.05243302
      %v1540 = vmul.f32 %v1533, %v1539
      %v1541 = vadd.f32 %v1540, 0.18741608
      %v1542 = vmul.f32 %v1533, %v1541
      %v1543 = vadd.f32 %v1542, 1.1283791
      %v1544 = vmul.f32 %v1531, %v1543
      %v1545 = vmul.f32 %v1533, 3.8918573e-05
      %v1546 = vadd.f32 %v1545, 0.001143296
      %v1547 = vmul.f32 %v1533, %v1546
      %v1548 = vadd.f32 %v1547, 0.014752088
      %v1549 = vmul.f32 %v1533, %v1548
      %v1550 = vadd.f32 %v1549, 0.112945676
      %v1551 = vmul.f32 %v1533, %v1550
      %v1552 = vadd.f32 %v1551, 0.4994258
      %v1553 = vmul.f32 %v1533, %v1552
      %v1554 = vadd.f32 %v1553, 1.0
      %v1555 = vrcp.pop %v1554
      %v1556 = vmul.f32 %v1554, %v1555
      %v1557 = vsub.f32 1.0, %v1556
      %v1558 = vmul.f32 %v1555, %v1557
      %v1559 = vadd.f32 %v1555, %v1558
      %vm1560 = vweird.f32 %v1554
      %vm1561 = vweird.f32 %v1555
      %vm1562 = vmor %vm1560, %vm1561
      %v1563 = vsel %vm1562, %v1555, %v1559
      %v1564 = vand.u32 2147483647, %v1554
      %vm1565 = vcmp.eq.f32.partialorder %v1564, 8.507059e+37
      %v1566 = vand.u32 %v1554, 2147483648
      %v1567 = vor.u32 1.1754944e-38, %v1566
      %v1568 = vsel %vm1565, %v1567, %v1563
      %v1569 = vmul.f32 %v1544, %v1568
      %v1570 = vmin.f32 %v1569, 1.0
      %v1571 = vmax.f32 %v1570, -1.0
      %v1572 = vadd.f32 %v1571, 1.0
      %v1573 = vmul.f32 %v1530, %v1572
      %v1574 = vadd.f32 %v1573, %v1386
      %1575 = vst.msk [vmem:[%s675] sm:$0xff] %vm880, %v1574
      %p1576 = scmp.lt.s32.totalorder %s35, 1
      %s1577 = scalar_select %p1576, %s35, 1
      %p1578 = scmp.lt.s32.totalorder %s36, 0
      %s1579 = scalar_select %p1578, %s36, 0
      %s1580 = sadd.s32 %s1579, %s1577
      %s1581 = smul.addr %s1580, 8
      %s1582 = scalar_lea.vmem %s20, %s1581
      // Predicated region
      $region105: #{co_attention_layer.2} parent=99 // pred_check
        %p1583 = pneg %p495
      $region106: #{co_attention_layer.2} parent=99 // pred_check_branch
        %1585 = sbr.rel (%p1583) target = $region108
      $region107: #{co_attention_layer.2} parent=99 // pred_region
        _
      $region108: #{co_attention_layer.2} parent=99 // pred_fallthru
        _
    $region100: #{co_attention_layer.2} parent=5 // pred_fallthru
      _
    %p1586 = scmp.le.s32.totalorder 2, %s26
    // Predicated region
    $region109: #{co_attention_layer.2} parent=5 // pred_check
      %p1587 = pneg %p1586
    $region110: #{co_attention_layer.2} parent=5 // pred_check_branch
      %1589 = sbr.rel (%p1587) target = $region112
    $region111: #{co_attention_layer.2} parent=5 // pred_region
      %s1590 = ssub.s32 %s26, 2
      // Predicated region
      $region113: #{co_attention_layer.2} parent=111 // pred_check
        %p1591 = pneg %p501
      $region114: #{co_attention_layer.2} parent=111 // pred_check_branch
        %1593 = sbr.rel (%p1591) target = $region116
      $region115: #{co_attention_layer.2} parent=111 // pred_region
        %p1594 = scmp.lt.s32.totalorder %s37, 1
        %s1595 = scalar_select %p1594, %s37, 1
        %p1596 = scmp.lt.s32.totalorder %s38, 0
        %s1597 = scalar_select %p1596, %s38, 0
        %s1598 = sadd.s32 %s1597, %s1595
        %s1599 = smul.addr %s1598, 8
        %s1600 = scalar_lea.vmem %s20, %s1599
      $region116: #{co_attention_layer.2} parent=111 // pred_fallthru
        _
    $region112: #{co_attention_layer.2} parent=5 // pred_fallthru
      _
  $region6: #{co_attention_layer.2} parent=0 // loop_footer
    %s30 = sadd.s32 1, %s26
  $region7: #{co_attention_layer.2} parent=0 // loop_footer_branch
    %25 = sbr.rel target = $region3
  $region8: #{co_attention_layer.2} parent=0 // loop_exit
    _

// kernel: co_attention_layer.3
$region0: #{co_attention_layer.3}
  #allocation0 [shape = 'u32[]', space=smem, size = 0x4, offset = 0x4, fixed_abs, tag = 'smem constant byte address 0x4 - core index']
  #allocation1 [shape = 'u32[72,128]{1,0:T(1,128)}', space=vmem, size = 0x9000, scoped, tag = 'internal scratch']
  #allocation2 [shape = 'f32[4,8,8]{2,1,0:T(8,128)}', space=vmem, size = 0x4000, scoped, tag = 'scratch operand']
  #allocation3 [shape = 'f32[4,8,8]{2,1,0:T(8,128)}', space=vmem, size = 0x4000, scoped, tag = 'scratch operand']
  %s0 = inlined_call_operand.vmem [shape: f32[2,16,32], index: 0, kind: input, shape index: {}]
  %s1 = inlined_call_operand.vmem [shape: f32[2,8,32], index: 1, kind: input, shape index: {}]
  %s2 = inlined_call_operand.vmem [shape: f32[1,32], index: 2, kind: input, shape index: {}]
  %s3 = inlined_call_operand.vmem [shape: f32[1,32], index: 3, kind: input, shape index: {}]
  %s4 = inlined_call_operand.vmem [shape: f32[1,32], index: 4, kind: input, shape index: {}]
  %s5 = inlined_call_operand.vmem [shape: f32[1,32], index: 5, kind: input, shape index: {}]
  %s6 = inlined_call_operand.vmem [shape: f32[32,32], index: 6, kind: input, shape index: {}]
  %s7 = inlined_call_operand.vmem [shape: f32[1,32], index: 7, kind: input, shape index: {}]
  %s8 = inlined_call_operand.vmem [shape: f32[32,32], index: 8, kind: input, shape index: {}]
  %s9 = inlined_call_operand.vmem [shape: f32[1,32], index: 9, kind: input, shape index: {}]
  %s10 = inlined_call_operand.vmem [shape: f32[32,32], index: 10, kind: input, shape index: {}]
  %s11 = inlined_call_operand.vmem [shape: f32[1,32], index: 11, kind: input, shape index: {}]
  %s12 = inlined_call_operand.vmem [shape: f32[4,8,32], index: 12, kind: input, shape index: {}]
  %s13 = inlined_call_operand.vmem [shape: f32[1,32], index: 13, kind: input, shape index: {}]
  %s14 = inlined_call_operand.vmem [shape: f32[1,32], index: 14, kind: input, shape index: {}]
  %s15 = inlined_call_operand.vmem [shape: f32[1,32], index: 15, kind: input, shape index: {}]
  %s16 = inlined_call_operand.vmem [shape: f32[32,64], index: 16, kind: input, shape index: {}]
  %s17 = inlined_call_operand.vmem [shape: f32[1,64], index: 17, kind: input, shape index: {}]
  %s18 = inlined_call_operand.vmem [shape: f32[64,32], index: 18, kind: input, shape index: {}]
  %s19 = inlined_call_operand.vmem [shape: f32[1,32], index: 19, kind: input, shape index: {}]
  %s20 = inlined_call_operand.vmem [shape: f32[2,16,32], index: 20, kind: output, shape index: {}]
  %s21 = sld [smem:[#allocation0]]
  $region117: #{co_attention_layer.3} parent=0
    _
  %s23 = ssub.s32 1, %s21
  %s24 = scalar_select 0, %s23, %s21
  loop: start=0, step=1, limit=4
  $region2: #{co_attention_layer.3} parent=0 // loop_pre_header
    _
  $region3: #{co_attention_layer.3} parent=0 // loop_header
    %s26 = sphi 0, %s30
    %p27 = scmp.ge.s32.totalorder %s26, 4
    %s33 = sphi 0, %s45
    %s34 = sphi 0, %s41
    %s35 = sphi 0, %s33
    %s36 = sphi 0, %s34
    %s37 = sphi 0, %s35
    %s38 = sphi 0, %s36
    %s50 = sphi 0, %s52
    %s53 = sphi 0, %s50
    %s54 = sphi 0, %s53
    %s70 = sphi 0, %s54
    %s76 = sphi 0, %s78
    %s79 = sphi 0, %s76
    %s80 = sphi 0, %s79
    %s96 = sphi 0, %s80
    %s100 = sphi 0, %s100
    %s102 = sphi 0, %s100
    %s103 = sphi 0, %s102
    %s117 = sphi 0, %s103
    %s121 = sphi 0, %s121
    %s123 = sphi 0, %s121
    %s124 = sphi 0, %s123
    %s138 = sphi 0, %s124
    %s142 = sphi 0, %s142
    %s144 = sphi 0, %s142
    %s145 = sphi 0, %s144
    %s159 = sphi 0, %s145
    %s163 = sphi 0, %s163
    %s165 = sphi 0, %s163
    %s166 = sphi 0, %s165
    %s180 = sphi 0, %s166
    %s184 = sphi 0, %s184
    %s186 = sphi 0, %s184
    %s187 = sphi 0, %s186
    %s201 = sphi 0, %s187
    %s205 = sphi 0, %s205
    %s207 = sphi 0, %s205
    %s208 = sphi 0, %s207
    %s222 = sphi 0, %s208
    %s226 = sphi 0, %s226
    %s228 = sphi 0, %s226
    %s229 = sphi 0, %s228
    %s243 = sphi 0, %s229
    %s247 = sphi 0, %s247
    %s249 = sphi 0, %s247
    %s250 = sphi 0, %s249
    %s264 = sphi 0, %s250
    %s268 = sphi 0, %s268
    %s270 = sphi 0, %s268
    %s271 = sphi 0, %s270
    %s285 = sphi 0, %s271
    %s289 = sphi 0, %s289
    %s291 = sphi 0, %s289
    %s292 = sphi 0, %s291
    %s306 = sphi 0, %s292
    %s310 = sphi 0, %s310
    %s312 = sphi 0, %s310
    %s313 = sphi 0, %s312
    %s327 = sphi 0, %s313
    %s331 = sphi 0, %s331
    %s333 = sphi 0, %s331
    %s334 = sphi 0, %s333
    %s348 = sphi 0, %s334
    %s352 = sphi 0, %s352
    %s354 = sphi 0, %s352
    %s355 = sphi 0, %s354
    %s369 = sphi 0, %s355
    %s373 = sphi 0, %s373
    %s375 = sphi 0, %s373
    %s376 = sphi 0, %s375
    %s390 = sphi 0, %s376
    %s394 = sphi 0, %s394
    %s396 = sphi 0, %s394
    %s397 = sphi 0, %s396
    %s411 = sphi 0, %s397
    %s415 = sphi 0, %s415
    %s417 = sphi 0, %s415
    %s418 = sphi 0, %s417
    %s432 = sphi 0, %s418
    %s436 = sphi 0, %s436
    %s438 = sphi 0, %s436
    %s439 = sphi 0, %s438
    %s453 = sphi 0, %s439
    %s457 = sphi 0, %s457
    %s459 = sphi 0, %s457
    %s460 = sphi 0, %s459
    %s474 = sphi 0, %s460
    %s482 = sphi 0, %s484
    %s485 = sphi 0, %s482
    %s486 = sphi 0, %s485
    %s502 = sphi 0, %s486
  $region4: #{co_attention_layer.3} parent=0 // loop_header_branch
    %29 = sbr.rel (%p27) target = $region8
  $region5: #{co_attention_layer.3} parent=0 // loop_body
    %s31 = ssub.s32 %s26, 1
    %s32 = ssub.s32 %s26, 2
    %s39 = sadd.s32 1, %s34
    %p40 = scmp.ge.s32.totalorder %s39, 1
    %s41 = scalar_select %p40, 0, %s39
    %s42 = sadd.s32 1, %s33
    %s43 = scalar_select %p40, %s42, %s33
    %p44 = scmp.ge.s32.totalorder %s43, 2
    %s45 = scalar_select %p44, 0, %s43
    %s46 = ssub.s32 %s33, %s45
    %s47 = ssub.s32 %s34, %s41
    %s48 = sor.u32 %s46, %s47
    %p49 = scmp.eq.s32.totalorder %s48, 0
    %s51 = sadd.s32 %s50, 1
    %s52 = scalar_select %p49, %s50, %s51
    %p55 = pneg %p49
    %p56 = scmp.eq.s32.totalorder %s26, 1
    %p57 = por %p55, %p56
    %p58 = scmp.ne.s32.totalorder %s50, %s53
    %p59 = scmp.eq.s32.totalorder %s26, 0
    %p60 = por %p58, %p59
    %p61 = scmp.ne.s32.totalorder %s50, %s53
    %p62 = scmp.eq.s32.totalorder %s31, 1
    %p63 = por %p61, %p62
    %p64 = scmp.ne.s32.totalorder %s53, %s54
    %p65 = scmp.eq.s32.totalorder %s31, 0
    %p66 = por %p64, %p65
    %p67 = scmp.ne.s32.totalorder %s53, %s54
    %p68 = scmp.eq.s32.totalorder %s32, 1
    %p69 = por %p67, %p68
    %p71 = scmp.ne.s32.totalorder %s54, %s70
    %p72 = scmp.eq.s32.totalorder %s32, 0
    %p73 = por %p71, %p72
    %s74 = ssub.s32 %s33, %s45
    %p75 = scmp.eq.s32.totalorder %s74, 0
    %s77 = sadd.s32 %s76, 1
    %s78 = scalar_select %p75, %s76, %s77
    %p81 = pneg %p75
    %p82 = scmp.eq.s32.totalorder %s26, 1
    %p83 = por %p81, %p82
    %p84 = scmp.ne.s32.totalorder %s76, %s79
    %p85 = scmp.eq.s32.totalorder %s26, 0
    %p86 = por %p84, %p85
    %p87 = scmp.ne.s32.totalorder %s76, %s79
    %p88 = scmp.eq.s32.totalorder %s31, 1
    %p89 = por %p87, %p88
    %p90 = scmp.ne.s32.totalorder %s79, %s80
    %p91 = scmp.eq.s32.totalorder %s31, 0
    %p92 = por %p90, %p91
    %p93 = scmp.ne.s32.totalorder %s79, %s80
    %p94 = scmp.eq.s32.totalorder %s32, 1
    %p95 = por %p93, %p94
    %p97 = scmp.ne.s32.totalorder %s80, %s96
    %p98 = scmp.eq.s32.totalorder %s32, 0
    %p99 = por %p97, %p98
    %s101 = sadd.s32 %s100, 1
    %p104 = scmp.eq.s32.totalorder %s26, 1
    %p105 = scmp.ne.s32.totalorder %s100, %s102
    %p106 = scmp.eq.s32.totalorder %s26, 0
    %p107 = por %p105, %p106
    %p108 = scmp.ne.s32.totalorder %s100, %s102
    %p109 = scmp.eq.s32.totalorder %s31, 1
    %p110 = por %p108, %p109
    %p111 = scmp.ne.s32.totalorder %s102, %s103
    %p112 = scmp.eq.s32.totalorder %s31, 0
    %p113 = por %p111, %p112
    %p114 = scmp.ne.s32.totalorder %s102, %s103
    %p115 = scmp.eq.s32.totalorder %s32, 1
    %p116 = por %p114, %p115
    %p118 = scmp.ne.s32.totalorder %s103, %s117
    %p119 = scmp.eq.s32.totalorder %s32, 0
    %p120 = por %p118, %p119
    %s122 = sadd.s32 %s121, 1
    %p125 = scmp.eq.s32.totalorder %s26, 1
    %p126 = scmp.ne.s32.totalorder %s121, %s123
    %p127 = scmp.eq.s32.totalorder %s26, 0
    %p128 = por %p126, %p127
    %p129 = scmp.ne.s32.totalorder %s121, %s123
    %p130 = scmp.eq.s32.totalorder %s31, 1
    %p131 = por %p129, %p130
    %p132 = scmp.ne.s32.totalorder %s123, %s124
    %p133 = scmp.eq.s32.totalorder %s31, 0
    %p134 = por %p132, %p133
    %p135 = scmp.ne.s32.totalorder %s123, %s124
    %p136 = scmp.eq.s32.totalorder %s32, 1
    %p137 = por %p135, %p136
    %p139 = scmp.ne.s32.totalorder %s124, %s138
    %p140 = scmp.eq.s32.totalorder %s32, 0
    %p141 = por %p139, %p140
    %s143 = sadd.s32 %s142, 1
    %p146 = scmp.eq.s32.totalorder %s26, 1
    %p147 = scmp.ne.s32.totalorder %s142, %s144
    %p148 = scmp.eq.s32.totalorder %s26, 0
    %p149 = por %p147, %p148
    %p150 = scmp.ne.s32.totalorder %s142, %s144
    %p151 = scmp.eq.s32.totalorder %s31, 1
    %p152 = por %p150, %p151
    %p153 = scmp.ne.s32.totalorder %s144, %s145
    %p154 = scmp.eq.s32.totalorder %s31, 0
    %p155 = por %p153, %p154
    %p156 = scmp.ne.s32.totalorder %s144, %s145
    %p157 = scmp.eq.s32.totalorder %s32, 1
    %p158 = por %p156, %p157
    %p160 = scmp.ne.s32.totalorder %s145, %s159
    %p161 = scmp.eq.s32.totalorder %s32, 0
    %p162 = por %p160, %p161
    %s164 = sadd.s32 %s163, 1
    %p167 = scmp.eq.s32.totalorder %s26, 1
    %p168 = scmp.ne.s32.totalorder %s163, %s165
    %p169 = scmp.eq.s32.totalorder %s26, 0
    %p170 = por %p168, %p169
    %p171 = scmp.ne.s32.totalorder %s163, %s165
    %p172 = scmp.eq.s32.totalorder %s31, 1
    %p173 = por %p171, %p172
    %p174 = scmp.ne.s32.totalorder %s165, %s166
    %p175 = scmp.eq.s32.totalorder %s31, 0
    %p176 = por %p174, %p175
    %p177 = scmp.ne.s32.totalorder %s165, %s166
    %p178 = scmp.eq.s32.totalorder %s32, 1
    %p179 = por %p177, %p178
    %p181 = scmp.ne.s32.totalorder %s166, %s180
    %p182 = scmp.eq.s32.totalorder %s32, 0
    %p183 = por %p181, %p182
    %s185 = sadd.s32 %s184, 1
    %p188 = scmp.eq.s32.totalorder %s26, 1
    %p189 = scmp.ne.s32.totalorder %s184, %s186
    %p190 = scmp.eq.s32.totalorder %s26, 0
    %p191 = por %p189, %p190
    %p192 = scmp.ne.s32.totalorder %s184, %s186
    %p193 = scmp.eq.s32.totalorder %s31, 1
    %p194 = por %p192, %p193
    %p195 = scmp.ne.s32.totalorder %s186, %s187
    %p196 = scmp.eq.s32.totalorder %s31, 0
    %p197 = por %p195, %p196
    %p198 = scmp.ne.s32.totalorder %s186, %s187
    %p199 = scmp.eq.s32.totalorder %s32, 1
    %p200 = por %p198, %p199
    %p202 = scmp.ne.s32.totalorder %s187, %s201
    %p203 = scmp.eq.s32.totalorder %s32, 0
    %p204 = por %p202, %p203
    %s206 = sadd.s32 %s205, 1
    %p209 = scmp.eq.s32.totalorder %s26, 1
    %p210 = scmp.ne.s32.totalorder %s205, %s207
    %p211 = scmp.eq.s32.totalorder %s26, 0
    %p212 = por %p210, %p211
    %p213 = scmp.ne.s32.totalorder %s205, %s207
    %p214 = scmp.eq.s32.totalorder %s31, 1
    %p215 = por %p213, %p214
    %p216 = scmp.ne.s32.totalorder %s207, %s208
    %p217 = scmp.eq.s32.totalorder %s31, 0
    %p218 = por %p216, %p217
    %p219 = scmp.ne.s32.totalorder %s207, %s208
    %p220 = scmp.eq.s32.totalorder %s32, 1
    %p221 = por %p219, %p220
    %p223 = scmp.ne.s32.totalorder %s208, %s222
    %p224 = scmp.eq.s32.totalorder %s32, 0
    %p225 = por %p223, %p224
    %s227 = sadd.s32 %s226, 1
    %p230 = scmp.eq.s32.totalorder %s26, 1
    %p231 = scmp.ne.s32.totalorder %s226, %s228
    %p232 = scmp.eq.s32.totalorder %s26, 0
    %p233 = por %p231, %p232
    %p234 = scmp.ne.s32.totalorder %s226, %s228
    %p235 = scmp.eq.s32.totalorder %s31, 1
    %p236 = por %p234, %p235
    %p237 = scmp.ne.s32.totalorder %s228, %s229
    %p238 = scmp.eq.s32.totalorder %s31, 0
    %p239 = por %p237, %p238
    %p240 = scmp.ne.s32.totalorder %s228, %s229
    %p241 = scmp.eq.s32.totalorder %s32, 1
    %p242 = por %p240, %p241
    %p244 = scmp.ne.s32.totalorder %s229, %s243
    %p245 = scmp.eq.s32.totalorder %s32, 0
    %p246 = por %p244, %p245
    %s248 = sadd.s32 %s247, 1
    %p251 = scmp.eq.s32.totalorder %s26, 1
    %p252 = scmp.ne.s32.totalorder %s247, %s249
    %p253 = scmp.eq.s32.totalorder %s26, 0
    %p254 = por %p252, %p253
    %p255 = scmp.ne.s32.totalorder %s247, %s249
    %p256 = scmp.eq.s32.totalorder %s31, 1
    %p257 = por %p255, %p256
    %p258 = scmp.ne.s32.totalorder %s249, %s250
    %p259 = scmp.eq.s32.totalorder %s31, 0
    %p260 = por %p258, %p259
    %p261 = scmp.ne.s32.totalorder %s249, %s250
    %p262 = scmp.eq.s32.totalorder %s32, 1
    %p263 = por %p261, %p262
    %p265 = scmp.ne.s32.totalorder %s250, %s264
    %p266 = scmp.eq.s32.totalorder %s32, 0
    %p267 = por %p265, %p266
    %s269 = sadd.s32 %s268, 1
    %p272 = scmp.eq.s32.totalorder %s26, 1
    %p273 = scmp.ne.s32.totalorder %s268, %s270
    %p274 = scmp.eq.s32.totalorder %s26, 0
    %p275 = por %p273, %p274
    %p276 = scmp.ne.s32.totalorder %s268, %s270
    %p277 = scmp.eq.s32.totalorder %s31, 1
    %p278 = por %p276, %p277
    %p279 = scmp.ne.s32.totalorder %s270, %s271
    %p280 = scmp.eq.s32.totalorder %s31, 0
    %p281 = por %p279, %p280
    %p282 = scmp.ne.s32.totalorder %s270, %s271
    %p283 = scmp.eq.s32.totalorder %s32, 1
    %p284 = por %p282, %p283
    %p286 = scmp.ne.s32.totalorder %s271, %s285
    %p287 = scmp.eq.s32.totalorder %s32, 0
    %p288 = por %p286, %p287
    %s290 = sadd.s32 %s289, 1
    %p293 = scmp.eq.s32.totalorder %s26, 1
    %p294 = scmp.ne.s32.totalorder %s289, %s291
    %p295 = scmp.eq.s32.totalorder %s26, 0
    %p296 = por %p294, %p295
    %p297 = scmp.ne.s32.totalorder %s289, %s291
    %p298 = scmp.eq.s32.totalorder %s31, 1
    %p299 = por %p297, %p298
    %p300 = scmp.ne.s32.totalorder %s291, %s292
    %p301 = scmp.eq.s32.totalorder %s31, 0
    %p302 = por %p300, %p301
    %p303 = scmp.ne.s32.totalorder %s291, %s292
    %p304 = scmp.eq.s32.totalorder %s32, 1
    %p305 = por %p303, %p304
    %p307 = scmp.ne.s32.totalorder %s292, %s306
    %p308 = scmp.eq.s32.totalorder %s32, 0
    %p309 = por %p307, %p308
    %s311 = sadd.s32 %s310, 1
    %p314 = scmp.eq.s32.totalorder %s26, 1
    %p315 = scmp.ne.s32.totalorder %s310, %s312
    %p316 = scmp.eq.s32.totalorder %s26, 0
    %p317 = por %p315, %p316
    %p318 = scmp.ne.s32.totalorder %s310, %s312
    %p319 = scmp.eq.s32.totalorder %s31, 1
    %p320 = por %p318, %p319
    %p321 = scmp.ne.s32.totalorder %s312, %s313
    %p322 = scmp.eq.s32.totalorder %s31, 0
    %p323 = por %p321, %p322
    %p324 = scmp.ne.s32.totalorder %s312, %s313
    %p325 = scmp.eq.s32.totalorder %s32, 1
    %p326 = por %p324, %p325
    %p328 = scmp.ne.s32.totalorder %s313, %s327
    %p329 = scmp.eq.s32.totalorder %s32, 0
    %p330 = por %p328, %p329
    %s332 = sadd.s32 %s331, 1
    %p335 = scmp.eq.s32.totalorder %s26, 1
    %p336 = scmp.ne.s32.totalorder %s331, %s333
    %p337 = scmp.eq.s32.totalorder %s26, 0
    %p338 = por %p336, %p337
    %p339 = scmp.ne.s32.totalorder %s331, %s333
    %p340 = scmp.eq.s32.totalorder %s31, 1
    %p341 = por %p339, %p340
    %p342 = scmp.ne.s32.totalorder %s333, %s334
    %p343 = scmp.eq.s32.totalorder %s31, 0
    %p344 = por %p342, %p343
    %p345 = scmp.ne.s32.totalorder %s333, %s334
    %p346 = scmp.eq.s32.totalorder %s32, 1
    %p347 = por %p345, %p346
    %p349 = scmp.ne.s32.totalorder %s334, %s348
    %p350 = scmp.eq.s32.totalorder %s32, 0
    %p351 = por %p349, %p350
    %s353 = sadd.s32 %s352, 1
    %p356 = scmp.eq.s32.totalorder %s26, 1
    %p357 = scmp.ne.s32.totalorder %s352, %s354
    %p358 = scmp.eq.s32.totalorder %s26, 0
    %p359 = por %p357, %p358
    %p360 = scmp.ne.s32.totalorder %s352, %s354
    %p361 = scmp.eq.s32.totalorder %s31, 1
    %p362 = por %p360, %p361
    %p363 = scmp.ne.s32.totalorder %s354, %s355
    %p364 = scmp.eq.s32.totalorder %s31, 0
    %p365 = por %p363, %p364
    %p366 = scmp.ne.s32.totalorder %s354, %s355
    %p367 = scmp.eq.s32.totalorder %s32, 1
    %p368 = por %p366, %p367
    %p370 = scmp.ne.s32.totalorder %s355, %s369
    %p371 = scmp.eq.s32.totalorder %s32, 0
    %p372 = por %p370, %p371
    %s374 = sadd.s32 %s373, 1
    %p377 = scmp.eq.s32.totalorder %s26, 1
    %p378 = scmp.ne.s32.totalorder %s373, %s375
    %p379 = scmp.eq.s32.totalorder %s26, 0
    %p380 = por %p378, %p379
    %p381 = scmp.ne.s32.totalorder %s373, %s375
    %p382 = scmp.eq.s32.totalorder %s31, 1
    %p383 = por %p381, %p382
    %p384 = scmp.ne.s32.totalorder %s375, %s376
    %p385 = scmp.eq.s32.totalorder %s31, 0
    %p386 = por %p384, %p385
    %p387 = scmp.ne.s32.totalorder %s375, %s376
    %p388 = scmp.eq.s32.totalorder %s32, 1
    %p389 = por %p387, %p388
    %p391 = scmp.ne.s32.totalorder %s376, %s390
    %p392 = scmp.eq.s32.totalorder %s32, 0
    %p393 = por %p391, %p392
    %s395 = sadd.s32 %s394, 1
    %p398 = scmp.eq.s32.totalorder %s26, 1
    %p399 = scmp.ne.s32.totalorder %s394, %s396
    %p400 = scmp.eq.s32.totalorder %s26, 0
    %p401 = por %p399, %p400
    %p402 = scmp.ne.s32.totalorder %s394, %s396
    %p403 = scmp.eq.s32.totalorder %s31, 1
    %p404 = por %p402, %p403
    %p405 = scmp.ne.s32.totalorder %s396, %s397
    %p406 = scmp.eq.s32.totalorder %s31, 0
    %p407 = por %p405, %p406
    %p408 = scmp.ne.s32.totalorder %s396, %s397
    %p409 = scmp.eq.s32.totalorder %s32, 1
    %p410 = por %p408, %p409
    %p412 = scmp.ne.s32.totalorder %s397, %s411
    %p413 = scmp.eq.s32.totalorder %s32, 0
    %p414 = por %p412, %p413
    %s416 = sadd.s32 %s415, 1
    %p419 = scmp.eq.s32.totalorder %s26, 1
    %p420 = scmp.ne.s32.totalorder %s415, %s417
    %p421 = scmp.eq.s32.totalorder %s26, 0
    %p422 = por %p420, %p421
    %p423 = scmp.ne.s32.totalorder %s415, %s417
    %p424 = scmp.eq.s32.totalorder %s31, 1
    %p425 = por %p423, %p424
    %p426 = scmp.ne.s32.totalorder %s417, %s418
    %p427 = scmp.eq.s32.totalorder %s31, 0
    %p428 = por %p426, %p427
    %p429 = scmp.ne.s32.totalorder %s417, %s418
    %p430 = scmp.eq.s32.totalorder %s32, 1
    %p431 = por %p429, %p430
    %p433 = scmp.ne.s32.totalorder %s418, %s432
    %p434 = scmp.eq.s32.totalorder %s32, 0
    %p435 = por %p433, %p434
    %s437 = sadd.s32 %s436, 1
    %p440 = scmp.eq.s32.totalorder %s26, 1
    %p441 = scmp.ne.s32.totalorder %s436, %s438
    %p442 = scmp.eq.s32.totalorder %s26, 0
    %p443 = por %p441, %p442
    %p444 = scmp.ne.s32.totalorder %s436, %s438
    %p445 = scmp.eq.s32.totalorder %s31, 1
    %p446 = por %p444, %p445
    %p447 = scmp.ne.s32.totalorder %s438, %s439
    %p448 = scmp.eq.s32.totalorder %s31, 0
    %p449 = por %p447, %p448
    %p450 = scmp.ne.s32.totalorder %s438, %s439
    %p451 = scmp.eq.s32.totalorder %s32, 1
    %p452 = por %p450, %p451
    %p454 = scmp.ne.s32.totalorder %s439, %s453
    %p455 = scmp.eq.s32.totalorder %s32, 0
    %p456 = por %p454, %p455
    %s458 = sadd.s32 %s457, 1
    %p461 = scmp.eq.s32.totalorder %s26, 1
    %p462 = scmp.ne.s32.totalorder %s457, %s459
    %p463 = scmp.eq.s32.totalorder %s26, 0
    %p464 = por %p462, %p463
    %p465 = scmp.ne.s32.totalorder %s457, %s459
    %p466 = scmp.eq.s32.totalorder %s31, 1
    %p467 = por %p465, %p466
    %p468 = scmp.ne.s32.totalorder %s459, %s460
    %p469 = scmp.eq.s32.totalorder %s31, 0
    %p470 = por %p468, %p469
    %p471 = scmp.ne.s32.totalorder %s459, %s460
    %p472 = scmp.eq.s32.totalorder %s32, 1
    %p473 = por %p471, %p472
    %p475 = scmp.ne.s32.totalorder %s460, %s474
    %p476 = scmp.eq.s32.totalorder %s32, 0
    %p477 = por %p475, %p476
    %s478 = ssub.s32 %s33, %s45
    %s479 = ssub.s32 %s34, %s41
    %s480 = sor.u32 %s478, %s479
    %p481 = scmp.eq.s32.totalorder %s480, 0
    %s483 = sadd.s32 %s482, 1
    %s484 = scalar_select %p481, %s482, %s483
    %p487 = pneg %p481
    %p488 = scmp.eq.s32.totalorder %s26, 1
    %p489 = por %p487, %p488
    %p490 = scmp.ne.s32.totalorder %s482, %s485
    %p491 = scmp.eq.s32.totalorder %s26, 0
    %p492 = por %p490, %p491
    %p493 = scmp.ne.s32.totalorder %s482, %s485
    %p494 = scmp.eq.s32.totalorder %s31, 1
    %p495 = por %p493, %p494
    %p496 = scmp.ne.s32.totalorder %s485, %s486
    %p497 = scmp.eq.s32.totalorder %s31, 0
    %p498 = por %p496, %p497
    %p499 = scmp.ne.s32.totalorder %s485, %s486
    %p500 = scmp.eq.s32.totalorder %s32, 1
    %p501 = por %p499, %p500
    %p503 = scmp.ne.s32.totalorder %s486, %s502
    %p504 = scmp.eq.s32.totalorder %s32, 0
    %p505 = por %p503, %p504
    %p506 = scmp.le.s32.totalorder 1, %s26
    %p507 = scmp.lt.s32.totalorder %s26, 3
    %p508 = pnand %p506, %p507
    %p509 = pneg %p508
    // Predicated region
    $region9: #{co_attention_layer.3} parent=5 // pred_check
      _
    $region10: #{co_attention_layer.3} parent=5 // pred_check_branch
      %511 = sbr.rel (%p508) target = $region12
    $region11: #{co_attention_layer.3} parent=5 // pred_region
      %s512 = ssub.s32 %s26, 1
      // Predicated region
      $region13: #{co_attention_layer.3} parent=11 // pred_check
        %p513 = pneg %p113
      $region14: #{co_attention_layer.3} parent=11 // pred_check_branch
        %515 = sbr.rel (%p513) target = $region16
      $region15: #{co_attention_layer.3} parent=11 // pred_region
        _
      $region16: #{co_attention_layer.3} parent=11 // pred_fallthru
        _
      // Predicated region
      $region17: #{co_attention_layer.3} parent=11 // pred_check
        %p516 = pneg %p134
      $region18: #{co_attention_layer.3} parent=11 // pred_check_branch
        %518 = sbr.rel (%p516) target = $region20
      $region19: #{co_attention_layer.3} parent=11 // pred_region
        _
      $region20: #{co_attention_layer.3} parent=11 // pred_fallthru
        _
      // Predicated region
      $region21: #{co_attention_layer.3} parent=11 // pred_check
        %p519 = pneg %p155
      $region22: #{co_attention_layer.3} parent=11 // pred_check_branch
        %521 = sbr.rel (%p519) target = $region24
      $region23: #{co_attention_layer.3} parent=11 // pred_region
        _
      $region24: #{co_attention_layer.3} parent=11 // pred_fallthru
        _
      // Predicated region
      $region25: #{co_attention_layer.3} parent=11 // pred_check
        %p522 = pneg %p176
      $region26: #{co_attention_layer.3} parent=11 // pred_check_branch
        %524 = sbr.rel (%p522) target = $region28
      $region27: #{co_attention_layer.3} parent=11 // pred_region
        _
      $region28: #{co_attention_layer.3} parent=11 // pred_fallthru
        _
      // Predicated region
      $region29: #{co_attention_layer.3} parent=11 // pred_check
        %p525 = pneg %p197
      $region30: #{co_attention_layer.3} parent=11 // pred_check_branch
        %527 = sbr.rel (%p525) target = $region32
      $region31: #{co_attention_layer.3} parent=11 // pred_region
        _
      $region32: #{co_attention_layer.3} parent=11 // pred_fallthru
        _
      // Predicated region
      $region33: #{co_attention_layer.3} parent=11 // pred_check
        %p528 = pneg %p218
      $region34: #{co_attention_layer.3} parent=11 // pred_check_branch
        %530 = sbr.rel (%p528) target = $region36
      $region35: #{co_attention_layer.3} parent=11 // pred_region
        _
      $region36: #{co_attention_layer.3} parent=11 // pred_fallthru
        _
      // Predicated region
      $region37: #{co_attention_layer.3} parent=11 // pred_check
        %p531 = pneg %p239
      $region38: #{co_attention_layer.3} parent=11 // pred_check_branch
        %533 = sbr.rel (%p531) target = $region40
      $region39: #{co_attention_layer.3} parent=11 // pred_region
        _
      $region40: #{co_attention_layer.3} parent=11 // pred_fallthru
        _
      // Predicated region
      $region41: #{co_attention_layer.3} parent=11 // pred_check
        %p534 = pneg %p260
      $region42: #{co_attention_layer.3} parent=11 // pred_check_branch
        %536 = sbr.rel (%p534) target = $region44
      $region43: #{co_attention_layer.3} parent=11 // pred_region
        _
      $region44: #{co_attention_layer.3} parent=11 // pred_fallthru
        _
      // Predicated region
      $region45: #{co_attention_layer.3} parent=11 // pred_check
        %p537 = pneg %p281
      $region46: #{co_attention_layer.3} parent=11 // pred_check_branch
        %539 = sbr.rel (%p537) target = $region48
      $region47: #{co_attention_layer.3} parent=11 // pred_region
        _
      $region48: #{co_attention_layer.3} parent=11 // pred_fallthru
        _
      // Predicated region
      $region49: #{co_attention_layer.3} parent=11 // pred_check
        %p540 = pneg %p302
      $region50: #{co_attention_layer.3} parent=11 // pred_check_branch
        %542 = sbr.rel (%p540) target = $region52
      $region51: #{co_attention_layer.3} parent=11 // pred_region
        _
      $region52: #{co_attention_layer.3} parent=11 // pred_fallthru
        _
      // Predicated region
      $region53: #{co_attention_layer.3} parent=11 // pred_check
        %p543 = pneg %p323
      $region54: #{co_attention_layer.3} parent=11 // pred_check_branch
        %545 = sbr.rel (%p543) target = $region56
      $region55: #{co_attention_layer.3} parent=11 // pred_region
        _
      $region56: #{co_attention_layer.3} parent=11 // pred_fallthru
        _
      // Predicated region
      $region57: #{co_attention_layer.3} parent=11 // pred_check
        %p546 = pneg %p344
      $region58: #{co_attention_layer.3} parent=11 // pred_check_branch
        %548 = sbr.rel (%p546) target = $region60
      $region59: #{co_attention_layer.3} parent=11 // pred_region
        _
      $region60: #{co_attention_layer.3} parent=11 // pred_fallthru
        _
      // Predicated region
      $region61: #{co_attention_layer.3} parent=11 // pred_check
        %p549 = pneg %p365
      $region62: #{co_attention_layer.3} parent=11 // pred_check_branch
        %551 = sbr.rel (%p549) target = $region64
      $region63: #{co_attention_layer.3} parent=11 // pred_region
        _
      $region64: #{co_attention_layer.3} parent=11 // pred_fallthru
        _
      // Predicated region
      $region65: #{co_attention_layer.3} parent=11 // pred_check
        %p552 = pneg %p386
      $region66: #{co_attention_layer.3} parent=11 // pred_check_branch
        %554 = sbr.rel (%p552) target = $region68
      $region67: #{co_attention_layer.3} parent=11 // pred_region
        _
      $region68: #{co_attention_layer.3} parent=11 // pred_fallthru
        _
      // Predicated region
      $region69: #{co_attention_layer.3} parent=11 // pred_check
        %p555 = pneg %p407
      $region70: #{co_attention_layer.3} parent=11 // pred_check_branch
        %557 = sbr.rel (%p555) target = $region72
      $region71: #{co_attention_layer.3} parent=11 // pred_region
        _
      $region72: #{co_attention_layer.3} parent=11 // pred_fallthru
        _
      // Predicated region
      $region73: #{co_attention_layer.3} parent=11 // pred_check
        %p558 = pneg %p428
      $region74: #{co_attention_layer.3} parent=11 // pred_check_branch
        %560 = sbr.rel (%p558) target = $region76
      $region75: #{co_attention_layer.3} parent=11 // pred_region
        _
      $region76: #{co_attention_layer.3} parent=11 // pred_fallthru
        _
      // Predicated region
      $region77: #{co_attention_layer.3} parent=11 // pred_check
        %p561 = pneg %p449
      $region78: #{co_attention_layer.3} parent=11 // pred_check_branch
        %563 = sbr.rel (%p561) target = $region80
      $region79: #{co_attention_layer.3} parent=11 // pred_region
        _
      $region80: #{co_attention_layer.3} parent=11 // pred_fallthru
        _
      // Predicated region
      $region81: #{co_attention_layer.3} parent=11 // pred_check
        %p564 = pneg %p470
      $region82: #{co_attention_layer.3} parent=11 // pred_check_branch
        %566 = sbr.rel (%p564) target = $region84
      $region83: #{co_attention_layer.3} parent=11 // pred_region
        _
      $region84: #{co_attention_layer.3} parent=11 // pred_fallthru
        _
    $region12: #{co_attention_layer.3} parent=5 // pred_fallthru
      _
    %p567 = scmp.lt.s32.totalorder %s26, 2
    // Predicated region
    $region85: #{co_attention_layer.3} parent=5 // pred_check
      %p568 = pneg %p567
    $region86: #{co_attention_layer.3} parent=5 // pred_check_branch
      %570 = sbr.rel (%p568) target = $region88
    $region87: #{co_attention_layer.3} parent=5 // pred_region
      // Predicated region
      $region89: #{co_attention_layer.3} parent=87 // pred_check
        %p571 = pneg %p60
      $region90: #{co_attention_layer.3} parent=87 // pred_check_branch
        %573 = sbr.rel (%p571) target = $region92
      $region91: #{co_attention_layer.3} parent=87 // pred_region
        %s574 = smul.u32 2, %s34
        %p575 = scmp.lt.s32.totalorder %s33, 1
        %s576 = scalar_select %p575, %s33, 1
        %p577 = scmp.lt.s32.totalorder %s574, 1
        %s578 = scalar_select %p577, %s574, 1
        %s579 = smul.addr %s576, 2
        %s580 = sadd.s32 %s578, %s579
        %s581 = smul.addr %s580, 8
        %s582 = scalar_lea.vmem %s0, %s581
        %s583 = smul.u32 2, %s34
      $region92: #{co_attention_layer.3} parent=87 // pred_fallthru
        _
      // Predicated region
      $region93: #{co_attention_layer.3} parent=87 // pred_check
        %p584 = pneg %p86
      $region94: #{co_attention_layer.3} parent=87 // pred_check_branch
        %586 = sbr.rel (%p584) target = $region96
      $region95: #{co_attention_layer.3} parent=87 // pred_region
        %p587 = scmp.lt.s32.totalorder %s33, 1
        %s588 = scalar_select %p587, %s33, 1
        %s589 = smul.addr %s588, 8
        %s590 = scalar_lea.vmem %s1, %s589
      $region96: #{co_attention_layer.3} parent=87 // pred_fallthru
        _
    $region88: #{co_attention_layer.3} parent=5 // pred_fallthru
      _
    %p591 = scmp.le.s32.totalorder 1, %s26
    %p592 = scmp.lt.s32.totalorder %s26, 3
    %p593 = pnand %p591, %p592
    %p594 = pneg %p593
    // Predicated region
    $region97: #{co_attention_layer.3} parent=5 // pred_check
      _
    $region98: #{co_attention_layer.3} parent=5 // pred_check_branch
      %596 = sbr.rel (%p593) target = $region100
    $region99: #{co_attention_layer.3} parent=5 // pred_region
      %s597 = ssub.s32 %s26, 1
      %s598 = smul.u32 2, %s36
      %p599 = scmp.lt.s32.totalorder %s35, 1
      %s600 = scalar_select %p599, %s35, 1
      %p601 = scmp.lt.s32.totalorder %s598, 1
      %s602 = scalar_select %p601, %s598, 1
      %s603 = smul.addr %s600, 2
      %s604 = sadd.s32 %s602, %s603
      %s605 = smul.addr %s604, 8
      %s606 = scalar_lea.vmem %s0, %s605
      %p607 = pneg %p66
      %p608 = pneg %p63
      %p609 = scmp.lt.s32.totalorder %s35, 1
      %s610 = scalar_select %p609, %s35, 1
      %s611 = smul.addr %s610, 8
      %s612 = scalar_lea.vmem %s1, %s611
      %p613 = pneg %p92
      %p614 = pneg %p89
      %p615 = pneg %p113
      %p616 = pneg %p110
      %p617 = pneg %p134
      %p618 = pneg %p131
      %p619 = pneg %p155
      %p620 = pneg %p152
      %p621 = pneg %p176
      %p622 = pneg %p173
      %p623 = pneg %p197
      %p624 = pneg %p194
      %p625 = pneg %p218
      %p626 = pneg %p215
      %p627 = pneg %p239
      %p628 = pneg %p236
      %p629 = pneg %p260
      %p630 = pneg %p257
      %p631 = pneg %p281
      %p632 = pneg %p278
      %p633 = pneg %p302
      %p634 = pneg %p299
      %p635 = pneg %p323
      %p636 = pneg %p320
      %p637 = pneg %p344
      %p638 = pneg %p341
      %p639 = pneg %p365
      %p640 = pneg %p362
      %p641 = pneg %p386
      %p642 = pneg %p383
      %p643 = pneg %p407
      %p644 = pneg %p404
      %p645 = pneg %p428
      %p646 = pneg %p425
      %p647 = pneg %p449
      %p648 = pneg %p446
      %p649 = pneg %p470
      %p650 = pneg %p467
      %p651 = pneg %p498
      %p652 = pneg %p495
      %s653 = smul.u32 2, %s36
      %p654 = scmp.lt.s32.totalorder %s35, 1
      %s655 = scalar_select %p654, %s35, 1
      %p656 = scmp.lt.s32.totalorder %s653, 1
      %s657 = scalar_select %p656, %s653, 1
      %s658 = smul.addr %s655, 2
      %s659 = sadd.s32 %s657, %s658
      %s660 = smul.addr %s659, 8
      %s661 = scalar_lea.vmem %s20, %s660
      %s662 = smul.u32 2, %s36
      %p663 = scmp.lt.s32.totalorder %s35, 1
      %s664 = scalar_select %p663, %s35, 1
      %p665 = scmp.lt.s32.totalorder %s662, 1
      %s666 = scalar_select %p665, %s662, 1
      %s667 = smul.addr %s664, 2
      %s668 = sadd.s32 %s666, %s667
      %s669 = smul.addr %s668, 8
      %s670 = scalar_lea.vmem %s0, %s669
      %s671 = smul.u32 2, %s36
      %p672 = scmp.lt.s32.totalorder %s35, 1
      %s673 = scalar_select %p672, %s35, 1
      %s674 = smul.addr %s673, 8
      %s675 = scalar_lea.vmem %s1, %s674
      %s676 = smul.u32 2, %s36
      %p677 = scmp.lt.s32.totalorder %s35, 1
      %s678 = scalar_select %p677, %s35, 1
      %p679 = scmp.lt.s32.totalorder %s676, 1
      %s680 = scalar_select %p679, %s676, 1
      %s681 = smul.addr %s678, 2
      %s682 = sadd.s32 %s680, %s681
      %s683 = smul.addr %s682, 8
      %s684 = scalar_lea.vmem %s20, %s683
      %s685 = smul.u32 2, %s36
      %p686 = scmp.eq.s32.totalorder %s36, 0
      // Predicated region
      $region101: #{co_attention_layer.3} parent=99 // pred_check
        %p687 = pneg %p686
      $region102: #{co_attention_layer.3} parent=99 // pred_check_branch
        %689 = sbr.rel (%p687) target = $region104
      $region103: #{co_attention_layer.3} parent=99 // pred_region
        %v690 = vld [vmem:[%s675] sm:$0xff]
        %v691 = vld [vmem:[%s4] sm:$0x1]
        %v692 = vld [vmem:[%s5] sm:$0x1]
        %vm693 = vcmask 261120
        %v694 = vsel %vm693, %v690, 0.0
        %695 = vadd.xlane.f32.xlu0 %v694
        %v696 = vpop.xlane.xlu0 %695
        %v697 = vrcp.pop 32.0
        %v698 = vmul.f32 32.0, %v697
        %v699 = vsub.f32 1.0, %v698
        %v700 = vmul.f32 %v697, %v699
        %v701 = vadd.f32 %v697, %v700
        %vm702 = vweird.f32 %v697
        %v703 = vsel %vm702, %v697, %v701
        %v704 = vmul.f32 %v696, %v703
        %v705 = vsub.f32 %v690, %v704
        %v706 = vmul.f32 %v705, %v705
        %v707 = vsel %vm693, %v706, 0.0
        %708 = vadd.xlane.f32.xlu0 %v707
        %v709 = vpop.xlane.xlu0 %708
        %v710 = vmul.f32 %v709, %v703
        %v711 = vadd.f32 %v710, 1e-05
        %v712 = vrsqrt.pop %v711
        %v713 = vmul.f32 %v712, %v711
        %v714 = vmul.f32 %v713, %v712
        %v715 = vmul.f32 0.5, %v714
        %v716 = vsub.f32 1.5, %v715
        %v717 = vmul.f32 %v712, %v716
        %vm718 = vweird.f32 %v711
        %vm719 = vweird.f32 %v712
        %vm720 = vmor %vm718, %vm719
        %v721 = vsel %vm720, %v712, %v717
        %v722 = vmul.f32 %v705, %v721
        %v724 = vperm.slane %v691, 0
        %v726 = vmul.f32 %v722, %v724
        %v728 = vperm.slane %v692, 0
        %v730 = vadd.f32 %v726, %v728
        %v731 = vld [vmem:[%s8] sm:$0xff]
        %v732 = vld [vmem:[%s8 + $0x8] sm:$0xff]
        %v733 = vld [vmem:[%s8 + $0x10] sm:$0xff]
        %v734 = vld [vmem:[%s8 + $0x18] sm:$0xff]
        %v735 = vld [vmem:[%s9] sm:$0x1]
        %v737 = vperm.slane %v735, 0
        %v740 = vsel %vm693, %v730, 0
        %742 = vmatpush.msra.mxu0 0.0
        %743 = vmatpush.msra.mxu0 0.0
        %744 = vmatpush.msra.mxu0 0.0
        %745 = vmatpush.msra.mxu0 0.0
        %746 = vmatpush.msra.mxu0 0.0
        %747 = vmatpush.msra.mxu0 0.0
        %748 = vmatpush.msra.mxu0 0.0
        %749 = vmatpush.msra.mxu0 0.0
        %750 = vmatpush.msra.mxu0 0.0
        %751 = vmatpush.msra.mxu0 0.0
        %752 = vmatpush.msra.mxu0 0.0
        %753 = vmatpush.msra.mxu0 0.0
        %754 = vmatpush.msra.mxu0 %v734
        %755 = vmatpush.msra.mxu0 %v733
        %756 = vmatpush.msra.mxu0 %v732
        %757 = vmatpush.msra.mxu0 %v731
        %758 = vmatmul.f32.gmra.mxu0 %v740
        %v759 = vpop.f32.mrf.mxu0
        %v760 = vadd.f32 %v737, %v759
        %761 = vdwg.mxu0
        %v762 = vld [vmem:[%s10] sm:$0xff]
        %v763 = vld [vmem:[%s10 + $0x8] sm:$0xff]
        %v764 = vld [vmem:[%s10 + $0x10] sm:$0xff]
        %v765 = vld [vmem:[%s10 + $0x18] sm:$0xff]
        %v766 = vld [vmem:[%s11] sm:$0x1]
        %v768 = vperm.slane %v766, 0
        %770 = vmatpush.msra.mxu0 0.0
        %771 = vmatpush.msra.mxu0 0.0
        %772 = vmatpush.msra.mxu0 0.0
        %773 = vmatpush.msra.mxu0 0.0
        %774 = vmatpush.msra.mxu0 0.0
        %775 = vmatpush.msra.mxu0 0.0
        %776 = vmatpush.msra.mxu0 0.0
        %777 = vmatpush.msra.mxu0 0.0
        %778 = vmatpush.msra.mxu0 0.0
        %779 = vmatpush.msra.mxu0 0.0
        %780 = vmatpush.msra.mxu0 0.0
        %781 = vmatpush.msra.mxu0 0.0
        %782 = vmatpush.msra.mxu0 %v765
        %783 = vmatpush.msra.mxu0 %v764
        %784 = vmatpush.msra.mxu0 %v763
        %785 = vmatpush.msra.mxu0 %v762
        %786 = vmatmul.f32.gmra.mxu0 %v740
        %v787 = vpop.f32.mrf.mxu0
        %v788 = vadd.f32 %v768, %v787
        %789 = vdwg.mxu0
        %vm790 = vcmask 64512
        %791 = vst.msk [vmem:[#allocation2] sm:$0xff] %vm790, %v760
        %792 = vst.msk [vmem:[#allocation3] sm:$0xff] %vm790, %v788
        %794 = vrot.lane.b32.xlu0 %v760, 120
        %v795 = vpop.permute.xlu0 %794
        %s797 = scalar_lea.vmem [#allocation2], 8
        %798 = vst.msk [vmem:[%s797] sm:$0xff] %vm790, %v795
        %800 = vrot.lane.b32.xlu0 %v788, 120
        %v801 = vpop.permute.xlu0 %800
        %s803 = scalar_lea.vmem [#allocation3], 8
        %804 = vst.msk [vmem:[%s803] sm:$0xff] %vm790, %v801
        %805 = vrot.lane.b32.xlu0 %v760, 112
        %v806 = vpop.permute.xlu0 %805
        %s808 = scalar_lea.vmem [#allocation2], 16
        %809 = vst.msk [vmem:[%s808] sm:$0xff] %vm790, %v806
        %810 = vrot.lane.b32.xlu0 %v788, 112
        %v811 = vpop.permute.xlu0 %810
        %s813 = scalar_lea.vmem [#allocation3], 16
        %814 = vst.msk [vmem:[%s813] sm:$0xff] %vm790, %v811
        %815 = vrot.lane.b32.xlu0 %v760, 104
        %v816 = vpop.permute.xlu0 %815
        %s818 = scalar_lea.vmem [#allocation2], 24
        %819 = vst.msk [vmem:[%s818] sm:$0xff] %vm790, %v816
        %820 = vrot.lane.b32.xlu0 %v788, 104
        %v821 = vpop.permute.xlu0 %820
        %s823 = scalar_lea.vmem [#allocation3], 24
        %824 = vst.msk [vmem:[%s823] sm:$0xff] %vm790, %v821
      $region104: #{co_attention_layer.3} parent=99 // pred_fallthru
        _
      %v825 = vld [vmem:[%s670] sm:$0xff]
      %v826 = vld [vmem:[%s670 + $0x8] sm:$0xff]
      %v827 = vld [vmem:[%s2] sm:$0x1]
      %v828 = vld [vmem:[%s3] sm:$0x1]
      %vm829 = vcmask 261120
      %v830 = vsel %vm829, %v825, 0.0
      %831 = vadd.xlane.f32.xlu0 %v830
      %v832 = vpop.xlane.xlu0 %831
      %v833 = vsel %vm829, %v826, 0.0
      %834 = vadd.xlane.f32.xlu0 %v833
      %v835 = vpop.xlane.xlu0 %834
      %v836 = vrcp.pop 32.0
      %v837 = vmul.f32 32.0, %v836
      %v838 = vsub.f32 1.0, %v837
      %v839 = vmul.f32 %v836, %v838
      %v840 = vadd.f32 %v836, %v839
      %vm841 = vweird.f32 %v836
      %v842 = vsel %vm841, %v836, %v840
      %v843 = vmul.f32 %v832, %v842
      %v844 = vmul.f32 %v835, %v842
      %v845 = vsub.f32 %v825, %v843
      %v846 = vsub.f32 %v826, %v844
      %v847 = vmul.f32 %v845, %v845
      %v848 = vmul.f32 %v846, %v846
      %v849 = vsel %vm829, %v847, 0.0
      %850 = vadd.xlane.f32.xlu0 %v849
      %v851 = vpop.xlane.xlu0 %850
      %v852 = vsel %vm829, %v848, 0.0
      %853 = vadd.xlane.f32.xlu0 %v852
      %v854 = vpop.xlane.xlu0 %853
      %v855 = vmul.f32 %v851, %v842
      %v856 = vmul.f32 %v854, %v842
      %v857 = vadd.f32 %v855, 1e-05
      %v858 = vadd.f32 %v856, 1e-05
      %v859 = vrsqrt.pop %v857
      %v860 = vmul.f32 %v859, %v857
      %v861 = vmul.f32 %v860, %v859
      %v862 = vmul.f32 0.5, %v861
      %v863 = vsub.f32 1.5, %v862
      %v864 = vmul.f32 %v859, %v863
      %vm865 = vweird.f32 %v857
      %vm866 = vweird.f32 %v859
      %vm867 = vmor %vm865, %vm866
      %v868 = vsel %vm867, %v859, %v864
      %v869 = vrsqrt.pop %v858
      %v870 = vmul.f32 %v869, %v858
      %v871 = vmul.f32 %v870, %v869
      %v872 = vmul.f32 0.5, %v871
      %v873 = vsub.f32 1.5, %v872
      %v874 = vmul.f32 %v869, %v873
      %vm875 = vweird.f32 %v858
      %vm876 = vweird.f32 %v869
      %vm877 = vmor %vm875, %vm876
      %v878 = vsel %vm877, %v869, %v874
      %v879 = vmul.f32 %v845, %v868
      %v880 = vmul.f32 %v846, %v878
      %v882 = vperm.slane %v827, 0
      %v884 = vmul.f32 %v879, %v882
      %v885 = vmul.f32 %v880, %v882
      %v887 = vperm.slane %v828, 0
      %v889 = vadd.f32 %v884, %v887
      %v890 = vadd.f32 %v885, %v887
      %v891 = vld [vmem:[%s6] sm:$0xff]
      %v892 = vld [vmem:[%s6 + $0x8] sm:$0xff]
      %v893 = vld [vmem:[%s6 + $0x10] sm:$0xff]
      %v894 = vld [vmem:[%s6 + $0x18] sm:$0xff]
      %v895 = vld [vmem:[%s7] sm:$0x1]
      %v897 = vperm.slane %v895, 0
      %v900 = vsel %vm829, %v889, 0
      %v903 = vsel %vm829, %v890, 0
      %905 = vmatpush.msra.mxu0 0.0
      %906 = vmatpush.msra.mxu0 0.0
      %907 = vmatpush.msra.mxu0 0.0
      %908 = vmatpush.msra.mxu0 0.0
      %909 = vmatpush.msra.mxu0 0.0
      %910 = vmatpush.msra.mxu0 0.0
      %911 = vmatpush.msra.mxu0 0.0
      %912 = vmatpush.msra.mxu0 0.0
      %913 = vmatpush.msra.mxu0 0.0
      %914 = vmatpush.msra.mxu0 0.0
      %915 = vmatpush.msra.mxu0 0.0
      %916 = vmatpush.msra.mxu0 0.0
      %917 = vmatpush.msra.mxu0 %v894
      %918 = vmatpush.msra.mxu0 %v893
      %919 = vmatpush.msra.mxu0 %v892
      %920 = vmatpush.msra.mxu0 %v891
      %921 = vmatmul.f32.gmra.mxu0 %v900
      %v922 = vpop.f32.mrf.mxu0
      %v923 = vadd.f32 %v897, %v922
      %924 = vmatmul.f32.gmra.mxu0 %v903
      %v925 = vpop.f32.mrf.mxu0
      %v926 = vadd.f32 %v897, %v925
      %927 = vdwg.mxu0
      %930 = vrot.lane.b32.xlu0 %v923, 120
      %v931 = vpop.permute.xlu0 %930
      %932 = vrot.lane.b32.xlu0 %v926, 120
      %v933 = vpop.permute.xlu0 %932
      %934 = vrot.lane.b32.xlu0 %v923, 112
      %v935 = vpop.permute.xlu0 %934
      %936 = vrot.lane.b32.xlu0 %v926, 112
      %v937 = vpop.permute.xlu0 %936
      %938 = vrot.lane.b32.xlu0 %v923, 104
      %v939 = vpop.permute.xlu0 %938
      %940 = vrot.lane.b32.xlu0 %v926, 104
      %v941 = vpop.permute.xlu0 %940
      %v942 = vld [vmem:[#allocation2] sm:$0xff]
      %v943 = vld [vmem:[#allocation2 + $0x8] sm:$0xff]
      %v944 = vld [vmem:[#allocation2 + $0x10] sm:$0xff]
      %v945 = vld [vmem:[#allocation2 + $0x18] sm:$0xff]
      %v946 = vld [vmem:[#allocation3] sm:$0xff]
      %v947 = vld [vmem:[#allocation3 + $0x8] sm:$0xff]
      %v948 = vld [vmem:[#allocation3 + $0x10] sm:$0xff]
      %v949 = vld [vmem:[#allocation3 + $0x18] sm:$0xff]
      %vm950 = vcmask 64512
      %v951 = vsel %vm950, %v923, 0
      %v953 = vsel %vm950, %v926, 0
      %v956 = vsel %vm950, %v942, 0
      %958 = vmatpush.xpose.msra.mxu0 0.0
      %959 = vmatpush.xpose.msra.mxu0 0.0
      %960 = vmatpush.xpose.msra.mxu0 0.0
      %961 = vmatpush.xpose.msra.mxu0 0.0
      %962 = vmatpush.xpose.msra.mxu0 0.0
      %963 = vmatpush.xpose.msra.mxu0 0.0
      %964 = vmatpush.xpose.msra.mxu0 0.0
      %965 = vmatpush.xpose.msra.mxu0 0.0
      %966 = vmatpush.xpose.msra.mxu0 0.0
      %967 = vmatpush.xpose.msra.mxu0 0.0
      %968 = vmatpush.xpose.msra.mxu0 0.0
      %969 = vmatpush.xpose.msra.mxu0 0.0
      %970 = vmatpush.xpose.msra.mxu0 0.0
      %971 = vmatpush.xpose.msra.mxu0 0.0
      %972 = vmatpush.xpose.msra.mxu0 0.0
      %973 = vmatpush.xpose.msra.mxu0 %v956
      %974 = vmatmul.f32.gmra.mxu0 %v951
      %v975 = vpop.f32.mrf.mxu0
      %v976 = vadd.f32 0.0, %v975
      %977 = vmatmul.f32.gmra.mxu0 %v953
      %v978 = vpop.f32.mrf.mxu0
      %v979 = vadd.f32 0.0, %v978
      %980 = vdwg.mxu0
      %v981 = vsel %vm950, %v931, 0
      %v983 = vsel %vm950, %v933, 0
      %v986 = vsel %vm950, %v943, 0
      %988 = vmatpush.xpose.msra.mxu0 0.0
      %989 = vmatpush.xpose.msra.mxu0 0.0
      %990 = vmatpush.xpose.msra.mxu0 0.0
      %991 = vmatpush.xpose.msra.mxu0 0.0
      %992 = vmatpush.xpose.msra.mxu0 0.0
      %993 = vmatpush.xpose.msra.mxu0 0.0
      %994 = vmatpush.xpose.msra.mxu0 0.0
      %995 = vmatpush.xpose.msra.mxu0 0.0
      %996 = vmatpush.xpose.msra.mxu0 0.0
      %997 = vmatpush.xpose.msra.mxu0 0.0
      %998 = vmatpush.xpose.msra.mxu0 0.0
      %999 = vmatpush.xpose.msra.mxu0 0.0
      %1000 = vmatpush.xpose.msra.mxu0 0.0
      %1001 = vmatpush.xpose.msra.mxu0 0.0
      %1002 = vmatpush.xpose.msra.mxu0 0.0
      %1003 = vmatpush.xpose.msra.mxu0 %v986
      %1004 = vmatmul.f32.gmra.mxu0 %v981
      %v1005 = vpop.f32.mrf.mxu0
      %v1006 = vadd.f32 0.0, %v1005
      %1007 = vmatmul.f32.gmra.mxu0 %v983
      %v1008 = vpop.f32.mrf.mxu0
      %v1009 = vadd.f32 0.0, %v1008
      %1010 = vdwg.mxu0
      %v1011 = vsel %vm950, %v935, 0
      %v1013 = vsel %vm950, %v937, 0
      %v1016 = vsel %vm950, %v944, 0
      %1018 = vmatpush.xpose.msra.mxu0 0.0
      %1019 = vmatpush.xpose.msra.mxu0 0.0
      %1020 = vmatpush.xpose.msra.mxu0 0.0
      %1021 = vmatpush.xpose.msra.mxu0 0.0
      %1022 = vmatpush.xpose.msra.mxu0 0.0
      %1023 = vmatpush.xpose.msra.mxu0 0.0
      %1024 = vmatpush.xpose.msra.mxu0 0.0
      %1025 = vmatpush.xpose.msra.mxu0 0.0
      %1026 = vmatpush.xpose.msra.mxu0 0.0
      %1027 = vmatpush.xpose.msra.mxu0 0.0
      %1028 = vmatpush.xpose.msra.mxu0 0.0
      %1029 = vmatpush.xpose.msra.mxu0 0.0
      %1030 = vmatpush.xpose.msra.mxu0 0.0
      %1031 = vmatpush.xpose.msra.mxu0 0.0
      %1032 = vmatpush.xpose.msra.mxu0 0.0
      %1033 = vmatpush.xpose.msra.mxu0 %v1016
      %1034 = vmatmul.f32.gmra.mxu0 %v1011
      %v1035 = vpop.f32.mrf.mxu0
      %v1036 = vadd.f32 0.0, %v1035
      %1037 = vmatmul.f32.gmra.mxu0 %v1013
      %v1038 = vpop.f32.mrf.mxu0
      %v1039 = vadd.f32 0.0, %v1038
      %1040 = vdwg.mxu0
      %v1041 = vsel %vm950, %v939, 0
      %v1043 = vsel %vm950, %v941, 0
      %v1046 = vsel %vm950, %v945, 0
      %1048 = vmatpush.xpose.msra.mxu0 0.0
      %1049 = vmatpush.xpose.msra.mxu0 0.0
      %1050 = vmatpush.xpose.msra.mxu0 0.0
      %1051 = vmatpush.xpose.msra.mxu0 0.0
      %1052 = vmatpush.xpose.msra.mxu0 0.0
      %1053 = vmatpush.xpose.msra.mxu0 0.0
      %1054 = vmatpush.xpose.msra.mxu0 0.0
      %1055 = vmatpush.xpose.msra.mxu0 0.0
      %1056 = vmatpush.xpose.msra.mxu0 0.0
      %1057 = vmatpush.xpose.msra.mxu0 0.0
      %1058 = vmatpush.xpose.msra.mxu0 0.0
      %1059 = vmatpush.xpose.msra.mxu0 0.0
      %1060 = vmatpush.xpose.msra.mxu0 0.0
      %1061 = vmatpush.xpose.msra.mxu0 0.0
      %1062 = vmatpush.xpose.msra.mxu0 0.0
      %1063 = vmatpush.xpose.msra.mxu0 %v1046
      %1064 = vmatmul.f32.gmra.mxu0 %v1041
      %v1065 = vpop.f32.mrf.mxu0
      %v1066 = vadd.f32 0.0, %v1065
      %1067 = vmatmul.f32.gmra.mxu0 %v1043
      %v1068 = vpop.f32.mrf.mxu0
      %v1069 = vadd.f32 0.0, %v1068
      %1070 = vdwg.mxu0
      %v1071 = vsel %vm950, %v976, -inf
      %1072 = vmax.xlane.f32.xlu0 %v1071
      %v1073 = vpop.xlane.xlu0 %1072
      %v1074 = vsel %vm950, %v979, -inf
      %1075 = vmax.xlane.f32.xlu0 %v1074
      %v1076 = vpop.xlane.xlu0 %1075
      %v1077 = vsel %vm950, %v1006, -inf
      %1078 = vmax.xlane.f32.xlu0 %v1077
      %v1079 = vpop.xlane.xlu0 %1078
      %v1080 = vsel %vm950, %v1009, -inf
      %1081 = vmax.xlane.f32.xlu0 %v1080
      %v1082 = vpop.xlane.xlu0 %1081
      %v1083 = vsel %vm950, %v1036, -inf
      %1084 = vmax.xlane.f32.xlu0 %v1083
      %v1085 = vpop.xlane.xlu0 %1084
      %v1086 = vsel %vm950, %v1039, -inf
      %1087 = vmax.xlane.f32.xlu0 %v1086
      %v1088 = vpop.xlane.xlu0 %1087
      %v1089 = vsel %vm950, %v1066, -inf
      %1090 = vmax.xlane.f32.xlu0 %v1089
      %v1091 = vpop.xlane.xlu0 %1090
      %v1092 = vsel %vm950, %v1069, -inf
      %1093 = vmax.xlane.f32.xlu0 %v1092
      %v1094 = vpop.xlane.xlu0 %1093
      %v1095 = vsub.f32 %v976, %v1073
      %v1096 = vsub.f32 %v979, %v1076
      %v1097 = vsub.f32 %v1006, %v1079
      %v1098 = vsub.f32 %v1009, %v1082
      %v1099 = vsub.f32 %v1036, %v1085
      %v1100 = vsub.f32 %v1039, %v1088
      %v1101 = vsub.f32 %v1066, %v1091
      %v1102 = vsub.f32 %v1069, %v1094
      %v1103 = vmul.f32 %v1095, 1.442695
      %v1104 = vpow.pop %v1103
      %v1105 = vmul.f32 %v1096, 1.442695
      %v1106 = vpow.pop %v1105
      %v1107 = vmul.f32 %v1097, 1.442695
      %v1108 = vpow.pop %v1107
      %v1109 = vmul.f32 %v1098, 1.442695
      %v1110 = vpow.pop %v1109
      %v1111 = vmul.f32 %v1099, 1.442695
      %v1112 = vpow.pop %v1111
      %v1113 = vmul.f32 %v1100, 1.442695
      %v1114 = vpow.pop %v1113
      %v1115 = vmul.f32 %v1101, 1.442695
      %v1116 = vpow.pop %v1115
      %v1117 = vmul.f32 %v1102, 1.442695
      %v1118 = vpow.pop %v1117
      %v1119 = vsel %vm950, %v1104, 0.0
      %1120 = vadd.xlane.f32.xlu0 %v1119
      %v1121 = vpop.xlane.xlu0 %1120
      %v1122 = vsel %vm950, %v1106, 0.0
      %1123 = vadd.xlane.f32.xlu0 %v1122
      %v1124 = vpop.xlane.xlu0 %1123
      %v1125 = vsel %vm950, %v1108, 0.0
      %1126 = vadd.xlane.f32.xlu0 %v1125
      %v1127 = vpop.xlane.xlu0 %1126
      %v1128 = vsel %vm950, %v1110, 0.0
      %1129 = vadd.xlane.f32.xlu0 %v1128
      %v1130 = vpop.xlane.xlu0 %1129
      %v1131 = vsel %vm950, %v1112, 0.0
      %1132 = vadd.xlane.f32.xlu0 %v1131
      %v1133 = vpop.xlane.xlu0 %1132
      %v1134 = vsel %vm950, %v1114, 0.0
      %1135 = vadd.xlane.f32.xlu0 %v1134
      %v1136 = vpop.xlane.xlu0 %1135
      %v1137 = vsel %vm950, %v1116, 0.0
      %1138 = vadd.xlane.f32.xlu0 %v1137
      %v1139 = vpop.xlane.xlu0 %1138
      %v1140 = vsel %vm950, %v1118, 0.0
      %1141 = vadd.xlane.f32.xlu0 %v1140
      %v1142 = vpop.xlane.xlu0 %1141
      %v1144 = vsel %vm950, %v1104, 0
      %v1147 = vsel %vm950, %v1106, 0
      %1149 = vmatpush.msra.mxu0 0.0
      %1150 = vmatpush.msra.mxu0 0.0
      %1151 = vmatpush.msra.mxu0 0.0
      %1152 = vmatpush.msra.mxu0 0.0
      %1153 = vmatpush.msra.mxu0 0.0
      %1154 = vmatpush.msra.mxu0 0.0
      %1155 = vmatpush.msra.mxu0 0.0
      %1156 = vmatpush.msra.mxu0 0.0
      %1157 = vmatpush.msra.mxu0 0.0
      %1158 = vmatpush.msra.mxu0 0.0
      %1159 = vmatpush.msra.mxu0 0.0
      %1160 = vmatpush.msra.mxu0 0.0
      %1161 = vmatpush.msra.mxu0 0.0
      %1162 = vmatpush.msra.mxu0 0.0
      %1163 = vmatpush.msra.mxu0 0.0
      %1164 = vmatpush.msra.mxu0 %v946
      %1165 = vmatmul.f32.gmra.mxu0 %v1144
      %v1166 = vpop.f32.mrf.mxu0
      %v1167 = vadd.f32 0.0, %v1166
      %1168 = vmatmul.f32.gmra.mxu0 %v1147
      %v1169 = vpop.f32.mrf.mxu0
      %v1170 = vadd.f32 0.0, %v1169
      %1171 = vdwg.mxu0
      %v1173 = vsel %vm950, %v1108, 0
      %v1176 = vsel %vm950, %v1110, 0
      %1178 = vmatpush.msra.mxu0 0.0
      %1179 = vmatpush.msra.mxu0 0.0
      %1180 = vmatpush.msra.mxu0 0.0
      %1181 = vmatpush.msra.mxu0 0.0
      %1182 = vmatpush.msra.mxu0 0.0
      %1183 = vmatpush.msra.mxu0 0.0
      %1184 = vmatpush.msra.mxu0 0.0
      %1185 = vmatpush.msra.mxu0 0.0
      %1186 = vmatpush.msra.mxu0 0.0
      %1187 = vmatpush.msra.mxu0 0.0
      %1188 = vmatpush.msra.mxu0 0.0
      %1189 = vmatpush.msra.mxu0 0.0
      %1190 = vmatpush.msra.mxu0 0.0
      %1191 = vmatpush.msra.mxu0 0.0
      %1192 = vmatpush.msra.mxu0 0.0
      %1193 = vmatpush.msra.mxu0 %v947
      %1194 = vmatmul.f32.gmra.mxu0 %v1173
      %v1195 = vpop.f32.mrf.mxu0
      %v1196 = vadd.f32 0.0, %v1195
      %1197 = vmatmul.f32.gmra.mxu0 %v1176
      %v1198 = vpop.f32.mrf.mxu0
      %v1199 = vadd.f32 0.0, %v1198
      %1200 = vdwg.mxu0
      %v1202 = vsel %vm950, %v1112, 0
      %v1205 = vsel %vm950, %v1114, 0
      %1207 = vmatpush.msra.mxu0 0.0
      %1208 = vmatpush.msra.mxu0 0.0
      %1209 = vmatpush.msra.mxu0 0.0
      %1210 = vmatpush.msra.mxu0 0.0
      %1211 = vmatpush.msra.mxu0 0.0
      %1212 = vmatpush.msra.mxu0 0.0
      %1213 = vmatpush.msra.mxu0 0.0
      %1214 = vmatpush.msra.mxu0 0.0
      %1215 = vmatpush.msra.mxu0 0.0
      %1216 = vmatpush.msra.mxu0 0.0
      %1217 = vmatpush.msra.mxu0 0.0
      %1218 = vmatpush.msra.mxu0 0.0
      %1219 = vmatpush.msra.mxu0 0.0
      %1220 = vmatpush.msra.mxu0 0.0
      %1221 = vmatpush.msra.mxu0 0.0
      %1222 = vmatpush.msra.mxu0 %v948
      %1223 = vmatmul.f32.gmra.mxu0 %v1202
      %v1224 = vpop.f32.mrf.mxu0
      %v1225 = vadd.f32 0.0, %v1224
      %1226 = vmatmul.f32.gmra.mxu0 %v1205
      %v1227 = vpop.f32.mrf.mxu0
      %v1228 = vadd.f32 0.0, %v1227
      %1229 = vdwg.mxu0
      %v1231 = vsel %vm950, %v1116, 0
      %v1234 = vsel %vm950, %v1118, 0
      %1236 = vmatpush.msra.mxu0 0.0
      %1237 = vmatpush.msra.mxu0 0.0
      %1238 = vmatpush.msra.mxu0 0.0
      %1239 = vmatpush.msra.mxu0 0.0
      %1240 = vmatpush.msra.mxu0 0.0
      %1241 = vmatpush.msra.mxu0 0.0
      %1242 = vmatpush.msra.mxu0 0.0
      %1243 = vmatpush.msra.mxu0 0.0
      %1244 = vmatpush.msra.mxu0 0.0
      %1245 = vmatpush.msra.mxu0 0.0
      %1246 = vmatpush.msra.mxu0 0.0
      %1247 = vmatpush.msra.mxu0 0.0
      %1248 = vmatpush.msra.mxu0 0.0
      %1249 = vmatpush.msra.mxu0 0.0
      %1250 = vmatpush.msra.mxu0 0.0
      %1251 = vmatpush.msra.mxu0 %v949
      %1252 = vmatmul.f32.gmra.mxu0 %v1231
      %v1253 = vpop.f32.mrf.mxu0
      %v1254 = vadd.f32 0.0, %v1253
      %1255 = vmatmul.f32.gmra.mxu0 %v1234
      %v1256 = vpop.f32.mrf.mxu0
      %v1257 = vadd.f32 0.0, %v1256
      %1258 = vdwg.mxu0
      %v1259 = vrcp.pop %v1121
      %v1260 = vmul.f32 %v1121, %v1259
      %v1261 = vsub.f32 1.0, %v1260
      %v1262 = vmul.f32 %v1259, %v1261
      %v1263 = vadd.f32 %v1259, %v1262
      %vm1264 = vweird.f32 %v1121
      %vm1265 = vweird.f32 %v1259
      %vm1266 = vmor %vm1264, %vm1265
      %v1267 = vsel %vm1266, %v1259, %v1263
      %v1268 = vand.u32 2147483647, %v1121
      %vm1269 = vcmp.eq.f32.partialorder %v1268, 8.507059e+37
      %v1270 = vand.u32 %v1121, 2147483648
      %v1271 = vor.u32 1.1754944e-38, %v1270
      %v1272 = vsel %vm1269, %v1271, %v1267
      %v1273 = vmul.f32 1.0, %v1272
      %v1274 = vrcp.pop %v1124
      %v1275 = vmul.f32 %v1124, %v1274
      %v1276 = vsub.f32 1.0, %v1275
      %v1277 = vmul.f32 %v1274, %v1276
      %v1278 = vadd.f32 %v1274, %v1277
      %vm1279 = vweird.f32 %v1124
      %vm1280 = vweird.f32 %v1274
      %vm1281 = vmor %vm1279, %vm1280
      %v1282 = vsel %vm1281, %v1274, %v1278
      %v1283 = vand.u32 2147483647, %v1124
      %vm1284 = vcmp.eq.f32.partialorder %v1283, 8.507059e+37
      %v1285 = vand.u32 %v1124, 2147483648
      %v1286 = vor.u32 1.1754944e-38, %v1285
      %v1287 = vsel %vm1284, %v1286, %v1282
      %v1288 = vmul.f32 1.0, %v1287
      %v1289 = vrcp.pop %v1127
      %v1290 = vmul.f32 %v1127, %v1289
      %v1291 = vsub.f32 1.0, %v1290
      %v1292 = vmul.f32 %v1289, %v1291
      %v1293 = vadd.f32 %v1289, %v1292
      %vm1294 = vweird.f32 %v1127
      %vm1295 = vweird.f32 %v1289
      %vm1296 = vmor %vm1294, %vm1295
      %v1297 = vsel %vm1296, %v1289, %v1293
      %v1298 = vand.u32 2147483647, %v1127
      %vm1299 = vcmp.eq.f32.partialorder %v1298, 8.507059e+37
      %v1300 = vand.u32 %v1127, 2147483648
      %v1301 = vor.u32 1.1754944e-38, %v1300
      %v1302 = vsel %vm1299, %v1301, %v1297
      %v1303 = vmul.f32 1.0, %v1302
      %v1304 = vrcp.pop %v1130
      %v1305 = vmul.f32 %v1130, %v1304
      %v1306 = vsub.f32 1.0, %v1305
      %v1307 = vmul.f32 %v1304, %v1306
      %v1308 = vadd.f32 %v1304, %v1307
      %vm1309 = vweird.f32 %v1130
      %vm1310 = vweird.f32 %v1304
      %vm1311 = vmor %vm1309, %vm1310
      %v1312 = vsel %vm1311, %v1304, %v1308
      %v1313 = vand.u32 2147483647, %v1130
      %vm1314 = vcmp.eq.f32.partialorder %v1313, 8.507059e+37
      %v1315 = vand.u32 %v1130, 2147483648
      %v1316 = vor.u32 1.1754944e-38, %v1315
      %v1317 = vsel %vm1314, %v1316, %v1312
      %v1318 = vmul.f32 1.0, %v1317
      %v1319 = vrcp.pop %v1133
      %v1320 = vmul.f32 %v1133, %v1319
      %v1321 = vsub.f32 1.0, %v1320
      %v1322 = vmul.f32 %v1319, %v1321
      %v1323 = vadd.f32 %v1319, %v1322
      %vm1324 = vweird.f32 %v1133
      %vm1325 = vweird.f32 %v1319
      %vm1326 = vmor %vm1324, %vm1325
      %v1327 = vsel %vm1326, %v1319, %v1323
      %v1328 = vand.u32 2147483647, %v1133
      %vm1329 = vcmp.eq.f32.partialorder %v1328, 8.507059e+37
      %v1330 = vand.u32 %v1133, 2147483648
      %v1331 = vor.u32 1.1754944e-38, %v1330
      %v1332 = vsel %vm1329, %v1331, %v1327
      %v1333 = vmul.f32 1.0, %v1332
      %v1334 = vrcp.pop %v1136
      %v1335 = vmul.f32 %v1136, %v1334
      %v1336 = vsub.f32 1.0, %v1335
      %v1337 = vmul.f32 %v1334, %v1336
      %v1338 = vadd.f32 %v1334, %v1337
      %vm1339 = vweird.f32 %v1136
      %vm1340 = vweird.f32 %v1334
      %vm1341 = vmor %vm1339, %vm1340
      %v1342 = vsel %vm1341, %v1334, %v1338
      %v1343 = vand.u32 2147483647, %v1136
      %vm1344 = vcmp.eq.f32.partialorder %v1343, 8.507059e+37
      %v1345 = vand.u32 %v1136, 2147483648
      %v1346 = vor.u32 1.1754944e-38, %v1345
      %v1347 = vsel %vm1344, %v1346, %v1342
      %v1348 = vmul.f32 1.0, %v1347
      %v1349 = vrcp.pop %v1139
      %v1350 = vmul.f32 %v1139, %v1349
      %v1351 = vsub.f32 1.0, %v1350
      %v1352 = vmul.f32 %v1349, %v1351
      %v1353 = vadd.f32 %v1349, %v1352
      %vm1354 = vweird.f32 %v1139
      %vm1355 = vweird.f32 %v1349
      %vm1356 = vmor %vm1354, %vm1355
      %v1357 = vsel %vm1356, %v1349, %v1353
      %v1358 = vand.u32 2147483647, %v1139
      %vm1359 = vcmp.eq.f32.partialorder %v1358, 8.507059e+37
      %v1360 = vand.u32 %v1139, 2147483648
      %v1361 = vor.u32 1.1754944e-38, %v1360
      %v1362 = vsel %vm1359, %v1361, %v1357
      %v1363 = vmul.f32 1.0, %v1362
      %v1364 = vrcp.pop %v1142
      %v1365 = vmul.f32 %v1142, %v1364
      %v1366 = vsub.f32 1.0, %v1365
      %v1367 = vmul.f32 %v1364, %v1366
      %v1368 = vadd.f32 %v1364, %v1367
      %vm1369 = vweird.f32 %v1142
      %vm1370 = vweird.f32 %v1364
      %vm1371 = vmor %vm1369, %vm1370
      %v1372 = vsel %vm1371, %v1364, %v1368
      %v1373 = vand.u32 2147483647, %v1142
      %vm1374 = vcmp.eq.f32.partialorder %v1373, 8.507059e+37
      %v1375 = vand.u32 %v1142, 2147483648
      %v1376 = vor.u32 1.1754944e-38, %v1375
      %v1377 = vsel %vm1374, %v1376, %v1372
      %v1378 = vmul.f32 1.0, %v1377
      %v1379 = vmul.f32 %v1167, %v1273
      %v1380 = vmul.f32 %v1170, %v1288
      %v1381 = vmul.f32 %v1196, %v1303
      %v1382 = vmul.f32 %v1199, %v1318
      %v1383 = vmul.f32 %v1225, %v1333
      %v1384 = vmul.f32 %v1228, %v1348
      %v1385 = vmul.f32 %v1254, %v1363
      %v1386 = vmul.f32 %v1257, %v1378
      %v1387 = vld [vmem:[%s12] sm:$0xff]
      %v1388 = vld [vmem:[%s12 + $0x8] sm:$0xff]
      %v1389 = vld [vmem:[%s12 + $0x10] sm:$0xff]
      %v1390 = vld [vmem:[%s12 + $0x18] sm:$0xff]
      %v1392 = vsel %vm950, %v1379, 0
      %v1395 = vsel %vm950, %v1380, 0
      %1397 = vmatpush.msra.mxu0 0.0
      %1398 = vmatpush.msra.mxu0 0.0
      %1399 = vmatpush.msra.mxu0 0.0
      %1400 = vmatpush.msra.mxu0 0.0
      %1401 = vmatpush.msra.mxu0 0.0
      %1402 = vmatpush.msra.mxu0 0.0
      %1403 = vmatpush.msra.mxu0 0.0
      %1404 = vmatpush.msra.mxu0 0.0
      %1405 = vmatpush.msra.mxu0 0.0
      %1406 = vmatpush.msra.mxu0 0.0
      %1407 = vmatpush.msra.mxu0 0.0
      %1408 = vmatpush.msra.mxu0 0.0
      %1409 = vmatpush.msra.mxu0 0.0
      %1410 = vmatpush.msra.mxu0 0.0
      %1411 = vmatpush.msra.mxu0 0.0
      %1412 = vmatpush.msra.mxu0 %v1387
      %1413 = vmatmul.f32.gmra.mxu0 %v1392
      %v1414 = vpop.f32.mrf.mxu0
      %v1415 = vadd.f32 0.0, %v1414
      %1416 = vmatmul.f32.gmra.mxu0 %v1395
      %v1417 = vpop.f32.mrf.mxu0
      %v1418 = vadd.f32 0.0, %v1417
      %1419 = vdwg.mxu0
      %v1421 = vsel %vm950, %v1381, 0
      %v1424 = vsel %vm950, %v1382, 0
      %1426 = vmatpush.msra.mxu0 0.0
      %1427 = vmatpush.msra.mxu0 0.0
      %1428 = vmatpush.msra.mxu0 0.0
      %1429 = vmatpush.msra.mxu0 0.0
      %1430 = vmatpush.msra.mxu0 0.0
      %1431 = vmatpush.msra.mxu0 0.0
      %1432 = vmatpush.msra.mxu0 0.0
      %1433 = vmatpush.msra.mxu0 0.0
      %1434 = vmatpush.msra.mxu0 0.0
      %1435 = vmatpush.msra.mxu0 0.0
      %1436 = vmatpush.msra.mxu0 0.0
      %1437 = vmatpush.msra.mxu0 0.0
      %1438 = vmatpush.msra.mxu0 0.0
      %1439 = vmatpush.msra.mxu0 0.0
      %1440 = vmatpush.msra.mxu0 0.0
      %1441 = vmatpush.msra.mxu0 %v1388
      %1442 = vmatmul.f32.gmra.mxu0 %v1421
      %v1443 = vpop.f32.mrf.mxu0
      %v1444 = vadd.f32 0.0, %v1443
      %1445 = vmatmul.f32.gmra.mxu0 %v1424
      %v1446 = vpop.f32.mrf.mxu0
      %v1447 = vadd.f32 0.0, %v1446
      %1448 = vdwg.mxu0
      %v1450 = vsel %vm950, %v1383, 0
      %v1453 = vsel %vm950, %v1384, 0
      %1455 = vmatpush.msra.mxu0 0.0
      %1456 = vmatpush.msra.mxu0 0.0
      %1457 = vmatpush.msra.mxu0 0.0
      %1458 = vmatpush.msra.mxu0 0.0
      %1459 = vmatpush.msra.mxu0 0.0
      %1460 = vmatpush.msra.mxu0 0.0
      %1461 = vmatpush.msra.mxu0 0.0
      %1462 = vmatpush.msra.mxu0 0.0
      %1463 = vmatpush.msra.mxu0 0.0
      %1464 = vmatpush.msra.mxu0 0.0
      %1465 = vmatpush.msra.mxu0 0.0
      %1466 = vmatpush.msra.mxu0 0.0
      %1467 = vmatpush.msra.mxu0 0.0
      %1468 = vmatpush.msra.mxu0 0.0
      %1469 = vmatpush.msra.mxu0 0.0
      %1470 = vmatpush.msra.mxu0 %v1389
      %1471 = vmatmul.f32.gmra.mxu0 %v1450
      %v1472 = vpop.f32.mrf.mxu0
      %v1473 = vadd.f32 0.0, %v1472
      %1474 = vmatmul.f32.gmra.mxu0 %v1453
      %v1475 = vpop.f32.mrf.mxu0
      %v1476 = vadd.f32 0.0, %v1475
      %1477 = vdwg.mxu0
      %v1479 = vsel %vm950, %v1385, 0
      %v1482 = vsel %vm950, %v1386, 0
      %1484 = vmatpush.msra.mxu0 0.0
      %1485 = vmatpush.msra.mxu0 0.0
      %1486 = vmatpush.msra.mxu0 0.0
      %1487 = vmatpush.msra.mxu0 0.0
      %1488 = vmatpush.msra.mxu0 0.0
      %1489 = vmatpush.msra.mxu0 0.0
      %1490 = vmatpush.msra.mxu0 0.0
      %1491 = vmatpush.msra.mxu0 0.0
      %1492 = vmatpush.msra.mxu0 0.0
      %1493 = vmatpush.msra.mxu0 0.0
      %1494 = vmatpush.msra.mxu0 0.0
      %1495 = vmatpush.msra.mxu0 0.0
      %1496 = vmatpush.msra.mxu0 0.0
      %1497 = vmatpush.msra.mxu0 0.0
      %1498 = vmatpush.msra.mxu0 0.0
      %1499 = vmatpush.msra.mxu0 %v1390
      %1500 = vmatmul.f32.gmra.mxu0 %v1479
      %v1501 = vpop.f32.mrf.mxu0
      %v1502 = vadd.f32 0.0, %v1501
      %1503 = vmatmul.f32.gmra.mxu0 %v1482
      %v1504 = vpop.f32.mrf.mxu0
      %v1505 = vadd.f32 0.0, %v1504
      %1506 = vdwg.mxu0
      %v1507 = vsel %vm829, %v1415, 0.0
      %v1508 = vsel %vm829, %v1444, 0.0
      %v1509 = vadd.f32 %v1507, %v1508
      %v1510 = vsel %vm829, %v1473, 0.0
      %v1511 = vadd.f32 %v1509, %v1510
      %v1512 = vsel %vm829, %v1502, 0.0
      %v1513 = vadd.f32 %v1511, %v1512
      %v1514 = vsel %vm829, %v1418, 0.0
      %v1515 = vsel %vm829, %v1447, 0.0
      %v1516 = vadd.f32 %v1514, %v1515
      %v1517 = vsel %vm829, %v1476, 0.0
      %v1518 = vadd.f32 %v1516, %v1517
      %v1519 = vsel %vm829, %v1505, 0.0
      %v1520 = vadd.f32 %v1518, %v1519
      %v1521 = vld [vmem:[%s13] sm:$0x1]
      %v1523 = vperm.slane %v1521, 0
      %v1525 = vadd.f32 %v1513, %v1523
      %v1526 = vadd.f32 %v1520, %v1523
      %v1527 = vadd.f32 %v1525, %v825
      %v1528 = vadd.f32 %v1526, %v826
      %v1529 = vld [vmem:[%s14] sm:$0x1]
      %v1530 = vld [vmem:[%s15] sm:$0x1]
      %v1531 = vsel %vm829, %v1527, 0.0
      %1532 = vadd.xlane.f32.xlu0 %v1531
      %v1533 = vpop.xlane.xlu0 %1532
      %v1534 = vsel %vm829, %v1528, 0.0
      %1535 = vadd.xlane.f32.xlu0 %v1534
      %v1536 = vpop.xlane.xlu0 %1535
      %v1537 = vmul.f32 %v1533, %v842
      %v1538 = vmul.f32 %v1536, %v842
      %v1539 = vsub.f32 %v1527, %v1537
      %v1540 = vsub.f32 %v1528, %v1538
      %v1541 = vmul.f32 %v1539, %v1539
      %v1542 = vmul.f32 %v1540, %v1540
      %v1543 = vsel %vm829, %v1541, 0.0
      %1544 = vadd.xlane.f32.xlu0 %v1543
      %v1545 = vpop.xlane.xlu0 %1544
      %v1546 = vsel %vm829, %v1542, 0.0
      %1547 = vadd.xlane.f32.xlu0 %v1546
      %v1548 = vpop.xlane.xlu0 %1547
      %v1549 = vmul.f32 %v1545, %v842
      %v1550 = vmul.f32 %v1548, %v842
      %v1551 = vadd.f32 %v1549, 1e-05
      %v1552 = vadd.f32 %v1550, 1e-05
      %v1553 = vrsqrt.pop %v1551
      %v1554 = vmul.f32 %v1553, %v1551
      %v1555 = vmul.f32 %v1554, %v1553
      %v1556 = vmul.f32 0.5, %v1555
      %v1557 = vsub.f32 1.5, %v1556
      %v1558 = vmul.f32 %v1553, %v1557
      %vm1559 = vweird.f32 %v1551
      %vm1560 = vweird.f32 %v1553
      %vm1561 = vmor %vm1559, %vm1560
      %v1562 = vsel %vm1561, %v1553, %v1558
      %v1563 = vrsqrt.pop %v1552
      %v1564 = vmul.f32 %v1563, %v1552
      %v1565 = vmul.f32 %v1564, %v1563
      %v1566 = vmul.f32 0.5, %v1565
      %v1567 = vsub.f32 1.5, %v1566
      %v1568 = vmul.f32 %v1563, %v1567
      %vm1569 = vweird.f32 %v1552
      %vm1570 = vweird.f32 %v1563
      %vm1571 = vmor %vm1569, %vm1570
      %v1572 = vsel %vm1571, %v1563, %v1568
      %v1573 = vmul.f32 %v1539, %v1562
      %v1574 = vmul.f32 %v1540, %v1572
      %v1576 = vperm.slane %v1529, 0
      %v1578 = vmul.f32 %v1573, %v1576
      %v1579 = vmul.f32 %v1574, %v1576
      %v1581 = vperm.slane %v1530, 0
      %v1583 = vadd.f32 %v1578, %v1581
      %v1584 = vadd.f32 %v1579, %v1581
      %v1585 = vld [vmem:[%s16] sm:$0xff]
      %v1586 = vld [vmem:[%s16 + $0x8] sm:$0xff]
      %v1587 = vld [vmem:[%s16 + $0x10] sm:$0xff]
      %v1588 = vld [vmem:[%s16 + $0x18] sm:$0xff]
      %v1589 = vld [vmem:[%s17] sm:$0x1]
      %v1591 = vperm.slane %v1589, 0
      %v1594 = vsel %vm829, %v1583, 0
      %v1597 = vsel %vm829, %v1584, 0
      %1599 = vmatpush.msra.mxu0 0.0
      %1600 = vmatpush.msra.mxu0 0.0
      %1601 = vmatpush.msra.mxu0 0.0
      %1602 = vmatpush.msra.mxu0 0.0
      %1603 = vmatpush.msra.mxu0 0.0
      %1604 = vmatpush.msra.mxu0 0.0
      %1605 = vmatpush.msra.mxu0 0.0
      %1606 = vmatpush.msra.mxu0 0.0
      %1607 = vmatpush.msra.mxu0 0.0
      %1608 = vmatpush.msra.mxu0 0.0
      %1609 = vmatpush.msra.mxu0 0.0
      %1610 = vmatpush.msra.mxu0 0.0
      %1611 = vmatpush.msra.mxu0 %v1588
      %1612 = vmatpush.msra.mxu0 %v1587
      %1613 = vmatpush.msra.mxu0 %v1586
      %1614 = vmatpush.msra.mxu0 %v1585
      %1615 = vmatmul.f32.gmra.mxu0 %v1594
      %v1616 = vpop.f32.mrf.mxu0
      %v1617 = vadd.f32 %v1591, %v1616
      %1618 = vmatmul.f32.gmra.mxu0 %v1597
      %v1619 = vpop.f32.mrf.mxu0
      %v1620 = vadd.f32 %v1591, %v1619
      %1621 = vdwg.mxu0
      %v1622 = vmul.f32 %v1617, 0.5
      %v1623 = vmul.f32 %v1620, 0.5
      %v1624 = vmul.f32 %v1617, 0.70710677
      %v1625 = vmul.f32 %v1620, 0.70710677
      %v1626 = vmul.f32 %v1624, %v1624
      %v1627 = vmin.f32 16.0, %v1626
      %v1628 = vmul.f32 %v1627, 2.1237322e-06
      %v1629 = vadd.f32 %v1628, 0.00028619796
      %v1630 = vmul.f32 %v1627, %v1629
      %v1631 = vadd.f32 %v1630, 0.0036580483
      %v1632 = vmul.f32 %v1627, %v1631
      %v1633 = vadd.f32 %v1632, 0.05243302
      %v1634 = vmul.f32 %v1627, %v1633
      %v1635 = vadd.f32 %v1634, 0.18741608
      %v1636 = vmul.f32 %v1627, %v1635
      %v1637 = vadd.f32 %v1636, 1.1283791
      %v1638 = vmul.f32 %v1624, %v1637
      %v1639 = vmul.f32 %v1627, 3.8918573e-05
      %v1640 = vadd.f32 %v1639, 0.001143296
      %v1641 = vmul.f32 %v1627, %v1640
      %v1642 = vadd.f32 %v1641, 0.014752088
      %v1643 = vmul.f32 %v1627, %v1642
      %v1644 = vadd.f32 %v1643, 0.112945676
      %v1645 = vmul.f32 %v1627, %v1644
      %v1646 = vadd.f32 %v1645, 0.4994258
      %v1647 = vmul.f32 %v1627, %v1646
      %v1648 = vadd.f32 %v1647, 1.0
      %v1649 = vrcp.pop %v1648
      %v1650 = vmul.f32 %v1648, %v1649
      %v1651 = vsub.f32 1.0, %v1650
      %v1652 = vmul.f32 %v1649, %v1651
      %v1653 = vadd.f32 %v1649, %v1652
      %vm1654 = vweird.f32 %v1648
      %vm1655 = vweird.f32 %v1649
      %vm1656 = vmor %vm1654, %vm1655
      %v1657 = vsel %vm1656, %v1649, %v1653
      %v1658 = vand.u32 2147483647, %v1648
      %vm1659 = vcmp.eq.f32.partialorder %v1658, 8.507059e+37
      %v1660 = vand.u32 %v1648, 2147483648
      %v1661 = vor.u32 1.1754944e-38, %v1660
      %v1662 = vsel %vm1659, %v1661, %v1657
      %v1663 = vmul.f32 %v1638, %v1662
      %v1664 = vmin.f32 %v1663, 1.0
      %v1665 = vmax.f32 %v1664, -1.0
      %v1666 = vmul.f32 %v1625, %v1625
      %v1667 = vmin.f32 16.0, %v1666
      %v1668 = vmul.f32 %v1667, 2.1237322e-06
      %v1669 = vadd.f32 %v1668, 0.00028619796
      %v1670 = vmul.f32 %v1667, %v1669
      %v1671 = vadd.f32 %v1670, 0.0036580483
      %v1672 = vmul.f32 %v1667, %v1671
      %v1673 = vadd.f32 %v1672, 0.05243302
      %v1674 = vmul.f32 %v1667, %v1673
      %v1675 = vadd.f32 %v1674, 0.18741608
      %v1676 = vmul.f32 %v1667, %v1675
      %v1677 = vadd.f32 %v1676, 1.1283791
      %v1678 = vmul.f32 %v1625, %v1677
      %v1679 = vmul.f32 %v1667, 3.8918573e-05
      %v1680 = vadd.f32 %v1679, 0.001143296
      %v1681 = vmul.f32 %v1667, %v1680
      %v1682 = vadd.f32 %v1681, 0.014752088
      %v1683 = vmul.f32 %v1667, %v1682
      %v1684 = vadd.f32 %v1683, 0.112945676
      %v1685 = vmul.f32 %v1667, %v1684
      %v1686 = vadd.f32 %v1685, 0.4994258
      %v1687 = vmul.f32 %v1667, %v1686
      %v1688 = vadd.f32 %v1687, 1.0
      %v1689 = vrcp.pop %v1688
      %v1690 = vmul.f32 %v1688, %v1689
      %v1691 = vsub.f32 1.0, %v1690
      %v1692 = vmul.f32 %v1689, %v1691
      %v1693 = vadd.f32 %v1689, %v1692
      %vm1694 = vweird.f32 %v1688
      %vm1695 = vweird.f32 %v1689
      %vm1696 = vmor %vm1694, %vm1695
      %v1697 = vsel %vm1696, %v1689, %v1693
      %v1698 = vand.u32 2147483647, %v1688
      %vm1699 = vcmp.eq.f32.partialorder %v1698, 8.507059e+37
      %v1700 = vand.u32 %v1688, 2147483648
      %v1701 = vor.u32 1.1754944e-38, %v1700
      %v1702 = vsel %vm1699, %v1701, %v1697
      %v1703 = vmul.f32 %v1678, %v1702
      %v1704 = vmin.f32 %v1703, 1.0
      %v1705 = vmax.f32 %v1704, -1.0
      %v1706 = vadd.f32 %v1665, 1.0
      %v1707 = vadd.f32 %v1705, 1.0
      %v1708 = vmul.f32 %v1622, %v1706
      %v1709 = vmul.f32 %v1623, %v1707
      %v1710 = vld [vmem:[%s18] sm:$0xff]
      %v1711 = vld [vmem:[%s18 + $0x8] sm:$0xff]
      %v1712 = vld [vmem:[%s18 + $0x10] sm:$0xff]
      %v1713 = vld [vmem:[%s18 + $0x18] sm:$0xff]
      %v1714 = vld [vmem:[%s18 + $0x20] sm:$0xff]
      %v1715 = vld [vmem:[%s18 + $0x28] sm:$0xff]
      %v1716 = vld [vmem:[%s18 + $0x30] sm:$0xff]
      %v1717 = vld [vmem:[%s18 + $0x38] sm:$0xff]
      %v1718 = vld [vmem:[%s19] sm:$0x1]
      %v1720 = vperm.slane %v1718, 0
      %vm1722 = vcmask 523264
      %v1724 = vsel %vm1722, %v1708, 0
      %v1727 = vsel %vm1722, %v1709, 0
      %1729 = vmatpush.msra.mxu0 0.0
      %1730 = vmatpush.msra.mxu0 0.0
      %1731 = vmatpush.msra.mxu0 0.0
      %1732 = vmatpush.msra.mxu0 0.0
      %1733 = vmatpush.msra.mxu0 0.0
      %1734 = vmatpush.msra.mxu0 0.0
      %1735 = vmatpush.msra.mxu0 0.0
      %1736 = vmatpush.msra.mxu0 0.0
      %1737 = vmatpush.msra.mxu0 %v1717
      %1738 = vmatpush.msra.mxu0 %v1716
      %1739 = vmatpush.msra.mxu0 %v1715
      %1740 = vmatpush.msra.mxu0 %v1714
      %1741 = vmatpush.msra.mxu0 %v1713
      %1742 = vmatpush.msra.mxu0 %v1712
      %1743 = vmatpush.msra.mxu0 %v1711
      %1744 = vmatpush.msra.mxu0 %v1710
      %1745 = vmatmul.f32.gmra.mxu0 %v1724
      %v1746 = vpop.f32.mrf.mxu0
      %v1747 = vadd.f32 %v1720, %v1746
      %1748 = vmatmul.f32.gmra.mxu0 %v1727
      %v1749 = vpop.f32.mrf.mxu0
      %v1750 = vadd.f32 %v1720, %v1749
      %1751 = vdwg.mxu0
      %v1752 = vmul.f32 %v1747, 0.5
      %v1753 = vmul.f32 %v1750, 0.5
      %v1754 = vmul.f32 %v1747, 0.70710677
      %v1755 = vmul.f32 %v1750, 0.70710677
      %v1756 = vmul.f32 %v1754, %v1754
      %v1757 = vmin.f32 16.0, %v1756
      %v1758 = vmul.f32 %v1757, 2.1237322e-06
      %v1759 = vadd.f32 %v1758, 0.00028619796
      %v1760 = vmul.f32 %v1757, %v1759
      %v1761 = vadd.f32 %v1760, 0.0036580483
      %v1762 = vmul.f32 %v1757, %v1761
      %v1763 = vadd.f32 %v1762, 0.05243302
      %v1764 = vmul.f32 %v1757, %v1763
      %v1765 = vadd.f32 %v1764, 0.18741608
      %v1766 = vmul.f32 %v1757, %v1765
      %v1767 = vadd.f32 %v1766, 1.1283791
      %v1768 = vmul.f32 %v1754, %v1767
      %v1769 = vmul.f32 %v1757, 3.8918573e-05
      %v1770 = vadd.f32 %v1769, 0.001143296
      %v1771 = vmul.f32 %v1757, %v1770
      %v1772 = vadd.f32 %v1771, 0.014752088
      %v1773 = vmul.f32 %v1757, %v1772
      %v1774 = vadd.f32 %v1773, 0.112945676
      %v1775 = vmul.f32 %v1757, %v1774
      %v1776 = vadd.f32 %v1775, 0.4994258
      %v1777 = vmul.f32 %v1757, %v1776
      %v1778 = vadd.f32 %v1777, 1.0
      %v1779 = vrcp.pop %v1778
      %v1780 = vmul.f32 %v1778, %v1779
      %v1781 = vsub.f32 1.0, %v1780
      %v1782 = vmul.f32 %v1779, %v1781
      %v1783 = vadd.f32 %v1779, %v1782
      %vm1784 = vweird.f32 %v1778
      %vm1785 = vweird.f32 %v1779
      %vm1786 = vmor %vm1784, %vm1785
      %v1787 = vsel %vm1786, %v1779, %v1783
      %v1788 = vand.u32 2147483647, %v1778
      %vm1789 = vcmp.eq.f32.partialorder %v1788, 8.507059e+37
      %v1790 = vand.u32 %v1778, 2147483648
      %v1791 = vor.u32 1.1754944e-38, %v1790
      %v1792 = vsel %vm1789, %v1791, %v1787
      %v1793 = vmul.f32 %v1768, %v1792
      %v1794 = vmin.f32 %v1793, 1.0
      %v1795 = vmax.f32 %v1794, -1.0
      %v1796 = vmul.f32 %v1755, %v1755
      %v1797 = vmin.f32 16.0, %v1796
      %v1798 = vmul.f32 %v1797, 2.1237322e-06
      %v1799 = vadd.f32 %v1798, 0.00028619796
      %v1800 = vmul.f32 %v1797, %v1799
      %v1801 = vadd.f32 %v1800, 0.0036580483
      %v1802 = vmul.f32 %v1797, %v1801
      %v1803 = vadd.f32 %v1802, 0.05243302
      %v1804 = vmul.f32 %v1797, %v1803
      %v1805 = vadd.f32 %v1804, 0.18741608
      %v1806 = vmul.f32 %v1797, %v1805
      %v1807 = vadd.f32 %v1806, 1.1283791
      %v1808 = vmul.f32 %v1755, %v1807
      %v1809 = vmul.f32 %v1797, 3.8918573e-05
      %v1810 = vadd.f32 %v1809, 0.001143296
      %v1811 = vmul.f32 %v1797, %v1810
      %v1812 = vadd.f32 %v1811, 0.014752088
      %v1813 = vmul.f32 %v1797, %v1812
      %v1814 = vadd.f32 %v1813, 0.112945676
      %v1815 = vmul.f32 %v1797, %v1814
      %v1816 = vadd.f32 %v1815, 0.4994258
      %v1817 = vmul.f32 %v1797, %v1816
      %v1818 = vadd.f32 %v1817, 1.0
      %v1819 = vrcp.pop %v1818
      %v1820 = vmul.f32 %v1818, %v1819
      %v1821 = vsub.f32 1.0, %v1820
      %v1822 = vmul.f32 %v1819, %v1821
      %v1823 = vadd.f32 %v1819, %v1822
      %vm1824 = vweird.f32 %v1818
      %vm1825 = vweird.f32 %v1819
      %vm1826 = vmor %vm1824, %vm1825
      %v1827 = vsel %vm1826, %v1819, %v1823
      %v1828 = vand.u32 2147483647, %v1818
      %vm1829 = vcmp.eq.f32.partialorder %v1828, 8.507059e+37
      %v1830 = vand.u32 %v1818, 2147483648
      %v1831 = vor.u32 1.1754944e-38, %v1830
      %v1832 = vsel %vm1829, %v1831, %v1827
      %v1833 = vmul.f32 %v1808, %v1832
      %v1834 = vmin.f32 %v1833, 1.0
      %v1835 = vmax.f32 %v1834, -1.0
      %v1836 = vadd.f32 %v1795, 1.0
      %v1837 = vadd.f32 %v1835, 1.0
      %v1838 = vmul.f32 %v1752, %v1836
      %v1839 = vmul.f32 %v1753, %v1837
      %v1840 = vadd.f32 %v1838, %v1527
      %v1841 = vadd.f32 %v1839, %v1528
      %1842 = vst.msk [vmem:[%s684] sm:$0xff] %vm829, %v1840
      %1843 = vst.msk [vmem:[%s684 + $0x8] sm:$0xff] %vm829, %v1841
      %s1844 = smul.u32 2, %s36
      %p1845 = scmp.lt.s32.totalorder %s35, 1
      %s1846 = scalar_select %p1845, %s35, 1
      %p1847 = scmp.lt.s32.totalorder %s1844, 1
      %s1848 = scalar_select %p1847, %s1844, 1
      %s1849 = smul.addr %s1846, 2
      %s1850 = sadd.s32 %s1848, %s1849
      %s1851 = smul.addr %s1850, 8
      %s1852 = scalar_lea.vmem %s20, %s1851
      // Predicated region
      $region105: #{co_attention_layer.3} parent=99 // pred_check
        %p1853 = pneg %p495
      $region106: #{co_attention_layer.3} parent=99 // pred_check_branch
        %1855 = sbr.rel (%p1853) target = $region108
      $region107: #{co_attention_layer.3} parent=99 // pred_region
        %s1856 = smul.u32 2, %s36
      $region108: #{co_attention_layer.3} parent=99 // pred_fallthru
        _
    $region100: #{co_attention_layer.3} parent=5 // pred_fallthru
      _
    %p1857 = scmp.le.s32.totalorder 2, %s26
    // Predicated region
    $region109: #{co_attention_layer.3} parent=5 // pred_check
      %p1858 = pneg %p1857
    $region110: #{co_attention_layer.3} parent=5 // pred_check_branch
      %1860 = sbr.rel (%p1858) target = $region112
    $region111: #{co_attention_layer.3} parent=5 // pred_region
      %s1861 = ssub.s32 %s26, 2
      // Predicated region
      $region113: #{co_attention_layer.3} parent=111 // pred_check
        %p1862 = pneg %p501
      $region114: #{co_attention_layer.3} parent=111 // pred_check_branch
        %1864 = sbr.rel (%p1862) target = $region116
      $region115: #{co_attention_layer.3} parent=111 // pred_region
        %s1865 = smul.u32 2, %s38
        %p1866 = scmp.lt.s32.totalorder %s37, 1
        %s1867 = scalar_select %p1866, %s37, 1
        %p1868 = scmp.lt.s32.totalorder %s1865, 1
        %s1869 = scalar_select %p1868, %s1865, 1
        %s1870 = smul.addr %s1867, 2
        %s1871 = sadd.s32 %s1869, %s1870
        %s1872 = smul.addr %s1871, 8
        %s1873 = scalar_lea.vmem %s20, %s1872
      $region116: #{co_attention_layer.3} parent=111 // pred_fallthru
        _
    $region112: #{co_attention_layer.3} parent=5 // pred_fallthru
      _
  $region6: #{co_attention_layer.3} parent=0 // loop_footer
    %s30 = sadd.s32 1, %s26
  $region7: #{co_attention_layer.3} parent=0 // loop_footer_branch
    %25 = sbr.rel target = $region3
  $region8: #{co_attention_layer.3} parent=0 // loop_exit
    _

</llo_original>
